<compile_context>
chip_gen: v6e
topology: v6e:2x2x1
jax: 0.10.0
libtpu: 0.0.40
codegen_flags: <defaults>
</compile_context>

<pallas_src>
import functools
import math

import jax
import jax.numpy as jnp
from jax.experimental import pallas as pl
from jax.experimental.pallas import tpu as pltpu


# ----------------------------- in-kernel helpers -----------------------------

def _layernorm_f32(x, w, b, eps=1e-5):
    # PyTorch LayerNorm (biased variance), computed in fp32 like the fp16-safe subclass.
    xf = x.astype(jnp.float32)
    mu = jnp.mean(xf, axis=-1, keepdims=True)
    var = jnp.mean((xf - mu) ** 2, axis=-1, keepdims=True)
    return (xf - mu) * jax.lax.rsqrt(var + eps) * w + b


def _gelu_exact(x):
    # nn.GELU() default (erf-based, exact).
    return 0.5 * x * (1.0 + jax.lax.erf(x * (1.0 / math.sqrt(2.0))))


def _quick_gelu(x):
    return x * jax.nn.sigmoid(1.702 * x)


# --------------------------------- kernel ------------------------------------

def _residual_attention_block_kernel(
    x_ref,
    ln1_w_ref, ln1_b_ref,
    qkv_w_ref, qkv_b_ref, out_w_ref, out_b_ref,
    sa1_w_ref, sa1_b_ref, sa2_w_ref, sa2_b_ref,
    ln2_w_ref, ln2_b_ref,
    fc_w_ref, fc_b_ref, proj_w_ref, proj_b_ref,
    ma1_w_ref, ma1_b_ref, ma2_w_ref, ma2_b_ref,
    o_ref,
    ctx_ref,                                      # VMEM scratch (rows, d), compute dtype
    *, n_head, seq_len, batch_tile, scale, compute_dtype, approx_softmax, mlp_chunk,
):
    rows, d = x_ref.shape                         # rows = batch_tile * seq_len
    hd = d // n_head

    x = x_ref[...].astype(jnp.float32)            # residual path in fp32

    # ---------------- attention branch: attn(ln_1(x)) ----------------
    h = _layernorm_f32(x, ln1_w_ref[...], ln1_b_ref[...])
    # 1/sqrt(head_dim) is already folded into the Q columns of qkv_w / qkv_b (host side).
    # Cast to compute dtype right after the bias add: no fp32 (rows, 3d) tensor stays live.
    qkv = (jnp.dot(h.astype(compute_dtype), qkv_w_ref[...],
                   preferred_element_type=jnp.float32) + qkv_b_ref[...]).astype(compute_dtype)
    qkv = qkv.reshape(batch_tile, seq_len, 3 * d)

    # TODO(synk): replace the per-head lane slices with a batched dot over head groups
    # (avoids the hd<128 lane relayouts) once 2-batch-dim dot_general lowering is verified.
    for hh in range(n_head):                      # static head loop, batched over the tile
        qs = slice(hh * hd, (hh + 1) * hd)
        ks = slice(d + hh * hd, d + (hh + 1) * hd)
        vs = slice(2 * d + hh * hd, 2 * d + (hh + 1) * hd)
        s = jnp.einsum('bqc,bkc->bqk', qkv[:, :, qs], qkv[:, :, ks],
                       preferred_element_type=jnp.float32)                # (tb, n, n) fp32
        s = s - jnp.max(s, axis=-1, keepdims=True)
        p = jnp.exp(s)
        denom = jnp.sum(p, axis=-1, keepdims=True)
        if approx_softmax:
            p = p * pl.reciprocal(denom, approx=True)
        else:
            p = p / denom
        oh = jnp.einsum('bqk,bkc->bqc', p.astype(compute_dtype), qkv[:, :, vs],
                        preferred_element_type=jnp.float32)               # (tb, n, hd) fp32
        # Pack this head's context into its hd-slice of the (rows, d) scratch buffer.
        ctx_ref[:, qs] = oh.reshape(rows, hd).astype(compute_dtype)

    # Single K=d output projection over the packed head buffer (fills the MXU contraction).
    attn = jnp.dot(ctx_ref[...], out_w_ref[...],
                   preferred_element_type=jnp.float32) + out_b_ref[...]

    # ---------------- S_Adapter (skip_connect=True) ----------------
    sa = jnp.dot(attn.astype(compute_dtype), sa1_w_ref[...],
                 preferred_element_type=jnp.float32) + sa1_b_ref[...]
    sa = _gelu_exact(sa)
    sa = jnp.dot(sa.astype(compute_dtype), sa2_w_ref[...],
                 preferred_element_type=jnp.float32) + sa2_b_ref[...]
    x1 = x + attn + sa                            # x + S_Adapter(attention(ln_1(x)))

    # ---------------- MLP branch (chunked hidden dim) + MLP_Adapter (skip_connect=False) ----
    xn = _layernorm_f32(x1, ln2_w_ref[...], ln2_b_ref[...])
    xn_c = xn.astype(compute_dtype)

    d_hidden = fc_w_ref.shape[1]                  # 4 * d
    num_chunks = d_hidden // mlp_chunk
    mlp = jnp.zeros((rows, d), jnp.float32)
    for c in range(num_chunks):                   # never materialize the full (rows, 4d) fp32
        cs = slice(c * mlp_chunk, (c + 1) * mlp_chunk)
        hm = jnp.dot(xn_c, fc_w_ref[:, cs],
                     preferred_element_type=jnp.float32) + fc_b_ref[:, cs]
        hm = _quick_gelu(hm)
        mlp = mlp + jnp.dot(hm.astype(compute_dtype), proj_w_ref[cs, :],
                            preferred_element_type=jnp.float32)
    mlp = mlp + proj_b_ref[...]

    ma = jnp.dot(xn_c, ma1_w_ref[...],
                 preferred_element_type=jnp.float32) + ma1_b_ref[...]
    ma = _gelu_exact(ma)
    ma = jnp.dot(ma.astype(compute_dtype), ma2_w_ref[...],
                 preferred_element_type=jnp.float32) + ma2_b_ref[...]

    out = x1 + mlp + scale * ma                   # drop_path == Identity
    o_ref[...] = out.astype(o_ref.dtype)


# --------------------------------- wrapper -----------------------------------

_PARAM_ORDER = (
    "ln1_w", "ln1_b",
    "qkv_w", "qkv_b", "out_w", "out_b",
    "sa1_w", "sa1_b", "sa2_w", "sa2_b",
    "ln2_w", "ln2_b",
    "fc_w", "fc_b", "proj_w", "proj_b",
    "ma1_w", "ma1_b", "ma2_w", "ma2_b",
)

_MATMUL_PARAMS = ("qkv_w", "out_w", "sa1_w", "sa2_w", "fc_w", "proj_w", "ma1_w", "ma2_w")


def _vmem_limit_bytes():
    """Scoped VMEM limit derived from the chip's physical capacity."""
    try:
        cap = int(pltpu.get_tpu_info().vmem_capacity_bytes)
    except Exception:
        cap = 64 * 1024 * 1024
    if cap <= 64 * 1024 * 1024:
        # 64 MiB/TC parts (v7x): leave ~8 MiB for compiler-internal scratch.
        return cap - 8 * 1024 * 1024
    # 128 MiB parts (v5e/v6e): ~100 MiB scoped leaves headroom for surrounding XLA ops.
    return min(cap - 28 * 1024 * 1024, 100 * 1024 * 1024)


def _pick_batch_tile(bt, n, batch_tile):
    """Prefer divisors of bt (no padded rows), sublane-aligned row blocks, and >=2 grid
    steps (2-TC chips) when the tile stays large enough for the MXU."""
    cap = max(1, min(batch_tile, bt))
    best = None
    for tb in range(cap, 0, -1):
        if bt % tb == 0 and (tb * n) % 8 == 0:
            best = tb
            break
    if best is None:
        for tb in range(cap, bt + 1):             # padding needed; keep rows sublane-aligned
            if (tb * n) % 8 == 0:
                best = tb
                break
    if best is None:
        best = bt
    if best == bt and bt > 1:
        # Expose >=2 grid steps (megacore) if a reasonably big divisor tile exists.
        for tb in range(bt // 2, 0, -1):
            if bt % tb == 0 and (tb * n) % 8 == 0 and tb * n >= 256:
                best = tb
                break
    return best


def _pick_mlp_chunk(d_hidden, max_chunk=1024):
    """Largest lane-aligned chunk of the MLP hidden dim (<= max_chunk) that divides it."""
    if d_hidden <= max_chunk:
        return d_hidden
    for c in range(max_chunk, 127, -128):
        if d_hidden % c == 0:
            return c
    return d_hidden


def _prepare_params(params, d, n_head, compute_dtype):
    """Normalize shapes, fold 1/sqrt(head_dim) into Q, and cast matmul weights."""
    inv = 1.0 / math.sqrt(d // n_head)
    p = {}
    for name in _PARAM_ORDER:
        a = jnp.asarray(params[name])
        if a.ndim == 1:                            # accept PyTorch-native (N,) biases / LN params
            a = a.reshape(1, -1)
        p[name] = a.astype(jnp.float32)
    qkv_w, qkv_b = p["qkv_w"], p["qkv_b"]
    p["qkv_w"] = jnp.concatenate([qkv_w[:, :d] * inv, qkv_w[:, d:]], axis=1)
    p["qkv_b"] = jnp.concatenate([qkv_b[:, :d] * inv, qkv_b[:, d:]], axis=1)
    prepared = {}
    for name in _PARAM_ORDER:
        if name in _MATMUL_PARAMS:
            prepared[name] = p[name].astype(compute_dtype)   # MXU operands (bf16 by default)
        else:
            prepared[name] = p[name]                          # LN params / biases stay fp32
    return prepared


def residual_attention_block_bnd(x_bnd, params, *, n_head, scale=1.0,
                                 batch_tile=8, compute_dtype=jnp.bfloat16,
                                 approx_softmax=None, mlp_chunk=None,
                                 single_buffer_weights=True):
    """Batch-major entry point.  x_bnd: (bt, n, d).  Returns (bt, n, d)."""
    bt, n, d = x_bnd.shape
    assert d % n_head == 0
    if approx_softmax is None:
        approx_softmax = (compute_dtype != jnp.float32)

    tb = _pick_batch_tile(bt, n, batch_tile)
    n_blocks = -(-bt // tb)
    bt_pad = n_blocks * tb
    if bt_pad != bt:
        # Padded batch rows are numerically safe (all-zero rows stay finite through LN /
        # softmax) and are discarded below, but they burn compute; prefer bt % tb == 0.
        x_bnd = jnp.pad(x_bnd, ((0, bt_pad - bt), (0, 0), (0, 0)))

    rows = tb * n
    x2 = x_bnd.reshape(bt_pad * n, d)              # free reshape (row-major collapse)

    prepared = _prepare_params(params, d, n_head, compute_dtype)
    weight_arrays = [prepared[name] for name in _PARAM_ORDER]

    d_hidden = prepared["fc_w"].shape[1]
    if mlp_chunk is None:
        mlp_chunk = _pick_mlp_chunk(d_hidden)
    assert d_hidden % mlp_chunk == 0

    kernel = functools.partial(
        _residual_attention_block_kernel,
        n_head=n_head, seq_len=n, batch_tile=tb, scale=float(scale),
        compute_dtype=compute_dtype, approx_softmax=approx_softmax,
        mlp_chunk=mlp_chunk,
    )

    # TODO(synk): for very large d on v7x, stream fc_w/proj_w from HBM with emit_pipeline
    # instead of keeping them fully VMEM-resident; single-buffered bf16 weights fit ViT-B/L.
    def _run(use_single_buffer):
        if use_single_buffer:
            # Constant index_map -> double buffering buys nothing; request 1 buffer per weight.
            w_specs = [pl.BlockSpec(a.shape, lambda b: (0, 0),
                                    pipeline_mode=pl.Buffered(1))
                       for a in weight_arrays]
        else:
            w_specs = [pl.BlockSpec(a.shape, lambda b: (0, 0)) for a in weight_arrays]
        return pl.pallas_call(
            kernel,
            out_shape=jax.ShapeDtypeStruct((bt_pad * n, d), x_bnd.dtype),
            grid_spec=pltpu.PrefetchScalarGridSpec(
                num_scalar_prefetch=0,
                grid=(n_blocks,),
                in_specs=[pl.BlockSpec((rows, d), lambda b: (b, 0))] + w_specs,
                out_specs=pl.BlockSpec((rows, d), lambda b: (b, 0)),
                scratch_shapes=[pltpu.VMEM((rows, d), compute_dtype)],
            ),
            compiler_params=pltpu.CompilerParams(
                dimension_semantics=("parallel",),
                vmem_limit_bytes=_vmem_limit_bytes(),
            ),
        )(x2, *weight_arrays)

    if single_buffer_weights:
        try:
            out2 = _run(True)
        except Exception:
            out2 = _run(False)     # fallback if this jax rejects pl.Buffered(1)
    else:
        out2 = _run(False)

    out = out2.reshape(bt_pad, n, d)
    return out[:bt] if bt_pad != bt else out


def residual_attention_block(x, params, *, n_head, scale=1.0,
                             batch_tile=8, compute_dtype=jnp.bfloat16,
                             approx_softmax=None, mlp_chunk=None):
    """Module-convention entry point.  x: (n, bt, d) as in nn.MultiheadAttention.

    Prefer feeding batch-major activations to residual_attention_block_bnd across all layers
    and transposing only at model boundaries; the transposes here are an HBM round-trip kept
    for API fidelity with the PyTorch module.
    """
    n, bt, d = x.shape
    x_bnd = jnp.transpose(x, (1, 0, 2))
    out = residual_attention_block_bnd(
        x_bnd, params, n_head=n_head, scale=scale, batch_tile=batch_tile,
        compute_dtype=compute_dtype, approx_softmax=approx_softmax, mlp_chunk=mlp_chunk)
    return jnp.transpose(out, (1, 0, 2))


# ------------------------------ plain-JAX reference ---------------------------

def _ref_block(x, p, n_head, scale):
    # x: (n, bt, d)
    xt = jnp.transpose(x, (1, 0, 2)).astype(jnp.float32)   # (bt, n, d)
    bt, n, d = xt.shape
    hd = d // n_head

    def ln(v, w, b):
        mu = v.mean(-1, keepdims=True)
        var = ((v - mu) ** 2).mean(-1, keepdims=True)
        return (v - mu) / jnp.sqrt(var + 1e-5) * w + b

    h = ln(xt, p["ln1_w"], p["ln1_b"])
    qkv = h @ p["qkv_w"] + p["qkv_b"]
    q, k, v = jnp.split(qkv, 3, axis=-1)
    q = q.reshape(bt, n, n_head, hd).transpose(0, 2, 1, 3) / math.sqrt(hd)
    k = k.reshape(bt, n, n_head, hd).transpose(0, 2, 1, 3)
    v = v.reshape(bt, n, n_head, hd).transpose(0, 2, 1, 3)
    s = q @ k.transpose(0, 1, 3, 2)
    pa = jax.nn.softmax(s, axis=-1)
    a = (pa @ v).transpose(0, 2, 1, 3).reshape(bt, n, d)
    a = a @ p["out_w"] + p["out_b"]

    sa = a @ p["sa1_w"] + p["sa1_b"]
    sa = jax.nn.gelu(sa, approximate=False)
    sa = sa @ p["sa2_w"] + p["sa2_b"]
    x1 = xt + a + sa

    xn = ln(x1, p["ln2_w"], p["ln2_b"])
    hm = xn @ p["fc_w"] + p["fc_b"]
    hm = hm * jax.nn.sigmoid(1.702 * hm)
    mlp = hm @ p["proj_w"] + p["proj_b"]

    ma = xn @ p["ma1_w"] + p["ma1_b"]
    ma = jax.nn.gelu(ma, approximate=False)
    ma = ma @ p["ma2_w"] + p["ma2_b"]

    out = x1 + mlp + scale * ma
    return jnp.transpose(out, (1, 0, 2))


# ------------------------------------ main ------------------------------------

def _init_params(key, d, n_head):
    d_hid_adapter = int(d * 0.25)
    shapes = {
        "ln1_w": (1, d), "ln1_b": (1, d),
        "qkv_w": (d, 3 * d), "qkv_b": (1, 3 * d),
        "out_w": (d, d), "out_b": (1, d),
        "sa1_w": (d, d_hid_adapter), "sa1_b": (1, d_hid_adapter),
        "sa2_w": (d_hid_adapter, d), "sa2_b": (1, d),
        "ln2_w": (1, d), "ln2_b": (1, d),
        "fc_w": (d, 4 * d), "fc_b": (1, 4 * d),
        "proj_w": (4 * d, d), "proj_b": (1, d),
        "ma1_w": (d, d_hid_adapter), "ma1_b": (1, d_hid_adapter),
        "ma2_w": (d_hid_adapter, d), "ma2_b": (1, d),
    }
    params = {}
    keys = jax.random.split(key, len(shapes))
    for k_, (name, shp) in zip(keys, sorted(shapes.items())):
        if name in ("ln1_w", "ln2_w"):
            params[name] = jnp.ones(shp, jnp.float32)
        elif name in ("ln1_b", "ln2_b"):
            params[name] = jnp.zeros(shp, jnp.float32)
        else:
            params[name] = 0.05 * jax.random.normal(k_, shp, jnp.float32)
    return params


if __name__ == "__main__":
    d_model = 32
    n_head = 4
    seq_len = 8      # n
    batch = 4        # bt
    scale = 0.5

    key = jax.random.PRNGKey(0)
    k_x, k_p = jax.random.split(key)
    x = jax.random.normal(k_x, (seq_len, batch, d_model), jnp.float32)
    params = _init_params(k_p, d_model, n_head)

    ref = _ref_block(x, params, n_head, scale)

    # Fast path: bf16 MXU operands, fp32 accumulation / LayerNorm / softmax.
    out_bf16 = residual_attention_block(x, params, n_head=n_head, scale=scale,
                                        batch_tile=2, compute_dtype=jnp.bfloat16)
    out_bf16 = jax.block_until_ready(out_bf16)
    assert out_bf16.shape == (seq_len, batch, d_model)
    assert jnp.allclose(out_bf16, ref, rtol=3e-2, atol=3e-2), (
        f"bf16 max abs err = {float(jnp.max(jnp.abs(out_bf16 - ref)))}")

    # Strict path: fp32 everywhere, exact softmax (tight check of the restructured math).
    out_f32 = residual_attention_block(x, params, n_head=n_head, scale=scale,
                                       batch_tile=2, compute_dtype=jnp.float32)
    out_f32 = jax.block_until_ready(out_f32)
    assert jnp.allclose(out_f32, ref, rtol=1e-4, atol=1e-4), (
        f"f32 max abs err = {float(jnp.max(jnp.abs(out_f32 - ref)))}")

    print("KERNEL_OK")
</pallas_src>

<mosaic_0001>
module attributes {stable_mosaic.version = 11 : i64} {
  func.func @_residual_attention_block_kernel(%arg0: i32, %arg1: memref<16x32xf32, #tpu.memory_space<vmem>>, %arg2: memref<1x32xf32, #tpu.memory_space<vmem>>, %arg3: memref<1x32xf32, #tpu.memory_space<vmem>>, %arg4: memref<32x96xbf16, #tpu.memory_space<vmem>>, %arg5: memref<1x96xf32, #tpu.memory_space<vmem>>, %arg6: memref<32x32xbf16, #tpu.memory_space<vmem>>, %arg7: memref<1x32xf32, #tpu.memory_space<vmem>>, %arg8: memref<32x8xbf16, #tpu.memory_space<vmem>>, %arg9: memref<1x8xf32, #tpu.memory_space<vmem>>, %arg10: memref<8x32xbf16, #tpu.memory_space<vmem>>, %arg11: memref<1x32xf32, #tpu.memory_space<vmem>>, %arg12: memref<1x32xf32, #tpu.memory_space<vmem>>, %arg13: memref<1x32xf32, #tpu.memory_space<vmem>>, %arg14: memref<32x128xbf16, #tpu.memory_space<vmem>>, %arg15: memref<1x128xf32, #tpu.memory_space<vmem>>, %arg16: memref<128x32xbf16, #tpu.memory_space<vmem>>, %arg17: memref<1x32xf32, #tpu.memory_space<vmem>>, %arg18: memref<32x8xbf16, #tpu.memory_space<vmem>>, %arg19: memref<1x8xf32, #tpu.memory_space<vmem>>, %arg20: memref<8x32xbf16, #tpu.memory_space<vmem>>, %arg21: memref<1x32xf32, #tpu.memory_space<vmem>>, %arg22: memref<16x32xf32, #tpu.memory_space<vmem>>, %arg23: memref<16x32xbf16, #tpu.memory_space<vmem>>) attributes {dimension_semantics = [#tpu.dimension_semantics<parallel>], iteration_bounds = array<i64: 2>, scalar_prefetch = 0 : i64, scratch_operands = 1 : i64, tpu.core_type = #tpu.core_type<tc>, window_params = [{transform_indices = @transform_0, window_bounds = array<i64: 16, 32>}, {pipeline_mode = #tpu.pipeline_mode<synchronous>, transform_indices = @transform_1, window_bounds = array<i64: 1, 32>}, {pipeline_mode = #tpu.pipeline_mode<synchronous>, transform_indices = @transform_2, window_bounds = array<i64: 1, 32>}, {pipeline_mode = #tpu.pipeline_mode<synchronous>, transform_indices = @transform_3, window_bounds = array<i64: 32, 96>}, {pipeline_mode = #tpu.pipeline_mode<synchronous>, transform_indices = @transform_4, window_bounds = array<i64: 1, 96>}, {pipeline_mode = #tpu.pipeline_mode<synchronous>, transform_indices = @transform_5, window_bounds = array<i64: 32, 32>}, {pipeline_mode = #tpu.pipeline_mode<synchronous>, transform_indices = @transform_6, window_bounds = array<i64: 1, 32>}, {pipeline_mode = #tpu.pipeline_mode<synchronous>, transform_indices = @transform_7, window_bounds = array<i64: 32, 8>}, {pipeline_mode = #tpu.pipeline_mode<synchronous>, transform_indices = @transform_8, window_bounds = array<i64: 1, 8>}, {pipeline_mode = #tpu.pipeline_mode<synchronous>, transform_indices = @transform_9, window_bounds = array<i64: 8, 32>}, {pipeline_mode = #tpu.pipeline_mode<synchronous>, transform_indices = @transform_10, window_bounds = array<i64: 1, 32>}, {pipeline_mode = #tpu.pipeline_mode<synchronous>, transform_indices = @transform_11, window_bounds = array<i64: 1, 32>}, {pipeline_mode = #tpu.pipeline_mode<synchronous>, transform_indices = @transform_12, window_bounds = array<i64: 1, 32>}, {pipeline_mode = #tpu.pipeline_mode<synchronous>, transform_indices = @transform_13, window_bounds = array<i64: 32, 128>}, {pipeline_mode = #tpu.pipeline_mode<synchronous>, transform_indices = @transform_14, window_bounds = array<i64: 1, 128>}, {pipeline_mode = #tpu.pipeline_mode<synchronous>, transform_indices = @transform_15, window_bounds = array<i64: 128, 32>}, {pipeline_mode = #tpu.pipeline_mode<synchronous>, transform_indices = @transform_16, window_bounds = array<i64: 1, 32>}, {pipeline_mode = #tpu.pipeline_mode<synchronous>, transform_indices = @transform_17, window_bounds = array<i64: 32, 8>}, {pipeline_mode = #tpu.pipeline_mode<synchronous>, transform_indices = @transform_18, window_bounds = array<i64: 1, 8>}, {pipeline_mode = #tpu.pipeline_mode<synchronous>, transform_indices = @transform_19, window_bounds = array<i64: 8, 32>}, {pipeline_mode = #tpu.pipeline_mode<synchronous>, transform_indices = @transform_20, window_bounds = array<i64: 1, 32>}, {transform_indices = @transform_21, window_bounds = array<i64: 16, 32>}]} {
    %c0 = arith.constant 0 : index
    %c0_0 = arith.constant 0 : index
    %0 = vector.load %arg1[%c0, %c0_0] : memref<16x32xf32, #tpu.memory_space<vmem>>, vector<16x32xf32>
    %c0_1 = arith.constant 0 : index
    %c0_2 = arith.constant 0 : index
    %1 = vector.load %arg2[%c0_1, %c0_2] : memref<1x32xf32, #tpu.memory_space<vmem>>, vector<1x32xf32>
    %c0_3 = arith.constant 0 : index
    %c0_4 = arith.constant 0 : index
    %2 = vector.load %arg3[%c0_3, %c0_4] : memref<1x32xf32, #tpu.memory_space<vmem>>, vector<1x32xf32>
    %cst = arith.constant dense<0.000000e+00> : vector<16xf32>
    %3 = vector.multi_reduction <add>, %0, %cst [1] : vector<16x32xf32> to vector<16xf32>
    %4 = vector.shape_cast %3 : vector<16xf32> to vector<16x1xf32>
    %cst_5 = arith.constant 3.200000e+01 : f32
    %5 = vector.broadcast %cst_5 : f32 to vector<16x1xf32>
    %6 = arith.divf %4, %5 : vector<16x1xf32>
    %7 = vector.broadcast %6 : vector<16x1xf32> to vector<16x32xf32>
    %8 = arith.subf %0, %7 : vector<16x32xf32>
    %9 = arith.mulf %8, %8 : vector<16x32xf32>
    %cst_6 = arith.constant dense<0.000000e+00> : vector<16xf32>
    %10 = vector.multi_reduction <add>, %9, %cst_6 [1] : vector<16x32xf32> to vector<16xf32>
    %11 = vector.shape_cast %10 : vector<16xf32> to vector<16x1xf32>
    %cst_7 = arith.constant 3.200000e+01 : f32
    %12 = vector.broadcast %cst_7 : f32 to vector<16x1xf32>
    %13 = arith.divf %11, %12 : vector<16x1xf32>
    %14 = vector.broadcast %6 : vector<16x1xf32> to vector<16x32xf32>
    %15 = arith.subf %0, %14 : vector<16x32xf32>
    %cst_8 = arith.constant 9.99999974E-6 : f32
    %16 = vector.broadcast %cst_8 : f32 to vector<16x1xf32>
    %17 = arith.addf %13, %16 : vector<16x1xf32>
    %18 = math.rsqrt %17 : vector<16x1xf32>
    %19 = vector.broadcast %18 : vector<16x1xf32> to vector<16x32xf32>
    %20 = arith.mulf %15, %19 : vector<16x32xf32>
    %21 = vector.broadcast %1 : vector<1x32xf32> to vector<16x32xf32>
    %22 = arith.mulf %20, %21 : vector<16x32xf32>
    %23 = vector.broadcast %2 : vector<1x32xf32> to vector<16x32xf32>
    %24 = arith.addf %22, %23 : vector<16x32xf32>
    %25 = arith.truncf %24 : vector<16x32xf32> to vector<16x32xbf16>
    %c0_9 = arith.constant 0 : index
    %c0_10 = arith.constant 0 : index
    %26 = vector.load %arg4[%c0_9, %c0_10] : memref<32x96xbf16, #tpu.memory_space<vmem>>, vector<32x96xbf16>
    %cst_11 = arith.constant dense<0.000000e+00> : vector<16x96xf32>
    %27 = tpu.matmul %25, %26, %cst_11 {dimension_numbers = #tpu.dot_dimension_numbers<[1], [0], [0], [1], [0, 0, 1, 1], [], []>} : vector<16x32xbf16>, vector<32x96xbf16>, vector<16x96xf32> -> vector<16x96xf32>
    %c0_12 = arith.constant 0 : index
    %c0_13 = arith.constant 0 : index
    %28 = vector.load %arg5[%c0_12, %c0_13] : memref<1x96xf32, #tpu.memory_space<vmem>>, vector<1x96xf32>
    %29 = vector.broadcast %28 : vector<1x96xf32> to vector<16x96xf32>
    %30 = arith.addf %27, %29 : vector<16x96xf32>
    %31 = arith.truncf %30 : vector<16x96xf32> to vector<16x96xbf16>
    %32 = vector.shape_cast %31 : vector<16x96xbf16> to vector<2x8x96xbf16>
    %33 = vector.extract_strided_slice %32 {offsets = [0, 0, 0], sizes = [2, 8, 8], strides = [1, 1, 1]} : vector<2x8x96xbf16> to vector<2x8x8xbf16>
    %34 = vector.extract_strided_slice %32 {offsets = [0, 0, 32], sizes = [2, 8, 8], strides = [1, 1, 1]} : vector<2x8x96xbf16> to vector<2x8x8xbf16>
    "tpu.trace_start"() <{level = 10 : i32, message = "bqc,bkc->bqk"}> : () -> ()
    %cst_14 = arith.constant dense<0.000000e+00> : vector<2x8x8xf32>
    %35 = tpu.matmul %33, %34, %cst_14 {dimension_numbers = #tpu.dot_dimension_numbers<[2], [2], [1], [1], [0, 0, 0, 1, 1, 1], [0], [0]>} : vector<2x8x8xbf16>, vector<2x8x8xbf16>, vector<2x8x8xf32> -> vector<2x8x8xf32>
    "tpu.trace_stop"() : () -> ()
    %cst_15 = arith.constant dense<0xFF800000> : vector<2x8xf32>
    %36 = vector.multi_reduction <maximumf>, %35, %cst_15 [2] : vector<2x8x8xf32> to vector<2x8xf32>
    %37 = vector.shape_cast %36 : vector<2x8xf32> to vector<2x8x1xf32>
    %38 = vector.broadcast %37 : vector<2x8x1xf32> to vector<2x8x8xf32>
    %39 = arith.subf %35, %38 : vector<2x8x8xf32>
    %40 = math.exp %39 : vector<2x8x8xf32>
    %cst_16 = arith.constant dense<0.000000e+00> : vector<2x8xf32>
    %41 = vector.multi_reduction <add>, %40, %cst_16 [2] : vector<2x8x8xf32> to vector<2x8xf32>
    %42 = vector.shape_cast %41 : vector<2x8xf32> to vector<2x8x1xf32>
    %43 = tpu.reciprocal %42 {approx = true} : vector<2x8x1xf32> -> vector<2x8x1xf32>
    %44 = vector.broadcast %43 : vector<2x8x1xf32> to vector<2x8x8xf32>
    %45 = arith.mulf %40, %44 : vector<2x8x8xf32>
    %46 = arith.truncf %45 : vector<2x8x8xf32> to vector<2x8x8xbf16>
    %47 = vector.extract_strided_slice %32 {offsets = [0, 0, 64], sizes = [2, 8, 8], strides = [1, 1, 1]} : vector<2x8x96xbf16> to vector<2x8x8xbf16>
    "tpu.trace_start"() <{level = 10 : i32, message = "bqk,bkc->bqc"}> : () -> ()
    %cst_17 = arith.constant dense<0.000000e+00> : vector<2x8x8xf32>
    %48 = tpu.matmul %46, %47, %cst_17 {dimension_numbers = #tpu.dot_dimension_numbers<[2], [1], [1], [2], [0, 0, 0, 1, 1, 2], [0], [0]>} : vector<2x8x8xbf16>, vector<2x8x8xbf16>, vector<2x8x8xf32> -> vector<2x8x8xf32>
    "tpu.trace_stop"() : () -> ()
    %49 = vector.shape_cast %48 : vector<2x8x8xf32> to vector<16x8xf32>
    %50 = arith.truncf %49 : vector<16x8xf32> to vector<16x8xbf16>
    %c0_18 = arith.constant 0 : index
    %c0_19 = arith.constant 0 : index
    %51 = vector.load %arg23[%c0_18, %c0_19] : memref<16x32xbf16, #tpu.memory_space<vmem>>, vector<16x8xbf16>
    tpu.vector_store %arg23[%c0_18, %c0_19], %50 {strides = array<i32>} : memref<16x32xbf16, #tpu.memory_space<vmem>>, vector<16x8xbf16>,
    %52 = vector.extract_strided_slice %32 {offsets = [0, 0, 8], sizes = [2, 8, 8], strides = [1, 1, 1]} : vector<2x8x96xbf16> to vector<2x8x8xbf16>
    %53 = vector.extract_strided_slice %32 {offsets = [0, 0, 40], sizes = [2, 8, 8], strides = [1, 1, 1]} : vector<2x8x96xbf16> to vector<2x8x8xbf16>
    "tpu.trace_start"() <{level = 10 : i32, message = "bqc,bkc->bqk"}> : () -> ()
    %cst_20 = arith.constant dense<0.000000e+00> : vector<2x8x8xf32>
    %54 = tpu.matmul %52, %53, %cst_20 {dimension_numbers = #tpu.dot_dimension_numbers<[2], [2], [1], [1], [0, 0, 0, 1, 1, 1], [0], [0]>} : vector<2x8x8xbf16>, vector<2x8x8xbf16>, vector<2x8x8xf32> -> vector<2x8x8xf32>
    "tpu.trace_stop"() : () -> ()
    %cst_21 = arith.constant dense<0xFF800000> : vector<2x8xf32>
    %55 = vector.multi_reduction <maximumf>, %54, %cst_21 [2] : vector<2x8x8xf32> to vector<2x8xf32>
    %56 = vector.shape_cast %55 : vector<2x8xf32> to vector<2x8x1xf32>
    %57 = vector.broadcast %56 : vector<2x8x1xf32> to vector<2x8x8xf32>
    %58 = arith.subf %54, %57 : vector<2x8x8xf32>
    %59 = math.exp %58 : vector<2x8x8xf32>
    %cst_22 = arith.constant dense<0.000000e+00> : vector<2x8xf32>
    %60 = vector.multi_reduction <add>, %59, %cst_22 [2] : vector<2x8x8xf32> to vector<2x8xf32>
    %61 = vector.shape_cast %60 : vector<2x8xf32> to vector<2x8x1xf32>
    %62 = tpu.reciprocal %61 {approx = true} : vector<2x8x1xf32> -> vector<2x8x1xf32>
    %63 = vector.broadcast %62 : vector<2x8x1xf32> to vector<2x8x8xf32>
    %64 = arith.mulf %59, %63 : vector<2x8x8xf32>
    %65 = arith.truncf %64 : vector<2x8x8xf32> to vector<2x8x8xbf16>
    %66 = vector.extract_strided_slice %32 {offsets = [0, 0, 72], sizes = [2, 8, 8], strides = [1, 1, 1]} : vector<2x8x96xbf16> to vector<2x8x8xbf16>
    "tpu.trace_start"() <{level = 10 : i32, message = "bqk,bkc->bqc"}> : () -> ()
    %cst_23 = arith.constant dense<0.000000e+00> : vector<2x8x8xf32>
    %67 = tpu.matmul %65, %66, %cst_23 {dimension_numbers = #tpu.dot_dimension_numbers<[2], [1], [1], [2], [0, 0, 0, 1, 1, 2], [0], [0]>} : vector<2x8x8xbf16>, vector<2x8x8xbf16>, vector<2x8x8xf32> -> vector<2x8x8xf32>
    "tpu.trace_stop"() : () -> ()
    %68 = vector.shape_cast %67 : vector<2x8x8xf32> to vector<16x8xf32>
    %69 = arith.truncf %68 : vector<16x8xf32> to vector<16x8xbf16>
    %c0_24 = arith.constant 0 : index
    %c8 = arith.constant 8 : index
    %70 = vector.load %arg23[%c0_24, %c8] : memref<16x32xbf16, #tpu.memory_space<vmem>>, vector<16x8xbf16>
    tpu.vector_store %arg23[%c0_24, %c8], %69 {strides = array<i32>} : memref<16x32xbf16, #tpu.memory_space<vmem>>, vector<16x8xbf16>,
    %71 = vector.extract_strided_slice %32 {offsets = [0, 0, 16], sizes = [2, 8, 8], strides = [1, 1, 1]} : vector<2x8x96xbf16> to vector<2x8x8xbf16>
    %72 = vector.extract_strided_slice %32 {offsets = [0, 0, 48], sizes = [2, 8, 8], strides = [1, 1, 1]} : vector<2x8x96xbf16> to vector<2x8x8xbf16>
    "tpu.trace_start"() <{level = 10 : i32, message = "bqc,bkc->bqk"}> : () -> ()
    %cst_25 = arith.constant dense<0.000000e+00> : vector<2x8x8xf32>
    %73 = tpu.matmul %71, %72, %cst_25 {dimension_numbers = #tpu.dot_dimension_numbers<[2], [2], [1], [1], [0, 0, 0, 1, 1, 1], [0], [0]>} : vector<2x8x8xbf16>, vector<2x8x8xbf16>, vector<2x8x8xf32> -> vector<2x8x8xf32>
    "tpu.trace_stop"() : () -> ()
    %cst_26 = arith.constant dense<0xFF800000> : vector<2x8xf32>
    %74 = vector.multi_reduction <maximumf>, %73, %cst_26 [2] : vector<2x8x8xf32> to vector<2x8xf32>
    %75 = vector.shape_cast %74 : vector<2x8xf32> to vector<2x8x1xf32>
    %76 = vector.broadcast %75 : vector<2x8x1xf32> to vector<2x8x8xf32>
    %77 = arith.subf %73, %76 : vector<2x8x8xf32>
    %78 = math.exp %77 : vector<2x8x8xf32>
    %cst_27 = arith.constant dense<0.000000e+00> : vector<2x8xf32>
    %79 = vector.multi_reduction <add>, %78, %cst_27 [2] : vector<2x8x8xf32> to vector<2x8xf32>
    %80 = vector.shape_cast %79 : vector<2x8xf32> to vector<2x8x1xf32>
    %81 = tpu.reciprocal %80 {approx = true} : vector<2x8x1xf32> -> vector<2x8x1xf32>
    %82 = vector.broadcast %81 : vector<2x8x1xf32> to vector<2x8x8xf32>
    %83 = arith.mulf %78, %82 : vector<2x8x8xf32>
    %84 = arith.truncf %83 : vector<2x8x8xf32> to vector<2x8x8xbf16>
    %85 = vector.extract_strided_slice %32 {offsets = [0, 0, 80], sizes = [2, 8, 8], strides = [1, 1, 1]} : vector<2x8x96xbf16> to vector<2x8x8xbf16>
    "tpu.trace_start"() <{level = 10 : i32, message = "bqk,bkc->bqc"}> : () -> ()
    %cst_28 = arith.constant dense<0.000000e+00> : vector<2x8x8xf32>
    %86 = tpu.matmul %84, %85, %cst_28 {dimension_numbers = #tpu.dot_dimension_numbers<[2], [1], [1], [2], [0, 0, 0, 1, 1, 2], [0], [0]>} : vector<2x8x8xbf16>, vector<2x8x8xbf16>, vector<2x8x8xf32> -> vector<2x8x8xf32>
    "tpu.trace_stop"() : () -> ()
    %87 = vector.shape_cast %86 : vector<2x8x8xf32> to vector<16x8xf32>
    %88 = arith.truncf %87 : vector<16x8xf32> to vector<16x8xbf16>
    %c0_29 = arith.constant 0 : index
    %c16 = arith.constant 16 : index
    %89 = vector.load %arg23[%c0_29, %c16] : memref<16x32xbf16, #tpu.memory_space<vmem>>, vector<16x8xbf16>
    tpu.vector_store %arg23[%c0_29, %c16], %88 {strides = array<i32>} : memref<16x32xbf16, #tpu.memory_space<vmem>>, vector<16x8xbf16>,
    %90 = vector.extract_strided_slice %32 {offsets = [0, 0, 24], sizes = [2, 8, 8], strides = [1, 1, 1]} : vector<2x8x96xbf16> to vector<2x8x8xbf16>
    %91 = vector.extract_strided_slice %32 {offsets = [0, 0, 56], sizes = [2, 8, 8], strides = [1, 1, 1]} : vector<2x8x96xbf16> to vector<2x8x8xbf16>
    "tpu.trace_start"() <{level = 10 : i32, message = "bqc,bkc->bqk"}> : () -> ()
    %cst_30 = arith.constant dense<0.000000e+00> : vector<2x8x8xf32>
    %92 = tpu.matmul %90, %91, %cst_30 {dimension_numbers = #tpu.dot_dimension_numbers<[2], [2], [1], [1], [0, 0, 0, 1, 1, 1], [0], [0]>} : vector<2x8x8xbf16>, vector<2x8x8xbf16>, vector<2x8x8xf32> -> vector<2x8x8xf32>
    "tpu.trace_stop"() : () -> ()
    %cst_31 = arith.constant dense<0xFF800000> : vector<2x8xf32>
    %93 = vector.multi_reduction <maximumf>, %92, %cst_31 [2] : vector<2x8x8xf32> to vector<2x8xf32>
    %94 = vector.shape_cast %93 : vector<2x8xf32> to vector<2x8x1xf32>
    %95 = vector.broadcast %94 : vector<2x8x1xf32> to vector<2x8x8xf32>
    %96 = arith.subf %92, %95 : vector<2x8x8xf32>
    %97 = math.exp %96 : vector<2x8x8xf32>
    %cst_32 = arith.constant dense<0.000000e+00> : vector<2x8xf32>
    %98 = vector.multi_reduction <add>, %97, %cst_32 [2] : vector<2x8x8xf32> to vector<2x8xf32>
    %99 = vector.shape_cast %98 : vector<2x8xf32> to vector<2x8x1xf32>
    %100 = tpu.reciprocal %99 {approx = true} : vector<2x8x1xf32> -> vector<2x8x1xf32>
    %101 = vector.broadcast %100 : vector<2x8x1xf32> to vector<2x8x8xf32>
    %102 = arith.mulf %97, %101 : vector<2x8x8xf32>
    %103 = arith.truncf %102 : vector<2x8x8xf32> to vector<2x8x8xbf16>
    %104 = vector.extract_strided_slice %32 {offsets = [0, 0, 88], sizes = [2, 8, 8], strides = [1, 1, 1]} : vector<2x8x96xbf16> to vector<2x8x8xbf16>
    "tpu.trace_start"() <{level = 10 : i32, message = "bqk,bkc->bqc"}> : () -> ()
    %cst_33 = arith.constant dense<0.000000e+00> : vector<2x8x8xf32>
    %105 = tpu.matmul %103, %104, %cst_33 {dimension_numbers = #tpu.dot_dimension_numbers<[2], [1], [1], [2], [0, 0, 0, 1, 1, 2], [0], [0]>} : vector<2x8x8xbf16>, vector<2x8x8xbf16>, vector<2x8x8xf32> -> vector<2x8x8xf32>
    "tpu.trace_stop"() : () -> ()
    %106 = vector.shape_cast %105 : vector<2x8x8xf32> to vector<16x8xf32>
    %107 = arith.truncf %106 : vector<16x8xf32> to vector<16x8xbf16>
    %c0_34 = arith.constant 0 : index
    %c24 = arith.constant 24 : index
    %108 = vector.load %arg23[%c0_34, %c24] : memref<16x32xbf16, #tpu.memory_space<vmem>>, vector<16x8xbf16>
    tpu.vector_store %arg23[%c0_34, %c24], %107 {strides = array<i32>} : memref<16x32xbf16, #tpu.memory_space<vmem>>, vector<16x8xbf16>,
    %c0_35 = arith.constant 0 : index
    %c0_36 = arith.constant 0 : index
    %109 = vector.load %arg23[%c0_35, %c0_36] : memref<16x32xbf16, #tpu.memory_space<vmem>>, vector<16x32xbf16>
    %c0_37 = arith.constant 0 : index
    %c0_38 = arith.constant 0 : index
    %110 = vector.load %arg6[%c0_37, %c0_38] : memref<32x32xbf16, #tpu.memory_space<vmem>>, vector<32x32xbf16>
    %cst_39 = arith.constant dense<0.000000e+00> : vector<16x32xf32>
    %111 = tpu.matmul %109, %110, %cst_39 {dimension_numbers = #tpu.dot_dimension_numbers<[1], [0], [0], [1], [0, 0, 1, 1], [], []>} : vector<16x32xbf16>, vector<32x32xbf16>, vector<16x32xf32> -> vector<16x32xf32>
    %c0_40 = arith.constant 0 : index
    %c0_41 = arith.constant 0 : index
    %112 = vector.load %arg7[%c0_40, %c0_41] : memref<1x32xf32, #tpu.memory_space<vmem>>, vector<1x32xf32>
    %113 = vector.broadcast %112 : vector<1x32xf32> to vector<16x32xf32>
    %114 = arith.addf %111, %113 : vector<16x32xf32>
    %115 = arith.truncf %114 : vector<16x32xf32> to vector<16x32xbf16>
    %c0_42 = arith.constant 0 : index
    %c0_43 = arith.constant 0 : index
    %116 = vector.load %arg8[%c0_42, %c0_43] : memref<32x8xbf16, #tpu.memory_space<vmem>>, vector<32x8xbf16>
    %cst_44 = arith.constant dense<0.000000e+00> : vector<16x8xf32>
    %117 = tpu.matmul %115, %116, %cst_44 {dimension_numbers = #tpu.dot_dimension_numbers<[1], [0], [0], [1], [0, 0, 1, 1], [], []>} : vector<16x32xbf16>, vector<32x8xbf16>, vector<16x8xf32> -> vector<16x8xf32>
    %c0_45 = arith.constant 0 : index
    %c0_46 = arith.constant 0 : index
    %118 = vector.load %arg9[%c0_45, %c0_46] : memref<1x8xf32, #tpu.memory_space<vmem>>, vector<1x8xf32>
    %119 = vector.broadcast %118 : vector<1x8xf32> to vector<16x8xf32>
    %120 = arith.addf %117, %119 : vector<16x8xf32>
    %cst_47 = arith.constant 5.000000e-01 : f32
    %121 = vector.broadcast %cst_47 : f32 to vector<16x8xf32>
    %122 = arith.mulf %121, %120 : vector<16x8xf32>
    %cst_48 = arith.constant 0.707106769 : f32
    %123 = vector.broadcast %cst_48 : f32 to vector<16x8xf32>
    %124 = arith.mulf %120, %123 : vector<16x8xf32>
    %125 = math.erf %124 : vector<16x8xf32>
    %cst_49 = arith.constant 1.000000e+00 : f32
    %126 = vector.broadcast %cst_49 : f32 to vector<16x8xf32>
    %127 = arith.addf %126, %125 : vector<16x8xf32>
    %128 = arith.mulf %122, %127 : vector<16x8xf32>
    %129 = arith.truncf %128 : vector<16x8xf32> to vector<16x8xbf16>
    %c0_50 = arith.constant 0 : index
    %c0_51 = arith.constant 0 : index
    %130 = vector.load %arg10[%c0_50, %c0_51] : memref<8x32xbf16, #tpu.memory_space<vmem>>, vector<8x32xbf16>
    %cst_52 = arith.constant dense<0.000000e+00> : vector<16x32xf32>
    %131 = tpu.matmul %129, %130, %cst_52 {dimension_numbers = #tpu.dot_dimension_numbers<[1], [0], [0], [1], [0, 0, 1, 1], [], []>} : vector<16x8xbf16>, vector<8x32xbf16>, vector<16x32xf32> -> vector<16x32xf32>
    %c0_53 = arith.constant 0 : index
    %c0_54 = arith.constant 0 : index
    %132 = vector.load %arg11[%c0_53, %c0_54] : memref<1x32xf32, #tpu.memory_space<vmem>>, vector<1x32xf32>
    %133 = vector.broadcast %132 : vector<1x32xf32> to vector<16x32xf32>
    %134 = arith.addf %131, %133 : vector<16x32xf32>
    %135 = arith.addf %0, %114 : vector<16x32xf32>
    %136 = arith.addf %135, %134 : vector<16x32xf32>
    %c0_55 = arith.constant 0 : index
    %c0_56 = arith.constant 0 : index
    %137 = vector.load %arg12[%c0_55, %c0_56] : memref<1x32xf32, #tpu.memory_space<vmem>>, vector<1x32xf32>
    %c0_57 = arith.constant 0 : index
    %c0_58 = arith.constant 0 : index
    %138 = vector.load %arg13[%c0_57, %c0_58] : memref<1x32xf32, #tpu.memory_space<vmem>>, vector<1x32xf32>
    %cst_59 = arith.constant dense<0.000000e+00> : vector<16xf32>
    %139 = vector.multi_reduction <add>, %136, %cst_59 [1] : vector<16x32xf32> to vector<16xf32>
    %140 = vector.shape_cast %139 : vector<16xf32> to vector<16x1xf32>
    %cst_60 = arith.constant 3.200000e+01 : f32
    %141 = vector.broadcast %cst_60 : f32 to vector<16x1xf32>
    %142 = arith.divf %140, %141 : vector<16x1xf32>
    %143 = vector.broadcast %142 : vector<16x1xf32> to vector<16x32xf32>
    %144 = arith.subf %136, %143 : vector<16x32xf32>
    %145 = arith.mulf %144, %144 : vector<16x32xf32>
    %cst_61 = arith.constant dense<0.000000e+00> : vector<16xf32>
    %146 = vector.multi_reduction <add>, %145, %cst_61 [1] : vector<16x32xf32> to vector<16xf32>
    %147 = vector.shape_cast %146 : vector<16xf32> to vector<16x1xf32>
    %cst_62 = arith.constant 3.200000e+01 : f32
    %148 = vector.broadcast %cst_62 : f32 to vector<16x1xf32>
    %149 = arith.divf %147, %148 : vector<16x1xf32>
    %150 = vector.broadcast %142 : vector<16x1xf32> to vector<16x32xf32>
    %151 = arith.subf %136, %150 : vector<16x32xf32>
    %cst_63 = arith.constant 9.99999974E-6 : f32
    %152 = vector.broadcast %cst_63 : f32 to vector<16x1xf32>
    %153 = arith.addf %149, %152 : vector<16x1xf32>
    %154 = math.rsqrt %153 : vector<16x1xf32>
    %155 = vector.broadcast %154 : vector<16x1xf32> to vector<16x32xf32>
    %156 = arith.mulf %151, %155 : vector<16x32xf32>
    %157 = vector.broadcast %137 : vector<1x32xf32> to vector<16x32xf32>
    %158 = arith.mulf %156, %157 : vector<16x32xf32>
    %159 = vector.broadcast %138 : vector<1x32xf32> to vector<16x32xf32>
    %160 = arith.addf %158, %159 : vector<16x32xf32>
    %161 = arith.truncf %160 : vector<16x32xf32> to vector<16x32xbf16>
    %cst_64 = arith.constant 0.000000e+00 : f32
    %162 = vector.broadcast %cst_64 : f32 to vector<16x32xf32>
    %c0_65 = arith.constant 0 : index
    %c0_66 = arith.constant 0 : index
    %163 = vector.load %arg14[%c0_65, %c0_66] : memref<32x128xbf16, #tpu.memory_space<vmem>>, vector<32x128xbf16>
    %cst_67 = arith.constant dense<0.000000e+00> : vector<16x128xf32>
    %164 = tpu.matmul %161, %163, %cst_67 {dimension_numbers = #tpu.dot_dimension_numbers<[1], [0], [0], [1], [0, 0, 1, 1], [], []>} : vector<16x32xbf16>, vector<32x128xbf16>, vector<16x128xf32> -> vector<16x128xf32>
    %c0_68 = arith.constant 0 : index
    %c0_69 = arith.constant 0 : index
    %165 = vector.load %arg15[%c0_68, %c0_69] : memref<1x128xf32, #tpu.memory_space<vmem>>, vector<1x128xf32>
    %166 = vector.broadcast %165 : vector<1x128xf32> to vector<16x128xf32>
    %167 = arith.addf %164, %166 : vector<16x128xf32>
    %cst_70 = arith.constant 1.702000e+00 : f32
    %168 = vector.broadcast %cst_70 : f32 to vector<16x128xf32>
    %169 = arith.mulf %168, %167 : vector<16x128xf32>
    %170 = arith.negf %169 : vector<16x128xf32>
    %171 = math.exp %170 : vector<16x128xf32>
    %cst_71 = arith.constant 1.000000e+00 : f32
    %172 = vector.broadcast %cst_71 : f32 to vector<16x128xf32>
    %173 = arith.addf %172, %171 : vector<16x128xf32>
    %174 = arith.divf %172, %173 : vector<16x128xf32>
    %175 = arith.mulf %167, %174 : vector<16x128xf32>
    %176 = arith.truncf %175 : vector<16x128xf32> to vector<16x128xbf16>
    %c0_72 = arith.constant 0 : index
    %c0_73 = arith.constant 0 : index
    %177 = vector.load %arg16[%c0_72, %c0_73] : memref<128x32xbf16, #tpu.memory_space<vmem>>, vector<128x32xbf16>
    %cst_74 = arith.constant dense<0.000000e+00> : vector<16x32xf32>
    %178 = tpu.matmul %176, %177, %cst_74 {dimension_numbers = #tpu.dot_dimension_numbers<[1], [0], [0], [1], [0, 0, 1, 1], [], []>} : vector<16x128xbf16>, vector<128x32xbf16>, vector<16x32xf32> -> vector<16x32xf32>
    %179 = arith.addf %162, %178 : vector<16x32xf32>
    %c0_75 = arith.constant 0 : index
    %c0_76 = arith.constant 0 : index
    %180 = vector.load %arg17[%c0_75, %c0_76] : memref<1x32xf32, #tpu.memory_space<vmem>>, vector<1x32xf32>
    %181 = vector.broadcast %180 : vector<1x32xf32> to vector<16x32xf32>
    %182 = arith.addf %179, %181 : vector<16x32xf32>
    %c0_77 = arith.constant 0 : index
    %c0_78 = arith.constant 0 : index
    %183 = vector.load %arg18[%c0_77, %c0_78] : memref<32x8xbf16, #tpu.memory_space<vmem>>, vector<32x8xbf16>
    %cst_79 = arith.constant dense<0.000000e+00> : vector<16x8xf32>
    %184 = tpu.matmul %161, %183, %cst_79 {dimension_numbers = #tpu.dot_dimension_numbers<[1], [0], [0], [1], [0, 0, 1, 1], [], []>} : vector<16x32xbf16>, vector<32x8xbf16>, vector<16x8xf32> -> vector<16x8xf32>
    %c0_80 = arith.constant 0 : index
    %c0_81 = arith.constant 0 : index
    %185 = vector.load %arg19[%c0_80, %c0_81] : memref<1x8xf32, #tpu.memory_space<vmem>>, vector<1x8xf32>
    %186 = vector.broadcast %185 : vector<1x8xf32> to vector<16x8xf32>
    %187 = arith.addf %184, %186 : vector<16x8xf32>
    %cst_82 = arith.constant 5.000000e-01 : f32
    %188 = vector.broadcast %cst_82 : f32 to vector<16x8xf32>
    %189 = arith.mulf %188, %187 : vector<16x8xf32>
    %cst_83 = arith.constant 0.707106769 : f32
    %190 = vector.broadcast %cst_83 : f32 to vector<16x8xf32>
    %191 = arith.mulf %187, %190 : vector<16x8xf32>
    %192 = math.erf %191 : vector<16x8xf32>
    %cst_84 = arith.constant 1.000000e+00 : f32
    %193 = vector.broadcast %cst_84 : f32 to vector<16x8xf32>
    %194 = arith.addf %193, %192 : vector<16x8xf32>
    %195 = arith.mulf %189, %194 : vector<16x8xf32>
    %196 = arith.truncf %195 : vector<16x8xf32> to vector<16x8xbf16>
    %c0_85 = arith.constant 0 : index
    %c0_86 = arith.constant 0 : index
    %197 = vector.load %arg20[%c0_85, %c0_86] : memref<8x32xbf16, #tpu.memory_space<vmem>>, vector<8x32xbf16>
    %cst_87 = arith.constant dense<0.000000e+00> : vector<16x32xf32>
    %198 = tpu.matmul %196, %197, %cst_87 {dimension_numbers = #tpu.dot_dimension_numbers<[1], [0], [0], [1], [0, 0, 1, 1], [], []>} : vector<16x8xbf16>, vector<8x32xbf16>, vector<16x32xf32> -> vector<16x32xf32>
    %c0_88 = arith.constant 0 : index
    %c0_89 = arith.constant 0 : index
    %199 = vector.load %arg21[%c0_88, %c0_89] : memref<1x32xf32, #tpu.memory_space<vmem>>, vector<1x32xf32>
    %200 = vector.broadcast %199 : vector<1x32xf32> to vector<16x32xf32>
    %201 = arith.addf %198, %200 : vector<16x32xf32>
    %202 = arith.addf %136, %182 : vector<16x32xf32>
    %cst_90 = arith.constant 5.000000e-01 : f32
    %203 = vector.broadcast %cst_90 : f32 to vector<16x32xf32>
    %204 = arith.mulf %203, %201 : vector<16x32xf32>
    %205 = arith.addf %202, %204 : vector<16x32xf32>
    %c0_91 = arith.constant 0 : index
    %c0_92 = arith.constant 0 : index
    %206 = vector.load %arg22[%c0_91, %c0_92] : memref<16x32xf32, #tpu.memory_space<vmem>>, vector<16x32xf32>
    tpu.vector_store %arg22[%c0_91, %c0_92], %205 {strides = array<i32>} : memref<16x32xf32, #tpu.memory_space<vmem>>, vector<16x32xf32>,
    return
  }
  func.func @transform_0(%arg0: i32) -> (i32, i32) {
    %c0_i32 = arith.constant 0 : i32
    %c0_i32_0 = arith.constant 0 : i32
    return %arg0, %c0_i32 : i32, i32
  }
  func.func @transform_1(%arg0: i32) -> (i32, i32) {
    %c0_i32 = arith.constant 0 : i32
    %c0_i32_0 = arith.constant 0 : i32
    %c0_i32_1 = arith.constant 0 : i32
    return %c0_i32, %c0_i32_0 : i32, i32
  }
  func.func @transform_2(%arg0: i32) -> (i32, i32) {
    %c0_i32 = arith.constant 0 : i32
    %c0_i32_0 = arith.constant 0 : i32
    %c0_i32_1 = arith.constant 0 : i32
    return %c0_i32, %c0_i32_0 : i32, i32
  }
  func.func @transform_3(%arg0: i32) -> (i32, i32) {
    %c0_i32 = arith.constant 0 : i32
    %c0_i32_0 = arith.constant 0 : i32
    %c0_i32_1 = arith.constant 0 : i32
    return %c0_i32, %c0_i32_0 : i32, i32
  }
  func.func @transform_4(%arg0: i32) -> (i32, i32) {
    %c0_i32 = arith.constant 0 : i32
    %c0_i32_0 = arith.constant 0 : i32
    %c0_i32_1 = arith.constant 0 : i32
    return %c0_i32, %c0_i32_0 : i32, i32
  }
  func.func @transform_5(%arg0: i32) -> (i32, i32) {
    %c0_i32 = arith.constant 0 : i32
    %c0_i32_0 = arith.constant 0 : i32
    %c0_i32_1 = arith.constant 0 : i32
    return %c0_i32, %c0_i32_0 : i32, i32
  }
  func.func @transform_6(%arg0: i32) -> (i32, i32) {
    %c0_i32 = arith.constant 0 : i32
    %c0_i32_0 = arith.constant 0 : i32
    %c0_i32_1 = arith.constant 0 : i32
    return %c0_i32, %c0_i32_0 : i32, i32
  }
  func.func @transform_7(%arg0: i32) -> (i32, i32) {
    %c0_i32 = arith.constant 0 : i32
    %c0_i32_0 = arith.constant 0 : i32
    %c0_i32_1 = arith.constant 0 : i32
    return %c0_i32, %c0_i32_0 : i32, i32
  }
  func.func @transform_8(%arg0: i32) -> (i32, i32) {
    %c0_i32 = arith.constant 0 : i32
    %c0_i32_0 = arith.constant 0 : i32
    %c0_i32_1 = arith.constant 0 : i32
    return %c0_i32, %c0_i32_0 : i32, i32
  }
  func.func @transform_9(%arg0: i32) -> (i32, i32) {
    %c0_i32 = arith.constant 0 : i32
    %c0_i32_0 = arith.constant 0 : i32
    %c0_i32_1 = arith.constant 0 : i32
    return %c0_i32, %c0_i32_0 : i32, i32
  }
  func.func @transform_10(%arg0: i32) -> (i32, i32) {
    %c0_i32 = arith.constant 0 : i32
    %c0_i32_0 = arith.constant 0 : i32
    %c0_i32_1 = arith.constant 0 : i32
    return %c0_i32, %c0_i32_0 : i32, i32
  }
  func.func @transform_11(%arg0: i32) -> (i32, i32) {
    %c0_i32 = arith.constant 0 : i32
    %c0_i32_0 = arith.constant 0 : i32
    %c0_i32_1 = arith.constant 0 : i32
    return %c0_i32, %c0_i32_0 : i32, i32
  }
  func.func @transform_12(%arg0: i32) -> (i32, i32) {
    %c0_i32 = arith.constant 0 : i32
    %c0_i32_0 = arith.constant 0 : i32
    %c0_i32_1 = arith.constant 0 : i32
    return %c0_i32, %c0_i32_0 : i32, i32
  }
  func.func @transform_13(%arg0: i32) -> (i32, i32) {
    %c0_i32 = arith.constant 0 : i32
    %c0_i32_0 = arith.constant 0 : i32
    %c0_i32_1 = arith.constant 0 : i32
    return %c0_i32, %c0_i32_0 : i32, i32
  }
  func.func @transform_14(%arg0: i32) -> (i32, i32) {
    %c0_i32 = arith.constant 0 : i32
    %c0_i32_0 = arith.constant 0 : i32
    %c0_i32_1 = arith.constant 0 : i32
    return %c0_i32, %c0_i32_0 : i32, i32
  }
  func.func @transform_15(%arg0: i32) -> (i32, i32) {
    %c0_i32 = arith.constant 0 : i32
    %c0_i32_0 = arith.constant 0 : i32
    %c0_i32_1 = arith.constant 0 : i32
    return %c0_i32, %c0_i32_0 : i32, i32
  }
  func.func @transform_16(%arg0: i32) -> (i32, i32) {
    %c0_i32 = arith.constant 0 : i32
    %c0_i32_0 = arith.constant 0 : i32
    %c0_i32_1 = arith.constant 0 : i32
    return %c0_i32, %c0_i32_0 : i32, i32
  }
  func.func @transform_17(%arg0: i32) -> (i32, i32) {
    %c0_i32 = arith.constant 0 : i32
    %c0_i32_0 = arith.constant 0 : i32
    %c0_i32_1 = arith.constant 0 : i32
    return %c0_i32, %c0_i32_0 : i32, i32
  }
  func.func @transform_18(%arg0: i32) -> (i32, i32) {
    %c0_i32 = arith.constant 0 : i32
    %c0_i32_0 = arith.constant 0 : i32
    %c0_i32_1 = arith.constant 0 : i32
    return %c0_i32, %c0_i32_0 : i32, i32
  }
  func.func @transform_19(%arg0: i32) -> (i32, i32) {
    %c0_i32 = arith.constant 0 : i32
    %c0_i32_0 = arith.constant 0 : i32
    %c0_i32_1 = arith.constant 0 : i32
    return %c0_i32, %c0_i32_0 : i32, i32
  }
  func.func @transform_20(%arg0: i32) -> (i32, i32) {
    %c0_i32 = arith.constant 0 : i32
    %c0_i32_0 = arith.constant 0 : i32
    %c0_i32_1 = arith.constant 0 : i32
    return %c0_i32, %c0_i32_0 : i32, i32
  }
  func.func @transform_21(%arg0: i32) -> (i32, i32) {
    %c0_i32 = arith.constant 0 : i32
    %c0_i32_0 = arith.constant 0 : i32
    return %arg0, %c0_i32 : i32, i32
  }
}

module attributes {stable_mosaic.version = 11 : i64} {
  func.func @_residual_attention_block_kernel(%arg0: i32, %arg1: memref<16x32xf32, #tpu.memory_space<vmem>>, %arg2: memref<1x32xf32, #tpu.memory_space<vmem>>, %arg3: memref<1x32xf32, #tpu.memory_space<vmem>>, %arg4: memref<32x96xbf16, #tpu.memory_space<vmem>>, %arg5: memref<1x96xf32, #tpu.memory_space<vmem>>, %arg6: memref<32x32xbf16, #tpu.memory_space<vmem>>, %arg7: memref<1x32xf32, #tpu.memory_space<vmem>>, %arg8: memref<32x8xbf16, #tpu.memory_space<vmem>>, %arg9: memref<1x8xf32, #tpu.memory_space<vmem>>, %arg10: memref<8x32xbf16, #tpu.memory_space<vmem>>, %arg11: memref<1x32xf32, #tpu.memory_space<vmem>>, %arg12: memref<1x32xf32, #tpu.memory_space<vmem>>, %arg13: memref<1x32xf32, #tpu.memory_space<vmem>>, %arg14: memref<32x128xbf16, #tpu.memory_space<vmem>>, %arg15: memref<1x128xf32, #tpu.memory_space<vmem>>, %arg16: memref<128x32xbf16, #tpu.memory_space<vmem>>, %arg17: memref<1x32xf32, #tpu.memory_space<vmem>>, %arg18: memref<32x8xbf16, #tpu.memory_space<vmem>>, %arg19: memref<1x8xf32, #tpu.memory_space<vmem>>, %arg20: memref<8x32xbf16, #tpu.memory_space<vmem>>, %arg21: memref<1x32xf32, #tpu.memory_space<vmem>>, %arg22: memref<16x32xf32, #tpu.memory_space<vmem>>, %arg23: memref<16x32xbf16, #tpu.memory_space<vmem>>) attributes {dimension_semantics = [#tpu.dimension_semantics<parallel>], iteration_bounds = array<i64: 2>, scalar_prefetch = 0 : i64, scratch_operands = 1 : i64, tpu.core_type = #tpu.core_type<tc>, window_params = [{transform_indices = @transform_0, window_bounds = array<i64: 16, 32>}, {pipeline_mode = #tpu.pipeline_mode<synchronous>, transform_indices = @transform_1, window_bounds = array<i64: 1, 32>}, {pipeline_mode = #tpu.pipeline_mode<synchronous>, transform_indices = @transform_2, window_bounds = array<i64: 1, 32>}, {pipeline_mode = #tpu.pipeline_mode<synchronous>, transform_indices = @transform_3, window_bounds = array<i64: 32, 96>}, {pipeline_mode = #tpu.pipeline_mode<synchronous>, transform_indices = @transform_4, window_bounds = array<i64: 1, 96>}, {pipeline_mode = #tpu.pipeline_mode<synchronous>, transform_indices = @transform_5, window_bounds = array<i64: 32, 32>}, {pipeline_mode = #tpu.pipeline_mode<synchronous>, transform_indices = @transform_6, window_bounds = array<i64: 1, 32>}, {pipeline_mode = #tpu.pipeline_mode<synchronous>, transform_indices = @transform_7, window_bounds = array<i64: 32, 8>}, {pipeline_mode = #tpu.pipeline_mode<synchronous>, transform_indices = @transform_8, window_bounds = array<i64: 1, 8>}, {pipeline_mode = #tpu.pipeline_mode<synchronous>, transform_indices = @transform_9, window_bounds = array<i64: 8, 32>}, {pipeline_mode = #tpu.pipeline_mode<synchronous>, transform_indices = @transform_10, window_bounds = array<i64: 1, 32>}, {pipeline_mode = #tpu.pipeline_mode<synchronous>, transform_indices = @transform_11, window_bounds = array<i64: 1, 32>}, {pipeline_mode = #tpu.pipeline_mode<synchronous>, transform_indices = @transform_12, window_bounds = array<i64: 1, 32>}, {pipeline_mode = #tpu.pipeline_mode<synchronous>, transform_indices = @transform_13, window_bounds = array<i64: 32, 128>}, {pipeline_mode = #tpu.pipeline_mode<synchronous>, transform_indices = @transform_14, window_bounds = array<i64: 1, 128>}, {pipeline_mode = #tpu.pipeline_mode<synchronous>, transform_indices = @transform_15, window_bounds = array<i64: 128, 32>}, {pipeline_mode = #tpu.pipeline_mode<synchronous>, transform_indices = @transform_16, window_bounds = array<i64: 1, 32>}, {pipeline_mode = #tpu.pipeline_mode<synchronous>, transform_indices = @transform_17, window_bounds = array<i64: 32, 8>}, {pipeline_mode = #tpu.pipeline_mode<synchronous>, transform_indices = @transform_18, window_bounds = array<i64: 1, 8>}, {pipeline_mode = #tpu.pipeline_mode<synchronous>, transform_indices = @transform_19, window_bounds = array<i64: 8, 32>}, {pipeline_mode = #tpu.pipeline_mode<synchronous>, transform_indices = @transform_20, window_bounds = array<i64: 1, 32>}, {transform_indices = @transform_21, window_bounds = array<i64: 16, 32>}]} {
    %c0 = arith.constant 0 : index
    %c0_0 = arith.constant 0 : index
    %0 = vector.load %arg1[%c0, %c0_0] : memref<16x32xf32, #tpu.memory_space<vmem>>, vector<16x32xf32>
    %c0_1 = arith.constant 0 : index
    %c0_2 = arith.constant 0 : index
    %1 = vector.load %arg2[%c0_1, %c0_2] : memref<1x32xf32, #tpu.memory_space<vmem>>, vector<1x32xf32>
    %c0_3 = arith.constant 0 : index
    %c0_4 = arith.constant 0 : index
    %2 = vector.load %arg3[%c0_3, %c0_4] : memref<1x32xf32, #tpu.memory_space<vmem>>, vector<1x32xf32>
    %cst = arith.constant dense<0.000000e+00> : vector<16xf32>
    %3 = vector.multi_reduction <add>, %0, %cst [1] : vector<16x32xf32> to vector<16xf32>
    %4 = vector.shape_cast %3 : vector<16xf32> to vector<16x1xf32>
    %cst_5 = arith.constant 3.200000e+01 : f32
    %5 = vector.broadcast %cst_5 : f32 to vector<16x1xf32>
    %6 = arith.divf %4, %5 : vector<16x1xf32>
    %7 = vector.broadcast %6 : vector<16x1xf32> to vector<16x32xf32>
    %8 = arith.subf %0, %7 : vector<16x32xf32>
    %9 = arith.mulf %8, %8 : vector<16x32xf32>
    %cst_6 = arith.constant dense<0.000000e+00> : vector<16xf32>
    %10 = vector.multi_reduction <add>, %9, %cst_6 [1] : vector<16x32xf32> to vector<16xf32>
    %11 = vector.shape_cast %10 : vector<16xf32> to vector<16x1xf32>
    %cst_7 = arith.constant 3.200000e+01 : f32
    %12 = vector.broadcast %cst_7 : f32 to vector<16x1xf32>
    %13 = arith.divf %11, %12 : vector<16x1xf32>
    %14 = vector.broadcast %6 : vector<16x1xf32> to vector<16x32xf32>
    %15 = arith.subf %0, %14 : vector<16x32xf32>
    %cst_8 = arith.constant 9.99999974E-6 : f32
    %16 = vector.broadcast %cst_8 : f32 to vector<16x1xf32>
    %17 = arith.addf %13, %16 : vector<16x1xf32>
    %18 = math.rsqrt %17 : vector<16x1xf32>
    %19 = vector.broadcast %18 : vector<16x1xf32> to vector<16x32xf32>
    %20 = arith.mulf %15, %19 : vector<16x32xf32>
    %21 = vector.broadcast %1 : vector<1x32xf32> to vector<16x32xf32>
    %22 = arith.mulf %20, %21 : vector<16x32xf32>
    %23 = vector.broadcast %2 : vector<1x32xf32> to vector<16x32xf32>
    %24 = arith.addf %22, %23 : vector<16x32xf32>
    %25 = arith.truncf %24 : vector<16x32xf32> to vector<16x32xbf16>
    %c0_9 = arith.constant 0 : index
    %c0_10 = arith.constant 0 : index
    %26 = vector.load %arg4[%c0_9, %c0_10] : memref<32x96xbf16, #tpu.memory_space<vmem>>, vector<32x96xbf16>
    %cst_11 = arith.constant dense<0.000000e+00> : vector<16x96xf32>
    %27 = tpu.matmul %25, %26, %cst_11 {dimension_numbers = #tpu.dot_dimension_numbers<[1], [0], [0], [1], [0, 0, 1, 1], [], []>} : vector<16x32xbf16>, vector<32x96xbf16>, vector<16x96xf32> -> vector<16x96xf32>
    %c0_12 = arith.constant 0 : index
    %c0_13 = arith.constant 0 : index
    %28 = vector.load %arg5[%c0_12, %c0_13] : memref<1x96xf32, #tpu.memory_space<vmem>>, vector<1x96xf32>
    %29 = vector.broadcast %28 : vector<1x96xf32> to vector<16x96xf32>
    %30 = arith.addf %27, %29 : vector<16x96xf32>
    %31 = arith.truncf %30 : vector<16x96xf32> to vector<16x96xbf16>
    %32 = vector.shape_cast %31 : vector<16x96xbf16> to vector<2x8x96xbf16>
    %33 = vector.extract_strided_slice %32 {offsets = [0, 0, 0], sizes = [2, 8, 8], strides = [1, 1, 1]} : vector<2x8x96xbf16> to vector<2x8x8xbf16>
    %34 = vector.extract_strided_slice %32 {offsets = [0, 0, 32], sizes = [2, 8, 8], strides = [1, 1, 1]} : vector<2x8x96xbf16> to vector<2x8x8xbf16>
    "tpu.trace_start"() <{level = 10 : i32, message = "bqc,bkc->bqk"}> : () -> ()
    %cst_14 = arith.constant dense<0.000000e+00> : vector<2x8x8xf32>
    %35 = tpu.matmul %33, %34, %cst_14 {dimension_numbers = #tpu.dot_dimension_numbers<[2], [2], [1], [1], [0, 0, 0, 1, 1, 1], [0], [0]>} : vector<2x8x8xbf16>, vector<2x8x8xbf16>, vector<2x8x8xf32> -> vector<2x8x8xf32>
    "tpu.trace_stop"() : () -> ()
    %cst_15 = arith.constant dense<0xFF800000> : vector<2x8xf32>
    %36 = vector.multi_reduction <maximumf>, %35, %cst_15 [2] : vector<2x8x8xf32> to vector<2x8xf32>
    %37 = vector.shape_cast %36 : vector<2x8xf32> to vector<2x8x1xf32>
    %38 = vector.broadcast %37 : vector<2x8x1xf32> to vector<2x8x8xf32>
    %39 = arith.subf %35, %38 : vector<2x8x8xf32>
    %40 = math.exp %39 : vector<2x8x8xf32>
    %cst_16 = arith.constant dense<0.000000e+00> : vector<2x8xf32>
    %41 = vector.multi_reduction <add>, %40, %cst_16 [2] : vector<2x8x8xf32> to vector<2x8xf32>
    %42 = vector.shape_cast %41 : vector<2x8xf32> to vector<2x8x1xf32>
    %43 = tpu.reciprocal %42 {approx = true} : vector<2x8x1xf32> -> vector<2x8x1xf32>
    %44 = vector.broadcast %43 : vector<2x8x1xf32> to vector<2x8x8xf32>
    %45 = arith.mulf %40, %44 : vector<2x8x8xf32>
    %46 = arith.truncf %45 : vector<2x8x8xf32> to vector<2x8x8xbf16>
    %47 = vector.extract_strided_slice %32 {offsets = [0, 0, 64], sizes = [2, 8, 8], strides = [1, 1, 1]} : vector<2x8x96xbf16> to vector<2x8x8xbf16>
    "tpu.trace_start"() <{level = 10 : i32, message = "bqk,bkc->bqc"}> : () -> ()
    %cst_17 = arith.constant dense<0.000000e+00> : vector<2x8x8xf32>
    %48 = tpu.matmul %46, %47, %cst_17 {dimension_numbers = #tpu.dot_dimension_numbers<[2], [1], [1], [2], [0, 0, 0, 1, 1, 2], [0], [0]>} : vector<2x8x8xbf16>, vector<2x8x8xbf16>, vector<2x8x8xf32> -> vector<2x8x8xf32>
    "tpu.trace_stop"() : () -> ()
    %49 = vector.shape_cast %48 : vector<2x8x8xf32> to vector<16x8xf32>
    %50 = arith.truncf %49 : vector<16x8xf32> to vector<16x8xbf16>
    %c0_18 = arith.constant 0 : index
    %c0_19 = arith.constant 0 : index
    %51 = vector.load %arg23[%c0_18, %c0_19] : memref<16x32xbf16, #tpu.memory_space<vmem>>, vector<16x8xbf16>
    tpu.vector_store %arg23[%c0_18, %c0_19], %50 {strides = array<i32>} : memref<16x32xbf16, #tpu.memory_space<vmem>>, vector<16x8xbf16>,
    %52 = vector.extract_strided_slice %32 {offsets = [0, 0, 8], sizes = [2, 8, 8], strides = [1, 1, 1]} : vector<2x8x96xbf16> to vector<2x8x8xbf16>
    %53 = vector.extract_strided_slice %32 {offsets = [0, 0, 40], sizes = [2, 8, 8], strides = [1, 1, 1]} : vector<2x8x96xbf16> to vector<2x8x8xbf16>
    "tpu.trace_start"() <{level = 10 : i32, message = "bqc,bkc->bqk"}> : () -> ()
    %cst_20 = arith.constant dense<0.000000e+00> : vector<2x8x8xf32>
    %54 = tpu.matmul %52, %53, %cst_20 {dimension_numbers = #tpu.dot_dimension_numbers<[2], [2], [1], [1], [0, 0, 0, 1, 1, 1], [0], [0]>} : vector<2x8x8xbf16>, vector<2x8x8xbf16>, vector<2x8x8xf32> -> vector<2x8x8xf32>
    "tpu.trace_stop"() : () -> ()
    %cst_21 = arith.constant dense<0xFF800000> : vector<2x8xf32>
    %55 = vector.multi_reduction <maximumf>, %54, %cst_21 [2] : vector<2x8x8xf32> to vector<2x8xf32>
    %56 = vector.shape_cast %55 : vector<2x8xf32> to vector<2x8x1xf32>
    %57 = vector.broadcast %56 : vector<2x8x1xf32> to vector<2x8x8xf32>
    %58 = arith.subf %54, %57 : vector<2x8x8xf32>
    %59 = math.exp %58 : vector<2x8x8xf32>
    %cst_22 = arith.constant dense<0.000000e+00> : vector<2x8xf32>
    %60 = vector.multi_reduction <add>, %59, %cst_22 [2] : vector<2x8x8xf32> to vector<2x8xf32>
    %61 = vector.shape_cast %60 : vector<2x8xf32> to vector<2x8x1xf32>
    %62 = tpu.reciprocal %61 {approx = true} : vector<2x8x1xf32> -> vector<2x8x1xf32>
    %63 = vector.broadcast %62 : vector<2x8x1xf32> to vector<2x8x8xf32>
    %64 = arith.mulf %59, %63 : vector<2x8x8xf32>
    %65 = arith.truncf %64 : vector<2x8x8xf32> to vector<2x8x8xbf16>
    %66 = vector.extract_strided_slice %32 {offsets = [0, 0, 72], sizes = [2, 8, 8], strides = [1, 1, 1]} : vector<2x8x96xbf16> to vector<2x8x8xbf16>
    "tpu.trace_start"() <{level = 10 : i32, message = "bqk,bkc->bqc"}> : () -> ()
    %cst_23 = arith.constant dense<0.000000e+00> : vector<2x8x8xf32>
    %67 = tpu.matmul %65, %66, %cst_23 {dimension_numbers = #tpu.dot_dimension_numbers<[2], [1], [1], [2], [0, 0, 0, 1, 1, 2], [0], [0]>} : vector<2x8x8xbf16>, vector<2x8x8xbf16>, vector<2x8x8xf32> -> vector<2x8x8xf32>
    "tpu.trace_stop"() : () -> ()
    %68 = vector.shape_cast %67 : vector<2x8x8xf32> to vector<16x8xf32>
    %69 = arith.truncf %68 : vector<16x8xf32> to vector<16x8xbf16>
    %c0_24 = arith.constant 0 : index
    %c8 = arith.constant 8 : index
    %70 = vector.load %arg23[%c0_24, %c8] : memref<16x32xbf16, #tpu.memory_space<vmem>>, vector<16x8xbf16>
    tpu.vector_store %arg23[%c0_24, %c8], %69 {strides = array<i32>} : memref<16x32xbf16, #tpu.memory_space<vmem>>, vector<16x8xbf16>,
    %71 = vector.extract_strided_slice %32 {offsets = [0, 0, 16], sizes = [2, 8, 8], strides = [1, 1, 1]} : vector<2x8x96xbf16> to vector<2x8x8xbf16>
    %72 = vector.extract_strided_slice %32 {offsets = [0, 0, 48], sizes = [2, 8, 8], strides = [1, 1, 1]} : vector<2x8x96xbf16> to vector<2x8x8xbf16>
    "tpu.trace_start"() <{level = 10 : i32, message = "bqc,bkc->bqk"}> : () -> ()
    %cst_25 = arith.constant dense<0.000000e+00> : vector<2x8x8xf32>
    %73 = tpu.matmul %71, %72, %cst_25 {dimension_numbers = #tpu.dot_dimension_numbers<[2], [2], [1], [1], [0, 0, 0, 1, 1, 1], [0], [0]>} : vector<2x8x8xbf16>, vector<2x8x8xbf16>, vector<2x8x8xf32> -> vector<2x8x8xf32>
    "tpu.trace_stop"() : () -> ()
    %cst_26 = arith.constant dense<0xFF800000> : vector<2x8xf32>
    %74 = vector.multi_reduction <maximumf>, %73, %cst_26 [2] : vector<2x8x8xf32> to vector<2x8xf32>
    %75 = vector.shape_cast %74 : vector<2x8xf32> to vector<2x8x1xf32>
    %76 = vector.broadcast %75 : vector<2x8x1xf32> to vector<2x8x8xf32>
    %77 = arith.subf %73, %76 : vector<2x8x8xf32>
    %78 = math.exp %77 : vector<2x8x8xf32>
    %cst_27 = arith.constant dense<0.000000e+00> : vector<2x8xf32>
    %79 = vector.multi_reduction <add>, %78, %cst_27 [2] : vector<2x8x8xf32> to vector<2x8xf32>
    %80 = vector.shape_cast %79 : vector<2x8xf32> to vector<2x8x1xf32>
    %81 = tpu.reciprocal %80 {approx = true} : vector<2x8x1xf32> -> vector<2x8x1xf32>
    %82 = vector.broadcast %81 : vector<2x8x1xf32> to vector<2x8x8xf32>
    %83 = arith.mulf %78, %82 : vector<2x8x8xf32>
    %84 = arith.truncf %83 : vector<2x8x8xf32> to vector<2x8x8xbf16>
    %85 = vector.extract_strided_slice %32 {offsets = [0, 0, 80], sizes = [2, 8, 8], strides = [1, 1, 1]} : vector<2x8x96xbf16> to vector<2x8x8xbf16>
    "tpu.trace_start"() <{level = 10 : i32, message = "bqk,bkc->bqc"}> : () -> ()
    %cst_28 = arith.constant dense<0.000000e+00> : vector<2x8x8xf32>
    %86 = tpu.matmul %84, %85, %cst_28 {dimension_numbers = #tpu.dot_dimension_numbers<[2], [1], [1], [2], [0, 0, 0, 1, 1, 2], [0], [0]>} : vector<2x8x8xbf16>, vector<2x8x8xbf16>, vector<2x8x8xf32> -> vector<2x8x8xf32>
    "tpu.trace_stop"() : () -> ()
    %87 = vector.shape_cast %86 : vector<2x8x8xf32> to vector<16x8xf32>
    %88 = arith.truncf %87 : vector<16x8xf32> to vector<16x8xbf16>
    %c0_29 = arith.constant 0 : index
    %c16 = arith.constant 16 : index
    %89 = vector.load %arg23[%c0_29, %c16] : memref<16x32xbf16, #tpu.memory_space<vmem>>, vector<16x8xbf16>
    tpu.vector_store %arg23[%c0_29, %c16], %88 {strides = array<i32>} : memref<16x32xbf16, #tpu.memory_space<vmem>>, vector<16x8xbf16>,
    %90 = vector.extract_strided_slice %32 {offsets = [0, 0, 24], sizes = [2, 8, 8], strides = [1, 1, 1]} : vector<2x8x96xbf16> to vector<2x8x8xbf16>
    %91 = vector.extract_strided_slice %32 {offsets = [0, 0, 56], sizes = [2, 8, 8], strides = [1, 1, 1]} : vector<2x8x96xbf16> to vector<2x8x8xbf16>
    "tpu.trace_start"() <{level = 10 : i32, message = "bqc,bkc->bqk"}> : () -> ()
    %cst_30 = arith.constant dense<0.000000e+00> : vector<2x8x8xf32>
    %92 = tpu.matmul %90, %91, %cst_30 {dimension_numbers = #tpu.dot_dimension_numbers<[2], [2], [1], [1], [0, 0, 0, 1, 1, 1], [0], [0]>} : vector<2x8x8xbf16>, vector<2x8x8xbf16>, vector<2x8x8xf32> -> vector<2x8x8xf32>
    "tpu.trace_stop"() : () -> ()
    %cst_31 = arith.constant dense<0xFF800000> : vector<2x8xf32>
    %93 = vector.multi_reduction <maximumf>, %92, %cst_31 [2] : vector<2x8x8xf32> to vector<2x8xf32>
    %94 = vector.shape_cast %93 : vector<2x8xf32> to vector<2x8x1xf32>
    %95 = vector.broadcast %94 : vector<2x8x1xf32> to vector<2x8x8xf32>
    %96 = arith.subf %92, %95 : vector<2x8x8xf32>
    %97 = math.exp %96 : vector<2x8x8xf32>
    %cst_32 = arith.constant dense<0.000000e+00> : vector<2x8xf32>
    %98 = vector.multi_reduction <add>, %97, %cst_32 [2] : vector<2x8x8xf32> to vector<2x8xf32>
    %99 = vector.shape_cast %98 : vector<2x8xf32> to vector<2x8x1xf32>
    %100 = tpu.reciprocal %99 {approx = true} : vector<2x8x1xf32> -> vector<2x8x1xf32>
    %101 = vector.broadcast %100 : vector<2x8x1xf32> to vector<2x8x8xf32>
    %102 = arith.mulf %97, %101 : vector<2x8x8xf32>
    %103 = arith.truncf %102 : vector<2x8x8xf32> to vector<2x8x8xbf16>
    %104 = vector.extract_strided_slice %32 {offsets = [0, 0, 88], sizes = [2, 8, 8], strides = [1, 1, 1]} : vector<2x8x96xbf16> to vector<2x8x8xbf16>
    "tpu.trace_start"() <{level = 10 : i32, message = "bqk,bkc->bqc"}> : () -> ()
    %cst_33 = arith.constant dense<0.000000e+00> : vector<2x8x8xf32>
    %105 = tpu.matmul %103, %104, %cst_33 {dimension_numbers = #tpu.dot_dimension_numbers<[2], [1], [1], [2], [0, 0, 0, 1, 1, 2], [0], [0]>} : vector<2x8x8xbf16>, vector<2x8x8xbf16>, vector<2x8x8xf32> -> vector<2x8x8xf32>
    "tpu.trace_stop"() : () -> ()
    %106 = vector.shape_cast %105 : vector<2x8x8xf32> to vector<16x8xf32>
    %107 = arith.truncf %106 : vector<16x8xf32> to vector<16x8xbf16>
    %c0_34 = arith.constant 0 : index
    %c24 = arith.constant 24 : index
    %108 = vector.load %arg23[%c0_34, %c24] : memref<16x32xbf16, #tpu.memory_space<vmem>>, vector<16x8xbf16>
    tpu.vector_store %arg23[%c0_34, %c24], %107 {strides = array<i32>} : memref<16x32xbf16, #tpu.memory_space<vmem>>, vector<16x8xbf16>,
    %c0_35 = arith.constant 0 : index
    %c0_36 = arith.constant 0 : index
    %109 = vector.load %arg23[%c0_35, %c0_36] : memref<16x32xbf16, #tpu.memory_space<vmem>>, vector<16x32xbf16>
    %c0_37 = arith.constant 0 : index
    %c0_38 = arith.constant 0 : index
    %110 = vector.load %arg6[%c0_37, %c0_38] : memref<32x32xbf16, #tpu.memory_space<vmem>>, vector<32x32xbf16>
    %cst_39 = arith.constant dense<0.000000e+00> : vector<16x32xf32>
    %111 = tpu.matmul %109, %110, %cst_39 {dimension_numbers = #tpu.dot_dimension_numbers<[1], [0], [0], [1], [0, 0, 1, 1], [], []>} : vector<16x32xbf16>, vector<32x32xbf16>, vector<16x32xf32> -> vector<16x32xf32>
    %c0_40 = arith.constant 0 : index
    %c0_41 = arith.constant 0 : index
    %112 = vector.load %arg7[%c0_40, %c0_41] : memref<1x32xf32, #tpu.memory_space<vmem>>, vector<1x32xf32>
    %113 = vector.broadcast %112 : vector<1x32xf32> to vector<16x32xf32>
    %114 = arith.addf %111, %113 : vector<16x32xf32>
    %115 = arith.truncf %114 : vector<16x32xf32> to vector<16x32xbf16>
    %c0_42 = arith.constant 0 : index
    %c0_43 = arith.constant 0 : index
    %116 = vector.load %arg8[%c0_42, %c0_43] : memref<32x8xbf16, #tpu.memory_space<vmem>>, vector<32x8xbf16>
    %cst_44 = arith.constant dense<0.000000e+00> : vector<16x8xf32>
    %117 = tpu.matmul %115, %116, %cst_44 {dimension_numbers = #tpu.dot_dimension_numbers<[1], [0], [0], [1], [0, 0, 1, 1], [], []>} : vector<16x32xbf16>, vector<32x8xbf16>, vector<16x8xf32> -> vector<16x8xf32>
    %c0_45 = arith.constant 0 : index
    %c0_46 = arith.constant 0 : index
    %118 = vector.load %arg9[%c0_45, %c0_46] : memref<1x8xf32, #tpu.memory_space<vmem>>, vector<1x8xf32>
    %119 = vector.broadcast %118 : vector<1x8xf32> to vector<16x8xf32>
    %120 = arith.addf %117, %119 : vector<16x8xf32>
    %cst_47 = arith.constant 5.000000e-01 : f32
    %121 = vector.broadcast %cst_47 : f32 to vector<16x8xf32>
    %122 = arith.mulf %121, %120 : vector<16x8xf32>
    %cst_48 = arith.constant 0.707106769 : f32
    %123 = vector.broadcast %cst_48 : f32 to vector<16x8xf32>
    %124 = arith.mulf %120, %123 : vector<16x8xf32>
    %125 = math.erf %124 : vector<16x8xf32>
    %cst_49 = arith.constant 1.000000e+00 : f32
    %126 = vector.broadcast %cst_49 : f32 to vector<16x8xf32>
    %127 = arith.addf %126, %125 : vector<16x8xf32>
    %128 = arith.mulf %122, %127 : vector<16x8xf32>
    %129 = arith.truncf %128 : vector<16x8xf32> to vector<16x8xbf16>
    %c0_50 = arith.constant 0 : index
    %c0_51 = arith.constant 0 : index
    %130 = vector.load %arg10[%c0_50, %c0_51] : memref<8x32xbf16, #tpu.memory_space<vmem>>, vector<8x32xbf16>
    %cst_52 = arith.constant dense<0.000000e+00> : vector<16x32xf32>
    %131 = tpu.matmul %129, %130, %cst_52 {dimension_numbers = #tpu.dot_dimension_numbers<[1], [0], [0], [1], [0, 0, 1, 1], [], []>} : vector<16x8xbf16>, vector<8x32xbf16>, vector<16x32xf32> -> vector<16x32xf32>
    %c0_53 = arith.constant 0 : index
    %c0_54 = arith.constant 0 : index
    %132 = vector.load %arg11[%c0_53, %c0_54] : memref<1x32xf32, #tpu.memory_space<vmem>>, vector<1x32xf32>
    %133 = vector.broadcast %132 : vector<1x32xf32> to vector<16x32xf32>
    %134 = arith.addf %131, %133 : vector<16x32xf32>
    %135 = arith.addf %0, %114 : vector<16x32xf32>
    %136 = arith.addf %135, %134 : vector<16x32xf32>
    %c0_55 = arith.constant 0 : index
    %c0_56 = arith.constant 0 : index
    %137 = vector.load %arg12[%c0_55, %c0_56] : memref<1x32xf32, #tpu.memory_space<vmem>>, vector<1x32xf32>
    %c0_57 = arith.constant 0 : index
    %c0_58 = arith.constant 0 : index
    %138 = vector.load %arg13[%c0_57, %c0_58] : memref<1x32xf32, #tpu.memory_space<vmem>>, vector<1x32xf32>
    %cst_59 = arith.constant dense<0.000000e+00> : vector<16xf32>
    %139 = vector.multi_reduction <add>, %136, %cst_59 [1] : vector<16x32xf32> to vector<16xf32>
    %140 = vector.shape_cast %139 : vector<16xf32> to vector<16x1xf32>
    %cst_60 = arith.constant 3.200000e+01 : f32
    %141 = vector.broadcast %cst_60 : f32 to vector<16x1xf32>
    %142 = arith.divf %140, %141 : vector<16x1xf32>
    %143 = vector.broadcast %142 : vector<16x1xf32> to vector<16x32xf32>
    %144 = arith.subf %136, %143 : vector<16x32xf32>
    %145 = arith.mulf %144, %144 : vector<16x32xf32>
    %cst_61 = arith.constant dense<0.000000e+00> : vector<16xf32>
    %146 = vector.multi_reduction <add>, %145, %cst_61 [1] : vector<16x32xf32> to vector<16xf32>
    %147 = vector.shape_cast %146 : vector<16xf32> to vector<16x1xf32>
    %cst_62 = arith.constant 3.200000e+01 : f32
    %148 = vector.broadcast %cst_62 : f32 to vector<16x1xf32>
    %149 = arith.divf %147, %148 : vector<16x1xf32>
    %150 = vector.broadcast %142 : vector<16x1xf32> to vector<16x32xf32>
    %151 = arith.subf %136, %150 : vector<16x32xf32>
    %cst_63 = arith.constant 9.99999974E-6 : f32
    %152 = vector.broadcast %cst_63 : f32 to vector<16x1xf32>
    %153 = arith.addf %149, %152 : vector<16x1xf32>
    %154 = math.rsqrt %153 : vector<16x1xf32>
    %155 = vector.broadcast %154 : vector<16x1xf32> to vector<16x32xf32>
    %156 = arith.mulf %151, %155 : vector<16x32xf32>
    %157 = vector.broadcast %137 : vector<1x32xf32> to vector<16x32xf32>
    %158 = arith.mulf %156, %157 : vector<16x32xf32>
    %159 = vector.broadcast %138 : vector<1x32xf32> to vector<16x32xf32>
    %160 = arith.addf %158, %159 : vector<16x32xf32>
    %161 = arith.truncf %160 : vector<16x32xf32> to vector<16x32xbf16>
    %cst_64 = arith.constant 0.000000e+00 : f32
    %162 = vector.broadcast %cst_64 : f32 to vector<16x32xf32>
    %c0_65 = arith.constant 0 : index
    %c0_66 = arith.constant 0 : index
    %163 = vector.load %arg14[%c0_65, %c0_66] : memref<32x128xbf16, #tpu.memory_space<vmem>>, vector<32x128xbf16>
    %cst_67 = arith.constant dense<0.000000e+00> : vector<16x128xf32>
    %164 = tpu.matmul %161, %163, %cst_67 {dimension_numbers = #tpu.dot_dimension_numbers<[1], [0], [0], [1], [0, 0, 1, 1], [], []>} : vector<16x32xbf16>, vector<32x128xbf16>, vector<16x128xf32> -> vector<16x128xf32>
    %c0_68 = arith.constant 0 : index
    %c0_69 = arith.constant 0 : index
    %165 = vector.load %arg15[%c0_68, %c0_69] : memref<1x128xf32, #tpu.memory_space<vmem>>, vector<1x128xf32>
    %166 = vector.broadcast %165 : vector<1x128xf32> to vector<16x128xf32>
    %167 = arith.addf %164, %166 : vector<16x128xf32>
    %cst_70 = arith.constant 1.702000e+00 : f32
    %168 = vector.broadcast %cst_70 : f32 to vector<16x128xf32>
    %169 = arith.mulf %168, %167 : vector<16x128xf32>
    %170 = arith.negf %169 : vector<16x128xf32>
    %171 = math.exp %170 : vector<16x128xf32>
    %cst_71 = arith.constant 1.000000e+00 : f32
    %172 = vector.broadcast %cst_71 : f32 to vector<16x128xf32>
    %173 = arith.addf %172, %171 : vector<16x128xf32>
    %174 = arith.divf %172, %173 : vector<16x128xf32>
    %175 = arith.mulf %167, %174 : vector<16x128xf32>
    %176 = arith.truncf %175 : vector<16x128xf32> to vector<16x128xbf16>
    %c0_72 = arith.constant 0 : index
    %c0_73 = arith.constant 0 : index
    %177 = vector.load %arg16[%c0_72, %c0_73] : memref<128x32xbf16, #tpu.memory_space<vmem>>, vector<128x32xbf16>
    %cst_74 = arith.constant dense<0.000000e+00> : vector<16x32xf32>
    %178 = tpu.matmul %176, %177, %cst_74 {dimension_numbers = #tpu.dot_dimension_numbers<[1], [0], [0], [1], [0, 0, 1, 1], [], []>} : vector<16x128xbf16>, vector<128x32xbf16>, vector<16x32xf32> -> vector<16x32xf32>
    %179 = arith.addf %162, %178 : vector<16x32xf32>
    %c0_75 = arith.constant 0 : index
    %c0_76 = arith.constant 0 : index
    %180 = vector.load %arg17[%c0_75, %c0_76] : memref<1x32xf32, #tpu.memory_space<vmem>>, vector<1x32xf32>
    %181 = vector.broadcast %180 : vector<1x32xf32> to vector<16x32xf32>
    %182 = arith.addf %179, %181 : vector<16x32xf32>
    %c0_77 = arith.constant 0 : index
    %c0_78 = arith.constant 0 : index
    %183 = vector.load %arg18[%c0_77, %c0_78] : memref<32x8xbf16, #tpu.memory_space<vmem>>, vector<32x8xbf16>
    %cst_79 = arith.constant dense<0.000000e+00> : vector<16x8xf32>
    %184 = tpu.matmul %161, %183, %cst_79 {dimension_numbers = #tpu.dot_dimension_numbers<[1], [0], [0], [1], [0, 0, 1, 1], [], []>} : vector<16x32xbf16>, vector<32x8xbf16>, vector<16x8xf32> -> vector<16x8xf32>
    %c0_80 = arith.constant 0 : index
    %c0_81 = arith.constant 0 : index
    %185 = vector.load %arg19[%c0_80, %c0_81] : memref<1x8xf32, #tpu.memory_space<vmem>>, vector<1x8xf32>
    %186 = vector.broadcast %185 : vector<1x8xf32> to vector<16x8xf32>
    %187 = arith.addf %184, %186 : vector<16x8xf32>
    %cst_82 = arith.constant 5.000000e-01 : f32
    %188 = vector.broadcast %cst_82 : f32 to vector<16x8xf32>
    %189 = arith.mulf %188, %187 : vector<16x8xf32>
    %cst_83 = arith.constant 0.707106769 : f32
    %190 = vector.broadcast %cst_83 : f32 to vector<16x8xf32>
    %191 = arith.mulf %187, %190 : vector<16x8xf32>
    %192 = math.erf %191 : vector<16x8xf32>
    %cst_84 = arith.constant 1.000000e+00 : f32
    %193 = vector.broadcast %cst_84 : f32 to vector<16x8xf32>
    %194 = arith.addf %193, %192 : vector<16x8xf32>
    %195 = arith.mulf %189, %194 : vector<16x8xf32>
    %196 = arith.truncf %195 : vector<16x8xf32> to vector<16x8xbf16>
    %c0_85 = arith.constant 0 : index
    %c0_86 = arith.constant 0 : index
    %197 = vector.load %arg20[%c0_85, %c0_86] : memref<8x32xbf16, #tpu.memory_space<vmem>>, vector<8x32xbf16>
    %cst_87 = arith.constant dense<0.000000e+00> : vector<16x32xf32>
    %198 = tpu.matmul %196, %197, %cst_87 {dimension_numbers = #tpu.dot_dimension_numbers<[1], [0], [0], [1], [0, 0, 1, 1], [], []>} : vector<16x8xbf16>, vector<8x32xbf16>, vector<16x32xf32> -> vector<16x32xf32>
    %c0_88 = arith.constant 0 : index
    %c0_89 = arith.constant 0 : index
    %199 = vector.load %arg21[%c0_88, %c0_89] : memref<1x32xf32, #tpu.memory_space<vmem>>, vector<1x32xf32>
    %200 = vector.broadcast %199 : vector<1x32xf32> to vector<16x32xf32>
    %201 = arith.addf %198, %200 : vector<16x32xf32>
    %202 = arith.addf %136, %182 : vector<16x32xf32>
    %cst_90 = arith.constant 5.000000e-01 : f32
    %203 = vector.broadcast %cst_90 : f32 to vector<16x32xf32>
    %204 = arith.mulf %203, %201 : vector<16x32xf32>
    %205 = arith.addf %202, %204 : vector<16x32xf32>
    %c0_91 = arith.constant 0 : index
    %c0_92 = arith.constant 0 : index
    %206 = vector.load %arg22[%c0_91, %c0_92] : memref<16x32xf32, #tpu.memory_space<vmem>>, vector<16x32xf32>
    tpu.vector_store %arg22[%c0_91, %c0_92], %205 {strides = array<i32>} : memref<16x32xf32, #tpu.memory_space<vmem>>, vector<16x32xf32>,
    return
  }
  func.func @transform_0(%arg0: i32) -> (i32, i32) {
    %c0_i32 = arith.constant 0 : i32
    %c0_i32_0 = arith.constant 0 : i32
    return %arg0, %c0_i32 : i32, i32
  }
  func.func @transform_1(%arg0: i32) -> (i32, i32) {
    %c0_i32 = arith.constant 0 : i32
    %c0_i32_0 = arith.constant 0 : i32
    %c0_i32_1 = arith.constant 0 : i32
    return %c0_i32, %c0_i32_0 : i32, i32
  }
  func.func @transform_2(%arg0: i32) -> (i32, i32) {
    %c0_i32 = arith.constant 0 : i32
    %c0_i32_0 = arith.constant 0 : i32
    %c0_i32_1 = arith.constant 0 : i32
    return %c0_i32, %c0_i32_0 : i32, i32
  }
  func.func @transform_3(%arg0: i32) -> (i32, i32) {
    %c0_i32 = arith.constant 0 : i32
    %c0_i32_0 = arith.constant 0 : i32
    %c0_i32_1 = arith.constant 0 : i32
    return %c0_i32, %c0_i32_0 : i32, i32
  }
  func.func @transform_4(%arg0: i32) -> (i32, i32) {
    %c0_i32 = arith.constant 0 : i32
    %c0_i32_0 = arith.constant 0 : i32
    %c0_i32_1 = arith.constant 0 : i32
    return %c0_i32, %c0_i32_0 : i32, i32
  }
  func.func @transform_5(%arg0: i32) -> (i32, i32) {
    %c0_i32 = arith.constant 0 : i32
    %c0_i32_0 = arith.constant 0 : i32
    %c0_i32_1 = arith.constant 0 : i32
    return %c0_i32, %c0_i32_0 : i32, i32
  }
  func.func @transform_6(%arg0: i32) -> (i32, i32) {
    %c0_i32 = arith.constant 0 : i32
    %c0_i32_0 = arith.constant 0 : i32
    %c0_i32_1 = arith.constant 0 : i32
    return %c0_i32, %c0_i32_0 : i32, i32
  }
  func.func @transform_7(%arg0: i32) -> (i32, i32) {
    %c0_i32 = arith.constant 0 : i32
    %c0_i32_0 = arith.constant 0 : i32
    %c0_i32_1 = arith.constant 0 : i32
    return %c0_i32, %c0_i32_0 : i32, i32
  }
  func.func @transform_8(%arg0: i32) -> (i32, i32) {
    %c0_i32 = arith.constant 0 : i32
    %c0_i32_0 = arith.constant 0 : i32
    %c0_i32_1 = arith.constant 0 : i32
    return %c0_i32, %c0_i32_0 : i32, i32
  }
  func.func @transform_9(%arg0: i32) -> (i32, i32) {
    %c0_i32 = arith.constant 0 : i32
    %c0_i32_0 = arith.constant 0 : i32
    %c0_i32_1 = arith.constant 0 : i32
    return %c0_i32, %c0_i32_0 : i32, i32
  }
  func.func @transform_10(%arg0: i32) -> (i32, i32) {
    %c0_i32 = arith.constant 0 : i32
    %c0_i32_0 = arith.constant 0 : i32
    %c0_i32_1 = arith.constant 0 : i32
    return %c0_i32, %c0_i32_0 : i32, i32
  }
  func.func @transform_11(%arg0: i32) -> (i32, i32) {
    %c0_i32 = arith.constant 0 : i32
    %c0_i32_0 = arith.constant 0 : i32
    %c0_i32_1 = arith.constant 0 : i32
    return %c0_i32, %c0_i32_0 : i32, i32
  }
  func.func @transform_12(%arg0: i32) -> (i32, i32) {
    %c0_i32 = arith.constant 0 : i32
    %c0_i32_0 = arith.constant 0 : i32
    %c0_i32_1 = arith.constant 0 : i32
    return %c0_i32, %c0_i32_0 : i32, i32
  }
  func.func @transform_13(%arg0: i32) -> (i32, i32) {
    %c0_i32 = arith.constant 0 : i32
    %c0_i32_0 = arith.constant 0 : i32
    %c0_i32_1 = arith.constant 0 : i32
    return %c0_i32, %c0_i32_0 : i32, i32
  }
  func.func @transform_14(%arg0: i32) -> (i32, i32) {
    %c0_i32 = arith.constant 0 : i32
    %c0_i32_0 = arith.constant 0 : i32
    %c0_i32_1 = arith.constant 0 : i32
    return %c0_i32, %c0_i32_0 : i32, i32
  }
  func.func @transform_15(%arg0: i32) -> (i32, i32) {
    %c0_i32 = arith.constant 0 : i32
    %c0_i32_0 = arith.constant 0 : i32
    %c0_i32_1 = arith.constant 0 : i32
    return %c0_i32, %c0_i32_0 : i32, i32
  }
  func.func @transform_16(%arg0: i32) -> (i32, i32) {
    %c0_i32 = arith.constant 0 : i32
    %c0_i32_0 = arith.constant 0 : i32
    %c0_i32_1 = arith.constant 0 : i32
    return %c0_i32, %c0_i32_0 : i32, i32
  }
  func.func @transform_17(%arg0: i32) -> (i32, i32) {
    %c0_i32 = arith.constant 0 : i32
    %c0_i32_0 = arith.constant 0 : i32
    %c0_i32_1 = arith.constant 0 : i32
    return %c0_i32, %c0_i32_0 : i32, i32
  }
  func.func @transform_18(%arg0: i32) -> (i32, i32) {
    %c0_i32 = arith.constant 0 : i32
    %c0_i32_0 = arith.constant 0 : i32
    %c0_i32_1 = arith.constant 0 : i32
    return %c0_i32, %c0_i32_0 : i32, i32
  }
  func.func @transform_19(%arg0: i32) -> (i32, i32) {
    %c0_i32 = arith.constant 0 : i32
    %c0_i32_0 = arith.constant 0 : i32
    %c0_i32_1 = arith.constant 0 : i32
    return %c0_i32, %c0_i32_0 : i32, i32
  }
  func.func @transform_20(%arg0: i32) -> (i32, i32) {
    %c0_i32 = arith.constant 0 : i32
    %c0_i32_0 = arith.constant 0 : i32
    %c0_i32_1 = arith.constant 0 : i32
    return %c0_i32, %c0_i32_0 : i32, i32
  }
  func.func @transform_21(%arg0: i32) -> (i32, i32) {
    %c0_i32 = arith.constant 0 : i32
    %c0_i32_0 = arith.constant 0 : i32
    return %arg0, %c0_i32 : i32, i32
  }
}

</mosaic_0001>

<llo_original>
// kernel: tpu_custom_call.1
$region0: #{tpu_custom_call.1}
  #allocation0 [shape = 'u32[]', space=smem, size = 0x4, offset = 0x4, fixed_abs, tag = 'smem constant byte address 0x4 - core index']
  #allocation1 [shape = 'u32[144,128]{1,0:T(1,128)}', space=vmem, size = 0x12000, scoped, tag = 'internal scratch']
  #allocation2 [shape = 'bf16[16,32]{1,0:T(8,128)(2,1)}', space=vmem, size = 0x1000, scoped, tag = 'scratch operand']
  %s0 = inlined_call_operand.vmem [shape: f32[32,32], index: 0, kind: input, shape index: {}]
  %s1 = inlined_call_operand.vmem [shape: f32[1,32], index: 1, kind: input, shape index: {}]
  %s2 = inlined_call_operand.vmem [shape: f32[1,32], index: 2, kind: input, shape index: {}]
  %s3 = inlined_call_operand.vmem [shape: bf16[32,96], index: 3, kind: input, shape index: {}]
  %s4 = inlined_call_operand.vmem [shape: f32[1,96], index: 4, kind: input, shape index: {}]
  %s5 = inlined_call_operand.vmem [shape: bf16[32,32], index: 5, kind: input, shape index: {}]
  %s6 = inlined_call_operand.vmem [shape: f32[1,32], index: 6, kind: input, shape index: {}]
  %s7 = inlined_call_operand.vmem [shape: bf16[32,8], index: 7, kind: input, shape index: {}]
  %s8 = inlined_call_operand.vmem [shape: f32[1,8], index: 8, kind: input, shape index: {}]
  %s9 = inlined_call_operand.vmem [shape: bf16[8,32], index: 9, kind: input, shape index: {}]
  %s10 = inlined_call_operand.vmem [shape: f32[1,32], index: 10, kind: input, shape index: {}]
  %s11 = inlined_call_operand.vmem [shape: f32[1,32], index: 11, kind: input, shape index: {}]
  %s12 = inlined_call_operand.vmem [shape: f32[1,32], index: 12, kind: input, shape index: {}]
  %s13 = inlined_call_operand.vmem [shape: bf16[32,128], index: 13, kind: input, shape index: {}]
  %s14 = inlined_call_operand.vmem [shape: f32[1,128], index: 14, kind: input, shape index: {}]
  %s15 = inlined_call_operand.vmem [shape: bf16[128,32], index: 15, kind: input, shape index: {}]
  %s16 = inlined_call_operand.vmem [shape: f32[1,32], index: 16, kind: input, shape index: {}]
  %s17 = inlined_call_operand.vmem [shape: bf16[32,8], index: 17, kind: input, shape index: {}]
  %s18 = inlined_call_operand.vmem [shape: f32[1,8], index: 18, kind: input, shape index: {}]
  %s19 = inlined_call_operand.vmem [shape: bf16[8,32], index: 19, kind: input, shape index: {}]
  %s20 = inlined_call_operand.vmem [shape: f32[1,32], index: 20, kind: input, shape index: {}]
  %s21 = inlined_call_operand.hbm [shape: f32[32,32], index: 21, kind: output, shape index: {}]
  %s22 = sld [smem:[#allocation0]]
  $region117: #{tpu_custom_call.1} parent=0
    _
  %s24 = ssub.s32 1, %s22
  %s25 = scalar_select 0, %s24, %s22
  $region1: #{tpu_custom_call.1} parent=0
    #allocation3 [shape = 'u8[16384]{0}', space=vmem, size = 0x4000, scoped, tag = 'output window, operand 0']
    #allocation4 [shape = 's32[2]{0}', space=sflag, size = 0x8, scoped, tag = 'scoped memory for tpu_custom_call.1']
    %26 = vsyncpa [#allocation4], 0
    %s27 = scalar_lea.sflag [#allocation4], 1
    %28 = vsyncpa %s27, 0
    loop: start=0, step=1, limit=4
    $region2: #{tpu_custom_call.1} parent=1 // loop_pre_header
      _
    $region3: #{tpu_custom_call.1} parent=1 // loop_header
      %s30 = sphi 0, %s34
      %p31 = scmp.ge.s32.totalorder %s30, 4
      %s40 = sphi 0, %s42
      %s43 = sphi 0, %s40
      %s44 = sphi 0, %s43
      %s60 = sphi 0, %s44
      %s64 = sphi 0, %s64
      %s66 = sphi 0, %s64
      %s67 = sphi 0, %s66
      %s81 = sphi 0, %s67
      %s85 = sphi 0, %s85
      %s87 = sphi 0, %s85
      %s88 = sphi 0, %s87
      %s102 = sphi 0, %s88
      %s106 = sphi 0, %s106
      %s108 = sphi 0, %s106
      %s109 = sphi 0, %s108
      %s123 = sphi 0, %s109
      %s127 = sphi 0, %s127
      %s129 = sphi 0, %s127
      %s130 = sphi 0, %s129
      %s144 = sphi 0, %s130
      %s148 = sphi 0, %s148
      %s150 = sphi 0, %s148
      %s151 = sphi 0, %s150
      %s165 = sphi 0, %s151
      %s169 = sphi 0, %s169
      %s171 = sphi 0, %s169
      %s172 = sphi 0, %s171
      %s186 = sphi 0, %s172
      %s190 = sphi 0, %s190
      %s192 = sphi 0, %s190
      %s193 = sphi 0, %s192
      %s207 = sphi 0, %s193
      %s211 = sphi 0, %s211
      %s213 = sphi 0, %s211
      %s214 = sphi 0, %s213
      %s228 = sphi 0, %s214
      %s232 = sphi 0, %s232
      %s234 = sphi 0, %s232
      %s235 = sphi 0, %s234
      %s249 = sphi 0, %s235
      %s253 = sphi 0, %s253
      %s255 = sphi 0, %s253
      %s256 = sphi 0, %s255
      %s270 = sphi 0, %s256
      %s274 = sphi 0, %s274
      %s276 = sphi 0, %s274
      %s277 = sphi 0, %s276
      %s291 = sphi 0, %s277
      %s295 = sphi 0, %s295
      %s297 = sphi 0, %s295
      %s298 = sphi 0, %s297
      %s312 = sphi 0, %s298
      %s316 = sphi 0, %s316
      %s318 = sphi 0, %s316
      %s319 = sphi 0, %s318
      %s333 = sphi 0, %s319
      %s337 = sphi 0, %s337
      %s339 = sphi 0, %s337
      %s340 = sphi 0, %s339
      %s354 = sphi 0, %s340
      %s358 = sphi 0, %s358
      %s360 = sphi 0, %s358
      %s361 = sphi 0, %s360
      %s375 = sphi 0, %s361
      %s379 = sphi 0, %s379
      %s381 = sphi 0, %s379
      %s382 = sphi 0, %s381
      %s396 = sphi 0, %s382
      %s400 = sphi 0, %s400
      %s402 = sphi 0, %s400
      %s403 = sphi 0, %s402
      %s417 = sphi 0, %s403
      %s421 = sphi 0, %s421
      %s423 = sphi 0, %s421
      %s424 = sphi 0, %s423
      %s438 = sphi 0, %s424
      %s442 = sphi 0, %s442
      %s444 = sphi 0, %s442
      %s445 = sphi 0, %s444
      %s459 = sphi 0, %s445
      %s463 = sphi 0, %s463
      %s465 = sphi 0, %s463
      %s466 = sphi 0, %s465
      %s480 = sphi 0, %s466
      %s486 = sphi 0, %s488
      %s489 = sphi 0, %s486
      %s490 = sphi 0, %s489
      %s506 = sphi 0, %s490
    $region4: #{tpu_custom_call.1} parent=1 // loop_header_branch
      %33 = sbr.rel (%p31) target = $region8
    $region5: #{tpu_custom_call.1} parent=1 // loop_body
      %s35 = ssub.s32 %s30, 1
      %s36 = ssub.s32 %s30, 2
      %s37 = sadd.s32 %s30, 1
      %s38 = ssub.s32 %s30, %s37
      %p39 = scmp.eq.s32.totalorder %s38, 0
      %s41 = sadd.s32 %s40, 1
      %s42 = scalar_select %p39, %s40, %s41
      %p45 = pneg %p39
      %p46 = scmp.eq.s32.totalorder %s30, 1
      %p47 = por %p45, %p46
      %p48 = scmp.ne.s32.totalorder %s40, %s43
      %p49 = scmp.eq.s32.totalorder %s30, 0
      %p50 = por %p48, %p49
      %p51 = scmp.ne.s32.totalorder %s40, %s43
      %p52 = scmp.eq.s32.totalorder %s35, 1
      %p53 = por %p51, %p52
      %p54 = scmp.ne.s32.totalorder %s43, %s44
      %p55 = scmp.eq.s32.totalorder %s35, 0
      %p56 = por %p54, %p55
      %p57 = scmp.ne.s32.totalorder %s43, %s44
      %p58 = scmp.eq.s32.totalorder %s36, 1
      %p59 = por %p57, %p58
      %p61 = scmp.ne.s32.totalorder %s44, %s60
      %p62 = scmp.eq.s32.totalorder %s36, 0
      %p63 = por %p61, %p62
      %s65 = sadd.s32 %s64, 1
      %p68 = scmp.eq.s32.totalorder %s30, 1
      %p69 = scmp.ne.s32.totalorder %s64, %s66
      %p70 = scmp.eq.s32.totalorder %s30, 0
      %p71 = por %p69, %p70
      %p72 = scmp.ne.s32.totalorder %s64, %s66
      %p73 = scmp.eq.s32.totalorder %s35, 1
      %p74 = por %p72, %p73
      %p75 = scmp.ne.s32.totalorder %s66, %s67
      %p76 = scmp.eq.s32.totalorder %s35, 0
      %p77 = por %p75, %p76
      %p78 = scmp.ne.s32.totalorder %s66, %s67
      %p79 = scmp.eq.s32.totalorder %s36, 1
      %p80 = por %p78, %p79
      %p82 = scmp.ne.s32.totalorder %s67, %s81
      %p83 = scmp.eq.s32.totalorder %s36, 0
      %p84 = por %p82, %p83
      %s86 = sadd.s32 %s85, 1
      %p89 = scmp.eq.s32.totalorder %s30, 1
      %p90 = scmp.ne.s32.totalorder %s85, %s87
      %p91 = scmp.eq.s32.totalorder %s30, 0
      %p92 = por %p90, %p91
      %p93 = scmp.ne.s32.totalorder %s85, %s87
      %p94 = scmp.eq.s32.totalorder %s35, 1
      %p95 = por %p93, %p94
      %p96 = scmp.ne.s32.totalorder %s87, %s88
      %p97 = scmp.eq.s32.totalorder %s35, 0
      %p98 = por %p96, %p97
      %p99 = scmp.ne.s32.totalorder %s87, %s88
      %p100 = scmp.eq.s32.totalorder %s36, 1
      %p101 = por %p99, %p100
      %p103 = scmp.ne.s32.totalorder %s88, %s102
      %p104 = scmp.eq.s32.totalorder %s36, 0
      %p105 = por %p103, %p104
      %s107 = sadd.s32 %s106, 1
      %p110 = scmp.eq.s32.totalorder %s30, 1
      %p111 = scmp.ne.s32.totalorder %s106, %s108
      %p112 = scmp.eq.s32.totalorder %s30, 0
      %p113 = por %p111, %p112
      %p114 = scmp.ne.s32.totalorder %s106, %s108
      %p115 = scmp.eq.s32.totalorder %s35, 1
      %p116 = por %p114, %p115
      %p117 = scmp.ne.s32.totalorder %s108, %s109
      %p118 = scmp.eq.s32.totalorder %s35, 0
      %p119 = por %p117, %p118
      %p120 = scmp.ne.s32.totalorder %s108, %s109
      %p121 = scmp.eq.s32.totalorder %s36, 1
      %p122 = por %p120, %p121
      %p124 = scmp.ne.s32.totalorder %s109, %s123
      %p125 = scmp.eq.s32.totalorder %s36, 0
      %p126 = por %p124, %p125
      %s128 = sadd.s32 %s127, 1
      %p131 = scmp.eq.s32.totalorder %s30, 1
      %p132 = scmp.ne.s32.totalorder %s127, %s129
      %p133 = scmp.eq.s32.totalorder %s30, 0
      %p134 = por %p132, %p133
      %p135 = scmp.ne.s32.totalorder %s127, %s129
      %p136 = scmp.eq.s32.totalorder %s35, 1
      %p137 = por %p135, %p136
      %p138 = scmp.ne.s32.totalorder %s129, %s130
      %p139 = scmp.eq.s32.totalorder %s35, 0
      %p140 = por %p138, %p139
      %p141 = scmp.ne.s32.totalorder %s129, %s130
      %p142 = scmp.eq.s32.totalorder %s36, 1
      %p143 = por %p141, %p142
      %p145 = scmp.ne.s32.totalorder %s130, %s144
      %p146 = scmp.eq.s32.totalorder %s36, 0
      %p147 = por %p145, %p146
      %s149 = sadd.s32 %s148, 1
      %p152 = scmp.eq.s32.totalorder %s30, 1
      %p153 = scmp.ne.s32.totalorder %s148, %s150
      %p154 = scmp.eq.s32.totalorder %s30, 0
      %p155 = por %p153, %p154
      %p156 = scmp.ne.s32.totalorder %s148, %s150
      %p157 = scmp.eq.s32.totalorder %s35, 1
      %p158 = por %p156, %p157
      %p159 = scmp.ne.s32.totalorder %s150, %s151
      %p160 = scmp.eq.s32.totalorder %s35, 0
      %p161 = por %p159, %p160
      %p162 = scmp.ne.s32.totalorder %s150, %s151
      %p163 = scmp.eq.s32.totalorder %s36, 1
      %p164 = por %p162, %p163
      %p166 = scmp.ne.s32.totalorder %s151, %s165
      %p167 = scmp.eq.s32.totalorder %s36, 0
      %p168 = por %p166, %p167
      %s170 = sadd.s32 %s169, 1
      %p173 = scmp.eq.s32.totalorder %s30, 1
      %p174 = scmp.ne.s32.totalorder %s169, %s171
      %p175 = scmp.eq.s32.totalorder %s30, 0
      %p176 = por %p174, %p175
      %p177 = scmp.ne.s32.totalorder %s169, %s171
      %p178 = scmp.eq.s32.totalorder %s35, 1
      %p179 = por %p177, %p178
      %p180 = scmp.ne.s32.totalorder %s171, %s172
      %p181 = scmp.eq.s32.totalorder %s35, 0
      %p182 = por %p180, %p181
      %p183 = scmp.ne.s32.totalorder %s171, %s172
      %p184 = scmp.eq.s32.totalorder %s36, 1
      %p185 = por %p183, %p184
      %p187 = scmp.ne.s32.totalorder %s172, %s186
      %p188 = scmp.eq.s32.totalorder %s36, 0
      %p189 = por %p187, %p188
      %s191 = sadd.s32 %s190, 1
      %p194 = scmp.eq.s32.totalorder %s30, 1
      %p195 = scmp.ne.s32.totalorder %s190, %s192
      %p196 = scmp.eq.s32.totalorder %s30, 0
      %p197 = por %p195, %p196
      %p198 = scmp.ne.s32.totalorder %s190, %s192
      %p199 = scmp.eq.s32.totalorder %s35, 1
      %p200 = por %p198, %p199
      %p201 = scmp.ne.s32.totalorder %s192, %s193
      %p202 = scmp.eq.s32.totalorder %s35, 0
      %p203 = por %p201, %p202
      %p204 = scmp.ne.s32.totalorder %s192, %s193
      %p205 = scmp.eq.s32.totalorder %s36, 1
      %p206 = por %p204, %p205
      %p208 = scmp.ne.s32.totalorder %s193, %s207
      %p209 = scmp.eq.s32.totalorder %s36, 0
      %p210 = por %p208, %p209
      %s212 = sadd.s32 %s211, 1
      %p215 = scmp.eq.s32.totalorder %s30, 1
      %p216 = scmp.ne.s32.totalorder %s211, %s213
      %p217 = scmp.eq.s32.totalorder %s30, 0
      %p218 = por %p216, %p217
      %p219 = scmp.ne.s32.totalorder %s211, %s213
      %p220 = scmp.eq.s32.totalorder %s35, 1
      %p221 = por %p219, %p220
      %p222 = scmp.ne.s32.totalorder %s213, %s214
      %p223 = scmp.eq.s32.totalorder %s35, 0
      %p224 = por %p222, %p223
      %p225 = scmp.ne.s32.totalorder %s213, %s214
      %p226 = scmp.eq.s32.totalorder %s36, 1
      %p227 = por %p225, %p226
      %p229 = scmp.ne.s32.totalorder %s214, %s228
      %p230 = scmp.eq.s32.totalorder %s36, 0
      %p231 = por %p229, %p230
      %s233 = sadd.s32 %s232, 1
      %p236 = scmp.eq.s32.totalorder %s30, 1
      %p237 = scmp.ne.s32.totalorder %s232, %s234
      %p238 = scmp.eq.s32.totalorder %s30, 0
      %p239 = por %p237, %p238
      %p240 = scmp.ne.s32.totalorder %s232, %s234
      %p241 = scmp.eq.s32.totalorder %s35, 1
      %p242 = por %p240, %p241
      %p243 = scmp.ne.s32.totalorder %s234, %s235
      %p244 = scmp.eq.s32.totalorder %s35, 0
      %p245 = por %p243, %p244
      %p246 = scmp.ne.s32.totalorder %s234, %s235
      %p247 = scmp.eq.s32.totalorder %s36, 1
      %p248 = por %p246, %p247
      %p250 = scmp.ne.s32.totalorder %s235, %s249
      %p251 = scmp.eq.s32.totalorder %s36, 0
      %p252 = por %p250, %p251
      %s254 = sadd.s32 %s253, 1
      %p257 = scmp.eq.s32.totalorder %s30, 1
      %p258 = scmp.ne.s32.totalorder %s253, %s255
      %p259 = scmp.eq.s32.totalorder %s30, 0
      %p260 = por %p258, %p259
      %p261 = scmp.ne.s32.totalorder %s253, %s255
      %p262 = scmp.eq.s32.totalorder %s35, 1
      %p263 = por %p261, %p262
      %p264 = scmp.ne.s32.totalorder %s255, %s256
      %p265 = scmp.eq.s32.totalorder %s35, 0
      %p266 = por %p264, %p265
      %p267 = scmp.ne.s32.totalorder %s255, %s256
      %p268 = scmp.eq.s32.totalorder %s36, 1
      %p269 = por %p267, %p268
      %p271 = scmp.ne.s32.totalorder %s256, %s270
      %p272 = scmp.eq.s32.totalorder %s36, 0
      %p273 = por %p271, %p272
      %s275 = sadd.s32 %s274, 1
      %p278 = scmp.eq.s32.totalorder %s30, 1
      %p279 = scmp.ne.s32.totalorder %s274, %s276
      %p280 = scmp.eq.s32.totalorder %s30, 0
      %p281 = por %p279, %p280
      %p282 = scmp.ne.s32.totalorder %s274, %s276
      %p283 = scmp.eq.s32.totalorder %s35, 1
      %p284 = por %p282, %p283
      %p285 = scmp.ne.s32.totalorder %s276, %s277
      %p286 = scmp.eq.s32.totalorder %s35, 0
      %p287 = por %p285, %p286
      %p288 = scmp.ne.s32.totalorder %s276, %s277
      %p289 = scmp.eq.s32.totalorder %s36, 1
      %p290 = por %p288, %p289
      %p292 = scmp.ne.s32.totalorder %s277, %s291
      %p293 = scmp.eq.s32.totalorder %s36, 0
      %p294 = por %p292, %p293
      %s296 = sadd.s32 %s295, 1
      %p299 = scmp.eq.s32.totalorder %s30, 1
      %p300 = scmp.ne.s32.totalorder %s295, %s297
      %p301 = scmp.eq.s32.totalorder %s30, 0
      %p302 = por %p300, %p301
      %p303 = scmp.ne.s32.totalorder %s295, %s297
      %p304 = scmp.eq.s32.totalorder %s35, 1
      %p305 = por %p303, %p304
      %p306 = scmp.ne.s32.totalorder %s297, %s298
      %p307 = scmp.eq.s32.totalorder %s35, 0
      %p308 = por %p306, %p307
      %p309 = scmp.ne.s32.totalorder %s297, %s298
      %p310 = scmp.eq.s32.totalorder %s36, 1
      %p311 = por %p309, %p310
      %p313 = scmp.ne.s32.totalorder %s298, %s312
      %p314 = scmp.eq.s32.totalorder %s36, 0
      %p315 = por %p313, %p314
      %s317 = sadd.s32 %s316, 1
      %p320 = scmp.eq.s32.totalorder %s30, 1
      %p321 = scmp.ne.s32.totalorder %s316, %s318
      %p322 = scmp.eq.s32.totalorder %s30, 0
      %p323 = por %p321, %p322
      %p324 = scmp.ne.s32.totalorder %s316, %s318
      %p325 = scmp.eq.s32.totalorder %s35, 1
      %p326 = por %p324, %p325
      %p327 = scmp.ne.s32.totalorder %s318, %s319
      %p328 = scmp.eq.s32.totalorder %s35, 0
      %p329 = por %p327, %p328
      %p330 = scmp.ne.s32.totalorder %s318, %s319
      %p331 = scmp.eq.s32.totalorder %s36, 1
      %p332 = por %p330, %p331
      %p334 = scmp.ne.s32.totalorder %s319, %s333
      %p335 = scmp.eq.s32.totalorder %s36, 0
      %p336 = por %p334, %p335
      %s338 = sadd.s32 %s337, 1
      %p341 = scmp.eq.s32.totalorder %s30, 1
      %p342 = scmp.ne.s32.totalorder %s337, %s339
      %p343 = scmp.eq.s32.totalorder %s30, 0
      %p344 = por %p342, %p343
      %p345 = scmp.ne.s32.totalorder %s337, %s339
      %p346 = scmp.eq.s32.totalorder %s35, 1
      %p347 = por %p345, %p346
      %p348 = scmp.ne.s32.totalorder %s339, %s340
      %p349 = scmp.eq.s32.totalorder %s35, 0
      %p350 = por %p348, %p349
      %p351 = scmp.ne.s32.totalorder %s339, %s340
      %p352 = scmp.eq.s32.totalorder %s36, 1
      %p353 = por %p351, %p352
      %p355 = scmp.ne.s32.totalorder %s340, %s354
      %p356 = scmp.eq.s32.totalorder %s36, 0
      %p357 = por %p355, %p356
      %s359 = sadd.s32 %s358, 1
      %p362 = scmp.eq.s32.totalorder %s30, 1
      %p363 = scmp.ne.s32.totalorder %s358, %s360
      %p364 = scmp.eq.s32.totalorder %s30, 0
      %p365 = por %p363, %p364
      %p366 = scmp.ne.s32.totalorder %s358, %s360
      %p367 = scmp.eq.s32.totalorder %s35, 1
      %p368 = por %p366, %p367
      %p369 = scmp.ne.s32.totalorder %s360, %s361
      %p370 = scmp.eq.s32.totalorder %s35, 0
      %p371 = por %p369, %p370
      %p372 = scmp.ne.s32.totalorder %s360, %s361
      %p373 = scmp.eq.s32.totalorder %s36, 1
      %p374 = por %p372, %p373
      %p376 = scmp.ne.s32.totalorder %s361, %s375
      %p377 = scmp.eq.s32.totalorder %s36, 0
      %p378 = por %p376, %p377
      %s380 = sadd.s32 %s379, 1
      %p383 = scmp.eq.s32.totalorder %s30, 1
      %p384 = scmp.ne.s32.totalorder %s379, %s381
      %p385 = scmp.eq.s32.totalorder %s30, 0
      %p386 = por %p384, %p385
      %p387 = scmp.ne.s32.totalorder %s379, %s381
      %p388 = scmp.eq.s32.totalorder %s35, 1
      %p389 = por %p387, %p388
      %p390 = scmp.ne.s32.totalorder %s381, %s382
      %p391 = scmp.eq.s32.totalorder %s35, 0
      %p392 = por %p390, %p391
      %p393 = scmp.ne.s32.totalorder %s381, %s382
      %p394 = scmp.eq.s32.totalorder %s36, 1
      %p395 = por %p393, %p394
      %p397 = scmp.ne.s32.totalorder %s382, %s396
      %p398 = scmp.eq.s32.totalorder %s36, 0
      %p399 = por %p397, %p398
      %s401 = sadd.s32 %s400, 1
      %p404 = scmp.eq.s32.totalorder %s30, 1
      %p405 = scmp.ne.s32.totalorder %s400, %s402
      %p406 = scmp.eq.s32.totalorder %s30, 0
      %p407 = por %p405, %p406
      %p408 = scmp.ne.s32.totalorder %s400, %s402
      %p409 = scmp.eq.s32.totalorder %s35, 1
      %p410 = por %p408, %p409
      %p411 = scmp.ne.s32.totalorder %s402, %s403
      %p412 = scmp.eq.s32.totalorder %s35, 0
      %p413 = por %p411, %p412
      %p414 = scmp.ne.s32.totalorder %s402, %s403
      %p415 = scmp.eq.s32.totalorder %s36, 1
      %p416 = por %p414, %p415
      %p418 = scmp.ne.s32.totalorder %s403, %s417
      %p419 = scmp.eq.s32.totalorder %s36, 0
      %p420 = por %p418, %p419
      %s422 = sadd.s32 %s421, 1
      %p425 = scmp.eq.s32.totalorder %s30, 1
      %p426 = scmp.ne.s32.totalorder %s421, %s423
      %p427 = scmp.eq.s32.totalorder %s30, 0
      %p428 = por %p426, %p427
      %p429 = scmp.ne.s32.totalorder %s421, %s423
      %p430 = scmp.eq.s32.totalorder %s35, 1
      %p431 = por %p429, %p430
      %p432 = scmp.ne.s32.totalorder %s423, %s424
      %p433 = scmp.eq.s32.totalorder %s35, 0
      %p434 = por %p432, %p433
      %p435 = scmp.ne.s32.totalorder %s423, %s424
      %p436 = scmp.eq.s32.totalorder %s36, 1
      %p437 = por %p435, %p436
      %p439 = scmp.ne.s32.totalorder %s424, %s438
      %p440 = scmp.eq.s32.totalorder %s36, 0
      %p441 = por %p439, %p440
      %s443 = sadd.s32 %s442, 1
      %p446 = scmp.eq.s32.totalorder %s30, 1
      %p447 = scmp.ne.s32.totalorder %s442, %s444
      %p448 = scmp.eq.s32.totalorder %s30, 0
      %p449 = por %p447, %p448
      %p450 = scmp.ne.s32.totalorder %s442, %s444
      %p451 = scmp.eq.s32.totalorder %s35, 1
      %p452 = por %p450, %p451
      %p453 = scmp.ne.s32.totalorder %s444, %s445
      %p454 = scmp.eq.s32.totalorder %s35, 0
      %p455 = por %p453, %p454
      %p456 = scmp.ne.s32.totalorder %s444, %s445
      %p457 = scmp.eq.s32.totalorder %s36, 1
      %p458 = por %p456, %p457
      %p460 = scmp.ne.s32.totalorder %s445, %s459
      %p461 = scmp.eq.s32.totalorder %s36, 0
      %p462 = por %p460, %p461
      %s464 = sadd.s32 %s463, 1
      %p467 = scmp.eq.s32.totalorder %s30, 1
      %p468 = scmp.ne.s32.totalorder %s463, %s465
      %p469 = scmp.eq.s32.totalorder %s30, 0
      %p470 = por %p468, %p469
      %p471 = scmp.ne.s32.totalorder %s463, %s465
      %p472 = scmp.eq.s32.totalorder %s35, 1
      %p473 = por %p471, %p472
      %p474 = scmp.ne.s32.totalorder %s465, %s466
      %p475 = scmp.eq.s32.totalorder %s35, 0
      %p476 = por %p474, %p475
      %p477 = scmp.ne.s32.totalorder %s465, %s466
      %p478 = scmp.eq.s32.totalorder %s36, 1
      %p479 = por %p477, %p478
      %p481 = scmp.ne.s32.totalorder %s466, %s480
      %p482 = scmp.eq.s32.totalorder %s36, 0
      %p483 = por %p481, %p482
      %s484 = ssub.s32 %s30, %s37
      %p485 = scmp.eq.s32.totalorder %s484, 0
      %s487 = sadd.s32 %s486, 1
      %s488 = scalar_select %p485, %s486, %s487
      %p491 = pneg %p485
      %p492 = scmp.eq.s32.totalorder %s30, 1
      %p493 = por %p491, %p492
      %p494 = scmp.ne.s32.totalorder %s486, %s489
      %p495 = scmp.eq.s32.totalorder %s30, 0
      %p496 = por %p494, %p495
      %p497 = scmp.ne.s32.totalorder %s486, %s489
      %p498 = scmp.eq.s32.totalorder %s35, 1
      %p499 = por %p497, %p498
      %p500 = scmp.ne.s32.totalorder %s489, %s490
      %p501 = scmp.eq.s32.totalorder %s35, 0
      %p502 = por %p500, %p501
      %p503 = scmp.ne.s32.totalorder %s489, %s490
      %p504 = scmp.eq.s32.totalorder %s36, 1
      %p505 = por %p503, %p504
      %p507 = scmp.ne.s32.totalorder %s490, %s506
      %p508 = scmp.eq.s32.totalorder %s36, 0
      %p509 = por %p507, %p508
      %p510 = scmp.le.s32.totalorder 1, %s30
      %p511 = scmp.lt.s32.totalorder %s30, 3
      %p512 = pnand %p510, %p511
      %p513 = pneg %p512
      // Predicated region
      $region9: #{tpu_custom_call.1} parent=5 // pred_check
        _
      $region10: #{tpu_custom_call.1} parent=5 // pred_check_branch
        %515 = sbr.rel (%p512) target = $region12
      $region11: #{tpu_custom_call.1} parent=5 // pred_region
        %s516 = ssub.s32 %s30, 1
        // Predicated region
        $region13: #{tpu_custom_call.1} parent=11 // pred_check
          %p517 = pneg %p77
        $region14: #{tpu_custom_call.1} parent=11 // pred_check_branch
          %519 = sbr.rel (%p517) target = $region16
        $region15: #{tpu_custom_call.1} parent=11 // pred_region
          _
        $region16: #{tpu_custom_call.1} parent=11 // pred_fallthru
          _
        // Predicated region
        $region17: #{tpu_custom_call.1} parent=11 // pred_check
          %p520 = pneg %p98
        $region18: #{tpu_custom_call.1} parent=11 // pred_check_branch
          %522 = sbr.rel (%p520) target = $region20
        $region19: #{tpu_custom_call.1} parent=11 // pred_region
          _
        $region20: #{tpu_custom_call.1} parent=11 // pred_fallthru
          _
        // Predicated region
        $region21: #{tpu_custom_call.1} parent=11 // pred_check
          %p523 = pneg %p119
        $region22: #{tpu_custom_call.1} parent=11 // pred_check_branch
          %525 = sbr.rel (%p523) target = $region24
        $region23: #{tpu_custom_call.1} parent=11 // pred_region
          _
        $region24: #{tpu_custom_call.1} parent=11 // pred_fallthru
          _
        // Predicated region
        $region25: #{tpu_custom_call.1} parent=11 // pred_check
          %p526 = pneg %p140
        $region26: #{tpu_custom_call.1} parent=11 // pred_check_branch
          %528 = sbr.rel (%p526) target = $region28
        $region27: #{tpu_custom_call.1} parent=11 // pred_region
          _
        $region28: #{tpu_custom_call.1} parent=11 // pred_fallthru
          _
        // Predicated region
        $region29: #{tpu_custom_call.1} parent=11 // pred_check
          %p529 = pneg %p161
        $region30: #{tpu_custom_call.1} parent=11 // pred_check_branch
          %531 = sbr.rel (%p529) target = $region32
        $region31: #{tpu_custom_call.1} parent=11 // pred_region
          _
        $region32: #{tpu_custom_call.1} parent=11 // pred_fallthru
          _
        // Predicated region
        $region33: #{tpu_custom_call.1} parent=11 // pred_check
          %p532 = pneg %p182
        $region34: #{tpu_custom_call.1} parent=11 // pred_check_branch
          %534 = sbr.rel (%p532) target = $region36
        $region35: #{tpu_custom_call.1} parent=11 // pred_region
          _
        $region36: #{tpu_custom_call.1} parent=11 // pred_fallthru
          _
        // Predicated region
        $region37: #{tpu_custom_call.1} parent=11 // pred_check
          %p535 = pneg %p203
        $region38: #{tpu_custom_call.1} parent=11 // pred_check_branch
          %537 = sbr.rel (%p535) target = $region40
        $region39: #{tpu_custom_call.1} parent=11 // pred_region
          _
        $region40: #{tpu_custom_call.1} parent=11 // pred_fallthru
          _
        // Predicated region
        $region41: #{tpu_custom_call.1} parent=11 // pred_check
          %p538 = pneg %p224
        $region42: #{tpu_custom_call.1} parent=11 // pred_check_branch
          %540 = sbr.rel (%p538) target = $region44
        $region43: #{tpu_custom_call.1} parent=11 // pred_region
          _
        $region44: #{tpu_custom_call.1} parent=11 // pred_fallthru
          _
        // Predicated region
        $region45: #{tpu_custom_call.1} parent=11 // pred_check
          %p541 = pneg %p245
        $region46: #{tpu_custom_call.1} parent=11 // pred_check_branch
          %543 = sbr.rel (%p541) target = $region48
        $region47: #{tpu_custom_call.1} parent=11 // pred_region
          _
        $region48: #{tpu_custom_call.1} parent=11 // pred_fallthru
          _
        // Predicated region
        $region49: #{tpu_custom_call.1} parent=11 // pred_check
          %p544 = pneg %p266
        $region50: #{tpu_custom_call.1} parent=11 // pred_check_branch
          %546 = sbr.rel (%p544) target = $region52
        $region51: #{tpu_custom_call.1} parent=11 // pred_region
          _
        $region52: #{tpu_custom_call.1} parent=11 // pred_fallthru
          _
        // Predicated region
        $region53: #{tpu_custom_call.1} parent=11 // pred_check
          %p547 = pneg %p287
        $region54: #{tpu_custom_call.1} parent=11 // pred_check_branch
          %549 = sbr.rel (%p547) target = $region56
        $region55: #{tpu_custom_call.1} parent=11 // pred_region
          _
        $region56: #{tpu_custom_call.1} parent=11 // pred_fallthru
          _
        // Predicated region
        $region57: #{tpu_custom_call.1} parent=11 // pred_check
          %p550 = pneg %p308
        $region58: #{tpu_custom_call.1} parent=11 // pred_check_branch
          %552 = sbr.rel (%p550) target = $region60
        $region59: #{tpu_custom_call.1} parent=11 // pred_region
          _
        $region60: #{tpu_custom_call.1} parent=11 // pred_fallthru
          _
        // Predicated region
        $region61: #{tpu_custom_call.1} parent=11 // pred_check
          %p553 = pneg %p329
        $region62: #{tpu_custom_call.1} parent=11 // pred_check_branch
          %555 = sbr.rel (%p553) target = $region64
        $region63: #{tpu_custom_call.1} parent=11 // pred_region
          _
        $region64: #{tpu_custom_call.1} parent=11 // pred_fallthru
          _
        // Predicated region
        $region65: #{tpu_custom_call.1} parent=11 // pred_check
          %p556 = pneg %p350
        $region66: #{tpu_custom_call.1} parent=11 // pred_check_branch
          %558 = sbr.rel (%p556) target = $region68
        $region67: #{tpu_custom_call.1} parent=11 // pred_region
          _
        $region68: #{tpu_custom_call.1} parent=11 // pred_fallthru
          _
        // Predicated region
        $region69: #{tpu_custom_call.1} parent=11 // pred_check
          %p559 = pneg %p371
        $region70: #{tpu_custom_call.1} parent=11 // pred_check_branch
          %561 = sbr.rel (%p559) target = $region72
        $region71: #{tpu_custom_call.1} parent=11 // pred_region
          _
        $region72: #{tpu_custom_call.1} parent=11 // pred_fallthru
          _
        // Predicated region
        $region73: #{tpu_custom_call.1} parent=11 // pred_check
          %p562 = pneg %p392
        $region74: #{tpu_custom_call.1} parent=11 // pred_check_branch
          %564 = sbr.rel (%p562) target = $region76
        $region75: #{tpu_custom_call.1} parent=11 // pred_region
          _
        $region76: #{tpu_custom_call.1} parent=11 // pred_fallthru
          _
        // Predicated region
        $region77: #{tpu_custom_call.1} parent=11 // pred_check
          %p565 = pneg %p413
        $region78: #{tpu_custom_call.1} parent=11 // pred_check_branch
          %567 = sbr.rel (%p565) target = $region80
        $region79: #{tpu_custom_call.1} parent=11 // pred_region
          _
        $region80: #{tpu_custom_call.1} parent=11 // pred_fallthru
          _
        // Predicated region
        $region81: #{tpu_custom_call.1} parent=11 // pred_check
          %p568 = pneg %p434
        $region82: #{tpu_custom_call.1} parent=11 // pred_check_branch
          %570 = sbr.rel (%p568) target = $region84
        $region83: #{tpu_custom_call.1} parent=11 // pred_region
          _
        $region84: #{tpu_custom_call.1} parent=11 // pred_fallthru
          _
        // Predicated region
        $region85: #{tpu_custom_call.1} parent=11 // pred_check
          %p571 = pneg %p455
        $region86: #{tpu_custom_call.1} parent=11 // pred_check_branch
          %573 = sbr.rel (%p571) target = $region88
        $region87: #{tpu_custom_call.1} parent=11 // pred_region
          _
        $region88: #{tpu_custom_call.1} parent=11 // pred_fallthru
          _
        // Predicated region
        $region89: #{tpu_custom_call.1} parent=11 // pred_check
          %p574 = pneg %p476
        $region90: #{tpu_custom_call.1} parent=11 // pred_check_branch
          %576 = sbr.rel (%p574) target = $region92
        $region91: #{tpu_custom_call.1} parent=11 // pred_region
          _
        $region92: #{tpu_custom_call.1} parent=11 // pred_fallthru
          _
      $region12: #{tpu_custom_call.1} parent=5 // pred_fallthru
        _
      %p577 = scmp.lt.s32.totalorder %s30, 2
      // Predicated region
      $region93: #{tpu_custom_call.1} parent=5 // pred_check
        %p578 = pneg %p577
      $region94: #{tpu_custom_call.1} parent=5 // pred_check_branch
        %580 = sbr.rel (%p578) target = $region96
      $region95: #{tpu_custom_call.1} parent=5 // pred_region
        // Predicated region
        $region97: #{tpu_custom_call.1} parent=95 // pred_check
          %p581 = pneg %p50
        $region98: #{tpu_custom_call.1} parent=95 // pred_check_branch
          %583 = sbr.rel (%p581) target = $region100
        $region99: #{tpu_custom_call.1} parent=95 // pred_region
          %s584 = smul.u32 2, %s30
          %p585 = scmp.lt.s32.totalorder %s584, 3
          %s586 = scalar_select %p585, %s584, 3
          %s587 = smul.addr %s586, 8
          %s588 = scalar_lea.vmem %s0, %s587
          %s589 = smul.u32 2, %s30
        $region100: #{tpu_custom_call.1} parent=95 // pred_fallthru
          _
      $region96: #{tpu_custom_call.1} parent=5 // pred_fallthru
        _
      %p590 = scmp.le.s32.totalorder 1, %s30
      %p591 = scmp.lt.s32.totalorder %s30, 3
      %p592 = pnand %p590, %p591
      %p593 = pneg %p592
      // Predicated region
      $region101: #{tpu_custom_call.1} parent=5 // pred_check
        _
      $region102: #{tpu_custom_call.1} parent=5 // pred_check_branch
        %595 = sbr.rel (%p592) target = $region104
      $region103: #{tpu_custom_call.1} parent=5 // pred_region
        %s596 = ssub.s32 %s30, 1
        %s597 = smul.u32 2, %s35
        %p598 = scmp.lt.s32.totalorder %s597, 3
        %s599 = scalar_select %p598, %s597, 3
        %s600 = smul.addr %s599, 8
        %s601 = scalar_lea.vmem %s0, %s600
        %p602 = pneg %p56
        %p603 = pneg %p53
        %p604 = pneg %p77
        %p605 = pneg %p74
        %p606 = pneg %p98
        %p607 = pneg %p95
        %p608 = pneg %p119
        %p609 = pneg %p116
        %p610 = pneg %p140
        %p611 = pneg %p137
        %p612 = pneg %p161
        %p613 = pneg %p158
        %p614 = pneg %p182
        %p615 = pneg %p179
        %p616 = pneg %p203
        %p617 = pneg %p200
        %p618 = pneg %p224
        %p619 = pneg %p221
        %p620 = pneg %p245
        %p621 = pneg %p242
        %p622 = pneg %p266
        %p623 = pneg %p263
        %p624 = pneg %p287
        %p625 = pneg %p284
        %p626 = pneg %p308
        %p627 = pneg %p305
        %p628 = pneg %p329
        %p629 = pneg %p326
        %p630 = pneg %p350
        %p631 = pneg %p347
        %p632 = pneg %p371
        %p633 = pneg %p368
        %p634 = pneg %p392
        %p635 = pneg %p389
        %p636 = pneg %p413
        %p637 = pneg %p410
        %p638 = pneg %p434
        %p639 = pneg %p431
        %p640 = pneg %p455
        %p641 = pneg %p452
        %p642 = pneg %p476
        %p643 = pneg %p473
        %p644 = pneg %p502
        %p645 = pneg %p499
        %s646 = sand.u32 %s489, 1
        %s647 = scalar_lea.sflag [#allocation4], %s646
        %s648 = sand.u32 %s489, 1
        %s649 = smul.addr %s648, 16
        %s650 = scalar_lea.vmem [#allocation3], %s649
        %s651 = smul.u32 2, %s35
        %p652 = scmp.lt.s32.totalorder %s651, 3
        %s653 = scalar_select %p652, %s651, 3
        %s654 = smul.addr %s653, 8
        %s655 = scalar_lea.vmem %s0, %s654
        %s656 = smul.u32 2, %s35
        %s657 = smul.u32 2, %s35
        %v659 = vld [vmem:[%s655] sm:$0xff]
        %v660 = vld [vmem:[%s655 + $0x8] sm:$0xff]
        %v661 = vld [vmem:[%s1] sm:$0x1]
        %v662 = vld [vmem:[%s2] sm:$0x1]
        %vm663 = vcmask 261120
        %v664 = vsel %vm663, %v659, 0.0
        %665 = vadd.xlane.f32.xlu0 %v664
        %v666 = vpop.xlane.xlu0 %665
        %v667 = vsel %vm663, %v660, 0.0
        %668 = vadd.xlane.f32.xlu0 %v667
        %v669 = vpop.xlane.xlu0 %668
        %v670 = vrcp.pop 32.0
        %v671 = vmul.f32 %v666, %v670
        %v672 = vmul.f32 %v669, %v670
        %v673 = vsub.f32 %v659, %v671
        %v674 = vsub.f32 %v660, %v672
        %v675 = vmul.f32 %v673, %v673
        %v676 = vmul.f32 %v674, %v674
        %v677 = vsel %vm663, %v675, 0.0
        %678 = vadd.xlane.f32.xlu0 %v677
        %v679 = vpop.xlane.xlu0 %678
        %v680 = vsel %vm663, %v676, 0.0
        %681 = vadd.xlane.f32.xlu0 %v680
        %v682 = vpop.xlane.xlu0 %681
        %v683 = vmul.f32 %v679, %v670
        %v684 = vmul.f32 %v682, %v670
        %v685 = vadd.f32 %v683, 1e-05
        %v686 = vadd.f32 %v684, 1e-05
        %v687 = vrsqrt.pop %v685
        %v688 = vrsqrt.pop %v686
        %v689 = vmul.f32 %v673, %v687
        %v690 = vmul.f32 %v674, %v688
        %v692 = vlaneseq
        %v693 = vshrl.u32 %v692, 7
        %v694 = vsub.s32 0, %v693
        %v695 = vrot.slane %v661, %v694
        %v697 = vmul.f32 %v689, %v695
        %v698 = vmul.f32 %v690, %v695
        %v700 = vlaneseq
        %v701 = vshrl.u32 %v700, 7
        %v702 = vsub.s32 0, %v701
        %v703 = vrot.slane %v662, %v702
        %v705 = vadd.f32 %v697, %v703
        %v706 = vadd.f32 %v698, %v703
        %v707 = vpack.c.bf16 %v706, %v705
        %v708 = vld [vmem:[%s3] sm:$0xf]
        %v709 = vld [vmem:[%s3 + $0x4] sm:$0xf]
        %v710 = vld [vmem:[%s3 + $0x8] sm:$0xf]
        %v711 = vld [vmem:[%s3 + $0xc] sm:$0xf]
        %v712 = vld [vmem:[%s4] sm:$0x1]
        %v714 = vlaneseq
        %v715 = vshrl.u32 %v714, 7
        %v716 = vsub.s32 0, %v715
        %v717 = vrot.slane %v712, %v716
        %v723 = vunpack.c.l.b16 %v708
        %v724 = vunpack.c.l.b16 %v709
        %v725 = vunpack.c.l.b16 %v710
        %v726 = vunpack.c.l.b16 %v711
        %v727 = vpack.c.b16 %v724, %v723
        %v728 = vpack.c.b16 %v726, %v725
        %v732 = vsel %vm663, %v707, 0
        %734 = vmatprep.subr.bf16.mxu0 0
        %735 = vmatpush1.bf16.msra.mxu0 0
        %736 = vmatprep.subr.bf16.mxu0 0
        %737 = vmatpush1.bf16.msra.mxu0 0
        %738 = vmatprep.subr.bf16.mxu0 0
        %739 = vmatpush1.bf16.msra.mxu0 0
        %740 = vmatprep.subr.bf16.mxu0 0
        %741 = vmatpush1.bf16.msra.mxu0 0
        %742 = vmatprep.subr.bf16.mxu0 0
        %743 = vmatpush1.bf16.msra.mxu0 0
        %744 = vmatprep.subr.bf16.mxu0 0
        %745 = vmatpush1.bf16.msra.mxu0 0
        %746 = vmatprep.subr.bf16.mxu0 0
        %747 = vmatpush1.bf16.msra.mxu0 %v728
        %748 = vmatprep.subr.bf16.mxu0 0
        %749 = vmatpush1.bf16.msra.mxu0 %v727
        %750 = vmatprep.subr.bf16.mxu0 0
        %751 = vmatpush2.bf16.msra.mxu0 0
        %752 = vmatprep.subr.bf16.mxu0 0
        %753 = vmatpush2.bf16.msra.mxu0 0
        %754 = vmatprep.subr.bf16.mxu0 0
        %755 = vmatpush2.bf16.msra.mxu0 0
        %756 = vmatprep.subr.bf16.mxu0 0
        %757 = vmatpush2.bf16.msra.mxu0 0
        %758 = vmatprep.subr.bf16.mxu0 0
        %759 = vmatpush2.bf16.msra.mxu0 0
        %760 = vmatprep.subr.bf16.mxu0 0
        %761 = vmatpush2.bf16.msra.mxu0 0
        %762 = vmatprep.subr.bf16.mxu0 0
        %763 = vmatpush2.bf16.msra.mxu0 0
        %764 = vmatprep.subr.bf16.mxu0 0
        %765 = vmatpush2.bf16.msra.mxu0 0
        %766 = vmatprep.mubr.bf16.mxu0 0
        %767 = vmatmul.mubr.bf16.gmra.mxu0 %v732
        %v768 = vpop.f32.mrf.mxu0
        %v769 = vadd.f32 %v717, %v768
        %v770 = vpop.f32.mrf.mxu0
        %v771 = vpop.f32.mrf.mxu0
        %v772 = vadd.f32 %v717, %v771
        %v773 = vpop.f32.mrf.mxu0
        %774 = vdwg.mxu0
        %v775 = vpack.c.bf16 %v772, %v769
        %v777 = vunpack.c.l.b16 %v775
        %v778 = vunpack.c.h.b16 %v775
        %v779 = vpack.c.b16 %v777, %v777
        %v780 = vpack.c.b16 %v778, %v778
        %781 = vrot.lane.b32.xlu0 %v779, 96
        %v782 = vpop.permute.xlu0 %781
        %vm783 = vcmask 64512
        %v785 = vsel %vm783, %v779, 0
        %v788 = vsel %vm783, %v782, 0
        %790 = vmatprep.subr.bf16.mxu0 0
        %791 = vmatpush1.bf16.xpose.msra.mxu0 0
        %792 = vmatprep.subr.bf16.mxu0 0
        %793 = vmatpush1.bf16.xpose.msra.mxu0 0
        %794 = vmatprep.subr.bf16.mxu0 0
        %795 = vmatpush1.bf16.xpose.msra.mxu0 0
        %796 = vmatprep.subr.bf16.mxu0 0
        %797 = vmatpush1.bf16.xpose.msra.mxu0 0
        %798 = vmatprep.subr.bf16.mxu0 0
        %799 = vmatpush1.bf16.xpose.msra.mxu0 0
        %800 = vmatprep.subr.bf16.mxu0 0
        %801 = vmatpush1.bf16.xpose.msra.mxu0 0
        %802 = vmatprep.subr.bf16.mxu0 0
        %803 = vmatpush1.bf16.xpose.msra.mxu0 0
        %804 = vmatprep.subr.bf16.mxu0 0
        %805 = vmatpush1.bf16.xpose.msra.mxu0 %v788
        %806 = vmatprep.subr.bf16.mxu0 0
        %807 = vmatpush2.bf16.xpose.msra.mxu0 0
        %808 = vmatprep.subr.bf16.mxu0 0
        %809 = vmatpush2.bf16.xpose.msra.mxu0 0
        %810 = vmatprep.subr.bf16.mxu0 0
        %811 = vmatpush2.bf16.xpose.msra.mxu0 0
        %812 = vmatprep.subr.bf16.mxu0 0
        %813 = vmatpush2.bf16.xpose.msra.mxu0 0
        %814 = vmatprep.subr.bf16.mxu0 0
        %815 = vmatpush2.bf16.xpose.msra.mxu0 0
        %816 = vmatprep.subr.bf16.mxu0 0
        %817 = vmatpush2.bf16.xpose.msra.mxu0 0
        %818 = vmatprep.subr.bf16.mxu0 0
        %819 = vmatpush2.bf16.xpose.msra.mxu0 0
        %820 = vmatprep.subr.bf16.mxu0 0
        %821 = vmatpush2.bf16.xpose.msra.mxu0 0
        %822 = vmatprep.mubr.bf16.mxu0 0
        %823 = vmatmul.mubr.bf16.gmra.mxu0 %v785
        %v824 = vpop.f32.mrf.mxu0
        %v825 = vadd.f32 0.0, %v824
        %v826 = vpop.f32.mrf.mxu0
        %v827 = vpop.f32.mrf.mxu0
        %v828 = vpop.f32.mrf.mxu0
        %829 = vdwg.mxu0
        %830 = vrot.lane.b32.xlu0 %v780, 96
        %v831 = vpop.permute.xlu0 %830
        %v833 = vsel %vm783, %v780, 0
        %v836 = vsel %vm783, %v831, 0
        %838 = vmatprep.subr.bf16.mxu0 0
        %839 = vmatpush1.bf16.xpose.msra.mxu0 0
        %840 = vmatprep.subr.bf16.mxu0 0
        %841 = vmatpush1.bf16.xpose.msra.mxu0 0
        %842 = vmatprep.subr.bf16.mxu0 0
        %843 = vmatpush1.bf16.xpose.msra.mxu0 0
        %844 = vmatprep.subr.bf16.mxu0 0
        %845 = vmatpush1.bf16.xpose.msra.mxu0 0
        %846 = vmatprep.subr.bf16.mxu0 0
        %847 = vmatpush1.bf16.xpose.msra.mxu0 0
        %848 = vmatprep.subr.bf16.mxu0 0
        %849 = vmatpush1.bf16.xpose.msra.mxu0 0
        %850 = vmatprep.subr.bf16.mxu0 0
        %851 = vmatpush1.bf16.xpose.msra.mxu0 0
        %852 = vmatprep.subr.bf16.mxu0 0
        %853 = vmatpush1.bf16.xpose.msra.mxu0 %v836
        %854 = vmatprep.subr.bf16.mxu0 0
        %855 = vmatpush2.bf16.xpose.msra.mxu0 0
        %856 = vmatprep.subr.bf16.mxu0 0
        %857 = vmatpush2.bf16.xpose.msra.mxu0 0
        %858 = vmatprep.subr.bf16.mxu0 0
        %859 = vmatpush2.bf16.xpose.msra.mxu0 0
        %860 = vmatprep.subr.bf16.mxu0 0
        %861 = vmatpush2.bf16.xpose.msra.mxu0 0
        %862 = vmatprep.subr.bf16.mxu0 0
        %863 = vmatpush2.bf16.xpose.msra.mxu0 0
        %864 = vmatprep.subr.bf16.mxu0 0
        %865 = vmatpush2.bf16.xpose.msra.mxu0 0
        %866 = vmatprep.subr.bf16.mxu0 0
        %867 = vmatpush2.bf16.xpose.msra.mxu0 0
        %868 = vmatprep.subr.bf16.mxu0 0
        %869 = vmatpush2.bf16.xpose.msra.mxu0 0
        %870 = vmatprep.mubr.bf16.mxu0 0
        %871 = vmatmul.mubr.bf16.gmra.mxu0 %v833
        %v872 = vpop.f32.mrf.mxu0
        %v873 = vadd.f32 0.0, %v872
        %v874 = vpop.f32.mrf.mxu0
        %v875 = vpop.f32.mrf.mxu0
        %v876 = vpop.f32.mrf.mxu0
        %877 = vdwg.mxu0
        %v878 = vsel %vm783, %v825, -inf
        %879 = vmax.xlane.f32.xlu0 %v878
        %v880 = vpop.xlane.xlu0 %879
        %v881 = vsel %vm783, %v873, -inf
        %882 = vmax.xlane.f32.xlu0 %v881
        %v883 = vpop.xlane.xlu0 %882
        %v884 = vsub.f32 %v825, %v880
        %v885 = vsub.f32 %v873, %v883
        %v886 = vmul.f32 %v884, 1.442695
        %v887 = vpow.pop %v886
        %v888 = vmul.f32 %v885, 1.442695
        %v889 = vpow.pop %v888
        %v890 = vsel %vm783, %v887, 0.0
        %891 = vadd.xlane.f32.xlu0 %v890
        %v892 = vpop.xlane.xlu0 %891
        %v893 = vsel %vm783, %v889, 0.0
        %894 = vadd.xlane.f32.xlu0 %v893
        %v895 = vpop.xlane.xlu0 %894
        %v896 = vrcp.pop %v892
        %v897 = vrcp.pop %v895
        %v898 = vmul.f32 %v887, %v896
        %v899 = vmul.f32 %v889, %v897
        %v900 = vpack.c.bf16 %v898, %v898
        %v901 = vpack.c.bf16 %v899, %v899
        %902 = vrot.lane.b32.xlu0 %v779, 64
        %v903 = vpop.permute.xlu0 %902
        %v905 = vsel %vm783, %v900, 0
        %vm907 = vcmask 1043456
        %v909 = vsel %vm907, %v903, 0
        %911 = vmatprep.subr.bf16.mxu0 0
        %912 = vmatpush1.bf16.msra.mxu0 0
        %913 = vmatprep.subr.bf16.mxu0 0
        %914 = vmatpush1.bf16.msra.mxu0 0
        %915 = vmatprep.subr.bf16.mxu0 0
        %916 = vmatpush1.bf16.msra.mxu0 0
        %917 = vmatprep.subr.bf16.mxu0 0
        %918 = vmatpush1.bf16.msra.mxu0 0
        %919 = vmatprep.subr.bf16.mxu0 0
        %920 = vmatpush1.bf16.msra.mxu0 0
        %921 = vmatprep.subr.bf16.mxu0 0
        %922 = vmatpush1.bf16.msra.mxu0 0
        %923 = vmatprep.subr.bf16.mxu0 0
        %924 = vmatpush1.bf16.msra.mxu0 0
        %925 = vmatprep.subr.bf16.mxu0 0
        %926 = vmatpush1.bf16.msra.mxu0 %v909
        %927 = vmatprep.subr.bf16.mxu0 0
        %928 = vmatpush2.bf16.msra.mxu0 0
        %929 = vmatprep.subr.bf16.mxu0 0
        %930 = vmatpush2.bf16.msra.mxu0 0
        %931 = vmatprep.subr.bf16.mxu0 0
        %932 = vmatpush2.bf16.msra.mxu0 0
        %933 = vmatprep.subr.bf16.mxu0 0
        %934 = vmatpush2.bf16.msra.mxu0 0
        %935 = vmatprep.subr.bf16.mxu0 0
        %936 = vmatpush2.bf16.msra.mxu0 0
        %937 = vmatprep.subr.bf16.mxu0 0
        %938 = vmatpush2.bf16.msra.mxu0 0
        %939 = vmatprep.subr.bf16.mxu0 0
        %940 = vmatpush2.bf16.msra.mxu0 0
        %941 = vmatprep.subr.bf16.mxu0 0
        %942 = vmatpush2.bf16.msra.mxu0 0
        %943 = vmatprep.mubr.bf16.mxu0 0
        %944 = vmatmul.mubr.bf16.gmra.mxu0 %v905
        %v945 = vpop.f32.mrf.mxu0
        %v946 = vadd.f32 0.0, %v945
        %v947 = vpop.f32.mrf.mxu0
        %v948 = vpop.f32.mrf.mxu0
        %v949 = vpop.f32.mrf.mxu0
        %950 = vdwg.mxu0
        %951 = vrot.lane.b32.xlu0 %v780, 64
        %v952 = vpop.permute.xlu0 %951
        %v954 = vsel %vm783, %v901, 0
        %v957 = vsel %vm907, %v952, 0
        %959 = vmatprep.subr.bf16.mxu0 0
        %960 = vmatpush1.bf16.msra.mxu0 0
        %961 = vmatprep.subr.bf16.mxu0 0
        %962 = vmatpush1.bf16.msra.mxu0 0
        %963 = vmatprep.subr.bf16.mxu0 0
        %964 = vmatpush1.bf16.msra.mxu0 0
        %965 = vmatprep.subr.bf16.mxu0 0
        %966 = vmatpush1.bf16.msra.mxu0 0
        %967 = vmatprep.subr.bf16.mxu0 0
        %968 = vmatpush1.bf16.msra.mxu0 0
        %969 = vmatprep.subr.bf16.mxu0 0
        %970 = vmatpush1.bf16.msra.mxu0 0
        %971 = vmatprep.subr.bf16.mxu0 0
        %972 = vmatpush1.bf16.msra.mxu0 0
        %973 = vmatprep.subr.bf16.mxu0 0
        %974 = vmatpush1.bf16.msra.mxu0 %v957
        %975 = vmatprep.subr.bf16.mxu0 0
        %976 = vmatpush2.bf16.msra.mxu0 0
        %977 = vmatprep.subr.bf16.mxu0 0
        %978 = vmatpush2.bf16.msra.mxu0 0
        %979 = vmatprep.subr.bf16.mxu0 0
        %980 = vmatpush2.bf16.msra.mxu0 0
        %981 = vmatprep.subr.bf16.mxu0 0
        %982 = vmatpush2.bf16.msra.mxu0 0
        %983 = vmatprep.subr.bf16.mxu0 0
        %984 = vmatpush2.bf16.msra.mxu0 0
        %985 = vmatprep.subr.bf16.mxu0 0
        %986 = vmatpush2.bf16.msra.mxu0 0
        %987 = vmatprep.subr.bf16.mxu0 0
        %988 = vmatpush2.bf16.msra.mxu0 0
        %989 = vmatprep.subr.bf16.mxu0 0
        %990 = vmatpush2.bf16.msra.mxu0 0
        %991 = vmatprep.mubr.bf16.mxu0 0
        %992 = vmatmul.mubr.bf16.gmra.mxu0 %v954
        %v993 = vpop.f32.mrf.mxu0
        %v994 = vadd.f32 0.0, %v993
        %v995 = vpop.f32.mrf.mxu0
        %v996 = vpop.f32.mrf.mxu0
        %v997 = vpop.f32.mrf.mxu0
        %998 = vdwg.mxu0
        %v999 = vpack.c.bf16 %v994, %v946
        %v1001 = vunpack.c.l.b16 %v999
        %v1002 = vunpack.c.h.b16 %v999
        %v1003 = vpack.c.b16 %v1001, %v1001
        %v1004 = vpack.c.b16 %v1002, %v1002
        %vm1007 = vcmask 60416
        %1008 = vst.msk [vmem:[#allocation2] sm:$0xf] %vm1007, %v1003
        %1009 = vst.msk [vmem:[#allocation2 + $0x4] sm:$0xf] %vm1007, %v1004
        %1010 = vrot.lane.b32.xlu0 %v779, 120
        %v1011 = vpop.permute.xlu0 %1010
        %1012 = vrot.lane.b32.xlu0 %v779, 88
        %v1013 = vpop.permute.xlu0 %1012
        %v1015 = vsel %vm783, %v1011, 0
        %v1018 = vsel %vm783, %v1013, 0
        %1020 = vmatprep.subr.bf16.mxu0 0
        %1021 = vmatpush1.bf16.xpose.msra.mxu0 0
        %1022 = vmatprep.subr.bf16.mxu0 0
        %1023 = vmatpush1.bf16.xpose.msra.mxu0 0
        %1024 = vmatprep.subr.bf16.mxu0 0
        %1025 = vmatpush1.bf16.xpose.msra.mxu0 0
        %1026 = vmatprep.subr.bf16.mxu0 0
        %1027 = vmatpush1.bf16.xpose.msra.mxu0 0
        %1028 = vmatprep.subr.bf16.mxu0 0
        %1029 = vmatpush1.bf16.xpose.msra.mxu0 0
        %1030 = vmatprep.subr.bf16.mxu0 0
        %1031 = vmatpush1.bf16.xpose.msra.mxu0 0
        %1032 = vmatprep.subr.bf16.mxu0 0
        %1033 = vmatpush1.bf16.xpose.msra.mxu0 0
        %1034 = vmatprep.subr.bf16.mxu0 0
        %1035 = vmatpush1.bf16.xpose.msra.mxu0 %v1018
        %1036 = vmatprep.subr.bf16.mxu0 0
        %1037 = vmatpush2.bf16.xpose.msra.mxu0 0
        %1038 = vmatprep.subr.bf16.mxu0 0
        %1039 = vmatpush2.bf16.xpose.msra.mxu0 0
        %1040 = vmatprep.subr.bf16.mxu0 0
        %1041 = vmatpush2.bf16.xpose.msra.mxu0 0
        %1042 = vmatprep.subr.bf16.mxu0 0
        %1043 = vmatpush2.bf16.xpose.msra.mxu0 0
        %1044 = vmatprep.subr.bf16.mxu0 0
        %1045 = vmatpush2.bf16.xpose.msra.mxu0 0
        %1046 = vmatprep.subr.bf16.mxu0 0
        %1047 = vmatpush2.bf16.xpose.msra.mxu0 0
        %1048 = vmatprep.subr.bf16.mxu0 0
        %1049 = vmatpush2.bf16.xpose.msra.mxu0 0
        %1050 = vmatprep.subr.bf16.mxu0 0
        %1051 = vmatpush2.bf16.xpose.msra.mxu0 0
        %1052 = vmatprep.mubr.bf16.mxu0 0
        %1053 = vmatmul.mubr.bf16.gmra.mxu0 %v1015
        %v1054 = vpop.f32.mrf.mxu0
        %v1055 = vadd.f32 0.0, %v1054
        %v1056 = vpop.f32.mrf.mxu0
        %v1057 = vpop.f32.mrf.mxu0
        %v1058 = vpop.f32.mrf.mxu0
        %1059 = vdwg.mxu0
        %1060 = vrot.lane.b32.xlu0 %v780, 120
        %v1061 = vpop.permute.xlu0 %1060
        %1062 = vrot.lane.b32.xlu0 %v780, 88
        %v1063 = vpop.permute.xlu0 %1062
        %v1065 = vsel %vm783, %v1061, 0
        %v1068 = vsel %vm783, %v1063, 0
        %1070 = vmatprep.subr.bf16.mxu0 0
        %1071 = vmatpush1.bf16.xpose.msra.mxu0 0
        %1072 = vmatprep.subr.bf16.mxu0 0
        %1073 = vmatpush1.bf16.xpose.msra.mxu0 0
        %1074 = vmatprep.subr.bf16.mxu0 0
        %1075 = vmatpush1.bf16.xpose.msra.mxu0 0
        %1076 = vmatprep.subr.bf16.mxu0 0
        %1077 = vmatpush1.bf16.xpose.msra.mxu0 0
        %1078 = vmatprep.subr.bf16.mxu0 0
        %1079 = vmatpush1.bf16.xpose.msra.mxu0 0
        %1080 = vmatprep.subr.bf16.mxu0 0
        %1081 = vmatpush1.bf16.xpose.msra.mxu0 0
        %1082 = vmatprep.subr.bf16.mxu0 0
        %1083 = vmatpush1.bf16.xpose.msra.mxu0 0
        %1084 = vmatprep.subr.bf16.mxu0 0
        %1085 = vmatpush1.bf16.xpose.msra.mxu0 %v1068
        %1086 = vmatprep.subr.bf16.mxu0 0
        %1087 = vmatpush2.bf16.xpose.msra.mxu0 0
        %1088 = vmatprep.subr.bf16.mxu0 0
        %1089 = vmatpush2.bf16.xpose.msra.mxu0 0
        %1090 = vmatprep.subr.bf16.mxu0 0
        %1091 = vmatpush2.bf16.xpose.msra.mxu0 0
        %1092 = vmatprep.subr.bf16.mxu0 0
        %1093 = vmatpush2.bf16.xpose.msra.mxu0 0
        %1094 = vmatprep.subr.bf16.mxu0 0
        %1095 = vmatpush2.bf16.xpose.msra.mxu0 0
        %1096 = vmatprep.subr.bf16.mxu0 0
        %1097 = vmatpush2.bf16.xpose.msra.mxu0 0
        %1098 = vmatprep.subr.bf16.mxu0 0
        %1099 = vmatpush2.bf16.xpose.msra.mxu0 0
        %1100 = vmatprep.subr.bf16.mxu0 0
        %1101 = vmatpush2.bf16.xpose.msra.mxu0 0
        %1102 = vmatprep.mubr.bf16.mxu0 0
        %1103 = vmatmul.mubr.bf16.gmra.mxu0 %v1065
        %v1104 = vpop.f32.mrf.mxu0
        %v1105 = vadd.f32 0.0, %v1104
        %v1106 = vpop.f32.mrf.mxu0
        %v1107 = vpop.f32.mrf.mxu0
        %v1108 = vpop.f32.mrf.mxu0
        %1109 = vdwg.mxu0
        %v1110 = vsel %vm783, %v1055, -inf
        %1111 = vmax.xlane.f32.xlu0 %v1110
        %v1112 = vpop.xlane.xlu0 %1111
        %v1113 = vsel %vm783, %v1105, -inf
        %1114 = vmax.xlane.f32.xlu0 %v1113
        %v1115 = vpop.xlane.xlu0 %1114
        %v1116 = vsub.f32 %v1055, %v1112
        %v1117 = vsub.f32 %v1105, %v1115
        %v1118 = vmul.f32 %v1116, 1.442695
        %v1119 = vpow.pop %v1118
        %v1120 = vmul.f32 %v1117, 1.442695
        %v1121 = vpow.pop %v1120
        %v1122 = vsel %vm783, %v1119, 0.0
        %1123 = vadd.xlane.f32.xlu0 %v1122
        %v1124 = vpop.xlane.xlu0 %1123
        %v1125 = vsel %vm783, %v1121, 0.0
        %1126 = vadd.xlane.f32.xlu0 %v1125
        %v1127 = vpop.xlane.xlu0 %1126
        %v1128 = vrcp.pop %v1124
        %v1129 = vrcp.pop %v1127
        %v1130 = vmul.f32 %v1119, %v1128
        %v1131 = vmul.f32 %v1121, %v1129
        %v1132 = vpack.c.bf16 %v1130, %v1130
        %v1133 = vpack.c.bf16 %v1131, %v1131
        %1134 = vrot.lane.b32.xlu0 %v779, 56
        %v1135 = vpop.permute.xlu0 %1134
        %v1137 = vsel %vm783, %v1132, 0
        %v1140 = vsel %vm907, %v1135, 0
        %1142 = vmatprep.subr.bf16.mxu0 0
        %1143 = vmatpush1.bf16.msra.mxu0 0
        %1144 = vmatprep.subr.bf16.mxu0 0
        %1145 = vmatpush1.bf16.msra.mxu0 0
        %1146 = vmatprep.subr.bf16.mxu0 0
        %1147 = vmatpush1.bf16.msra.mxu0 0
        %1148 = vmatprep.subr.bf16.mxu0 0
        %1149 = vmatpush1.bf16.msra.mxu0 0
        %1150 = vmatprep.subr.bf16.mxu0 0
        %1151 = vmatpush1.bf16.msra.mxu0 0
        %1152 = vmatprep.subr.bf16.mxu0 0
        %1153 = vmatpush1.bf16.msra.mxu0 0
        %1154 = vmatprep.subr.bf16.mxu0 0
        %1155 = vmatpush1.bf16.msra.mxu0 0
        %1156 = vmatprep.subr.bf16.mxu0 0
        %1157 = vmatpush1.bf16.msra.mxu0 %v1140
        %1158 = vmatprep.subr.bf16.mxu0 0
        %1159 = vmatpush2.bf16.msra.mxu0 0
        %1160 = vmatprep.subr.bf16.mxu0 0
        %1161 = vmatpush2.bf16.msra.mxu0 0
        %1162 = vmatprep.subr.bf16.mxu0 0
        %1163 = vmatpush2.bf16.msra.mxu0 0
        %1164 = vmatprep.subr.bf16.mxu0 0
        %1165 = vmatpush2.bf16.msra.mxu0 0
        %1166 = vmatprep.subr.bf16.mxu0 0
        %1167 = vmatpush2.bf16.msra.mxu0 0
        %1168 = vmatprep.subr.bf16.mxu0 0
        %1169 = vmatpush2.bf16.msra.mxu0 0
        %1170 = vmatprep.subr.bf16.mxu0 0
        %1171 = vmatpush2.bf16.msra.mxu0 0
        %1172 = vmatprep.subr.bf16.mxu0 0
        %1173 = vmatpush2.bf16.msra.mxu0 0
        %1174 = vmatprep.mubr.bf16.mxu0 0
        %1175 = vmatmul.mubr.bf16.gmra.mxu0 %v1137
        %v1176 = vpop.f32.mrf.mxu0
        %v1177 = vadd.f32 0.0, %v1176
        %v1178 = vpop.f32.mrf.mxu0
        %v1179 = vpop.f32.mrf.mxu0
        %v1180 = vpop.f32.mrf.mxu0
        %1181 = vdwg.mxu0
        %1182 = vrot.lane.b32.xlu0 %v780, 56
        %v1183 = vpop.permute.xlu0 %1182
        %v1185 = vsel %vm783, %v1133, 0
        %v1188 = vsel %vm907, %v1183, 0
        %1190 = vmatprep.subr.bf16.mxu0 0
        %1191 = vmatpush1.bf16.msra.mxu0 0
        %1192 = vmatprep.subr.bf16.mxu0 0
        %1193 = vmatpush1.bf16.msra.mxu0 0
        %1194 = vmatprep.subr.bf16.mxu0 0
        %1195 = vmatpush1.bf16.msra.mxu0 0
        %1196 = vmatprep.subr.bf16.mxu0 0
        %1197 = vmatpush1.bf16.msra.mxu0 0
        %1198 = vmatprep.subr.bf16.mxu0 0
        %1199 = vmatpush1.bf16.msra.mxu0 0
        %1200 = vmatprep.subr.bf16.mxu0 0
        %1201 = vmatpush1.bf16.msra.mxu0 0
        %1202 = vmatprep.subr.bf16.mxu0 0
        %1203 = vmatpush1.bf16.msra.mxu0 0
        %1204 = vmatprep.subr.bf16.mxu0 0
        %1205 = vmatpush1.bf16.msra.mxu0 %v1188
        %1206 = vmatprep.subr.bf16.mxu0 0
        %1207 = vmatpush2.bf16.msra.mxu0 0
        %1208 = vmatprep.subr.bf16.mxu0 0
        %1209 = vmatpush2.bf16.msra.mxu0 0
        %1210 = vmatprep.subr.bf16.mxu0 0
        %1211 = vmatpush2.bf16.msra.mxu0 0
        %1212 = vmatprep.subr.bf16.mxu0 0
        %1213 = vmatpush2.bf16.msra.mxu0 0
        %1214 = vmatprep.subr.bf16.mxu0 0
        %1215 = vmatpush2.bf16.msra.mxu0 0
        %1216 = vmatprep.subr.bf16.mxu0 0
        %1217 = vmatpush2.bf16.msra.mxu0 0
        %1218 = vmatprep.subr.bf16.mxu0 0
        %1219 = vmatpush2.bf16.msra.mxu0 0
        %1220 = vmatprep.subr.bf16.mxu0 0
        %1221 = vmatpush2.bf16.msra.mxu0 0
        %1222 = vmatprep.mubr.bf16.mxu0 0
        %1223 = vmatmul.mubr.bf16.gmra.mxu0 %v1185
        %v1224 = vpop.f32.mrf.mxu0
        %v1225 = vadd.f32 0.0, %v1224
        %v1226 = vpop.f32.mrf.mxu0
        %v1227 = vpop.f32.mrf.mxu0
        %v1228 = vpop.f32.mrf.mxu0
        %1229 = vdwg.mxu0
        %v1230 = vpack.c.bf16 %v1225, %v1177
        %v1232 = vunpack.c.l.b16 %v1230
        %v1233 = vunpack.c.h.b16 %v1230
        %v1234 = vpack.c.b16 %v1232, %v1232
        %v1235 = vpack.c.b16 %v1233, %v1233
        %1236 = vrot.lane.b32.xlu0 %v1234, 8
        %v1237 = vpop.permute.xlu0 %1236
        %1238 = vrot.lane.b32.xlu0 %v1235, 8
        %v1239 = vpop.permute.xlu0 %1238
        %vm1242 = vcmask 126016
        %1243 = vst.msk [vmem:[#allocation2] sm:$0xf] %vm1242, %v1237
        %1244 = vst.msk [vmem:[#allocation2 + $0x4] sm:$0xf] %vm1242, %v1239
        %1245 = vrot.lane.b32.xlu0 %v779, 112
        %v1246 = vpop.permute.xlu0 %1245
        %1247 = vrot.lane.b32.xlu0 %v779, 80
        %v1248 = vpop.permute.xlu0 %1247
        %v1250 = vsel %vm783, %v1246, 0
        %v1253 = vsel %vm783, %v1248, 0
        %1255 = vmatprep.subr.bf16.mxu0 0
        %1256 = vmatpush1.bf16.xpose.msra.mxu0 0
        %1257 = vmatprep.subr.bf16.mxu0 0
        %1258 = vmatpush1.bf16.xpose.msra.mxu0 0
        %1259 = vmatprep.subr.bf16.mxu0 0
        %1260 = vmatpush1.bf16.xpose.msra.mxu0 0
        %1261 = vmatprep.subr.bf16.mxu0 0
        %1262 = vmatpush1.bf16.xpose.msra.mxu0 0
        %1263 = vmatprep.subr.bf16.mxu0 0
        %1264 = vmatpush1.bf16.xpose.msra.mxu0 0
        %1265 = vmatprep.subr.bf16.mxu0 0
        %1266 = vmatpush1.bf16.xpose.msra.mxu0 0
        %1267 = vmatprep.subr.bf16.mxu0 0
        %1268 = vmatpush1.bf16.xpose.msra.mxu0 0
        %1269 = vmatprep.subr.bf16.mxu0 0
        %1270 = vmatpush1.bf16.xpose.msra.mxu0 %v1253
        %1271 = vmatprep.subr.bf16.mxu0 0
        %1272 = vmatpush2.bf16.xpose.msra.mxu0 0
        %1273 = vmatprep.subr.bf16.mxu0 0
        %1274 = vmatpush2.bf16.xpose.msra.mxu0 0
        %1275 = vmatprep.subr.bf16.mxu0 0
        %1276 = vmatpush2.bf16.xpose.msra.mxu0 0
        %1277 = vmatprep.subr.bf16.mxu0 0
        %1278 = vmatpush2.bf16.xpose.msra.mxu0 0
        %1279 = vmatprep.subr.bf16.mxu0 0
        %1280 = vmatpush2.bf16.xpose.msra.mxu0 0
        %1281 = vmatprep.subr.bf16.mxu0 0
        %1282 = vmatpush2.bf16.xpose.msra.mxu0 0
        %1283 = vmatprep.subr.bf16.mxu0 0
        %1284 = vmatpush2.bf16.xpose.msra.mxu0 0
        %1285 = vmatprep.subr.bf16.mxu0 0
        %1286 = vmatpush2.bf16.xpose.msra.mxu0 0
        %1287 = vmatprep.mubr.bf16.mxu0 0
        %1288 = vmatmul.mubr.bf16.gmra.mxu0 %v1250
        %v1289 = vpop.f32.mrf.mxu0
        %v1290 = vadd.f32 0.0, %v1289
        %v1291 = vpop.f32.mrf.mxu0
        %v1292 = vpop.f32.mrf.mxu0
        %v1293 = vpop.f32.mrf.mxu0
        %1294 = vdwg.mxu0
        %1295 = vrot.lane.b32.xlu0 %v780, 112
        %v1296 = vpop.permute.xlu0 %1295
        %1297 = vrot.lane.b32.xlu0 %v780, 80
        %v1298 = vpop.permute.xlu0 %1297
        %v1300 = vsel %vm783, %v1296, 0
        %v1303 = vsel %vm783, %v1298, 0
        %1305 = vmatprep.subr.bf16.mxu0 0
        %1306 = vmatpush1.bf16.xpose.msra.mxu0 0
        %1307 = vmatprep.subr.bf16.mxu0 0
        %1308 = vmatpush1.bf16.xpose.msra.mxu0 0
        %1309 = vmatprep.subr.bf16.mxu0 0
        %1310 = vmatpush1.bf16.xpose.msra.mxu0 0
        %1311 = vmatprep.subr.bf16.mxu0 0
        %1312 = vmatpush1.bf16.xpose.msra.mxu0 0
        %1313 = vmatprep.subr.bf16.mxu0 0
        %1314 = vmatpush1.bf16.xpose.msra.mxu0 0
        %1315 = vmatprep.subr.bf16.mxu0 0
        %1316 = vmatpush1.bf16.xpose.msra.mxu0 0
        %1317 = vmatprep.subr.bf16.mxu0 0
        %1318 = vmatpush1.bf16.xpose.msra.mxu0 0
        %1319 = vmatprep.subr.bf16.mxu0 0
        %1320 = vmatpush1.bf16.xpose.msra.mxu0 %v1303
        %1321 = vmatprep.subr.bf16.mxu0 0
        %1322 = vmatpush2.bf16.xpose.msra.mxu0 0
        %1323 = vmatprep.subr.bf16.mxu0 0
        %1324 = vmatpush2.bf16.xpose.msra.mxu0 0
        %1325 = vmatprep.subr.bf16.mxu0 0
        %1326 = vmatpush2.bf16.xpose.msra.mxu0 0
        %1327 = vmatprep.subr.bf16.mxu0 0
        %1328 = vmatpush2.bf16.xpose.msra.mxu0 0
        %1329 = vmatprep.subr.bf16.mxu0 0
        %1330 = vmatpush2.bf16.xpose.msra.mxu0 0
        %1331 = vmatprep.subr.bf16.mxu0 0
        %1332 = vmatpush2.bf16.xpose.msra.mxu0 0
        %1333 = vmatprep.subr.bf16.mxu0 0
        %1334 = vmatpush2.bf16.xpose.msra.mxu0 0
        %1335 = vmatprep.subr.bf16.mxu0 0
        %1336 = vmatpush2.bf16.xpose.msra.mxu0 0
        %1337 = vmatprep.mubr.bf16.mxu0 0
        %1338 = vmatmul.mubr.bf16.gmra.mxu0 %v1300
        %v1339 = vpop.f32.mrf.mxu0
        %v1340 = vadd.f32 0.0, %v1339
        %v1341 = vpop.f32.mrf.mxu0
        %v1342 = vpop.f32.mrf.mxu0
        %v1343 = vpop.f32.mrf.mxu0
        %1344 = vdwg.mxu0
        %v1345 = vsel %vm783, %v1290, -inf
        %1346 = vmax.xlane.f32.xlu0 %v1345
        %v1347 = vpop.xlane.xlu0 %1346
        %v1348 = vsel %vm783, %v1340, -inf
        %1349 = vmax.xlane.f32.xlu0 %v1348
        %v1350 = vpop.xlane.xlu0 %1349
        %v1351 = vsub.f32 %v1290, %v1347
        %v1352 = vsub.f32 %v1340, %v1350
        %v1353 = vmul.f32 %v1351, 1.442695
        %v1354 = vpow.pop %v1353
        %v1355 = vmul.f32 %v1352, 1.442695
        %v1356 = vpow.pop %v1355
        %v1357 = vsel %vm783, %v1354, 0.0
        %1358 = vadd.xlane.f32.xlu0 %v1357
        %v1359 = vpop.xlane.xlu0 %1358
        %v1360 = vsel %vm783, %v1356, 0.0
        %1361 = vadd.xlane.f32.xlu0 %v1360
        %v1362 = vpop.xlane.xlu0 %1361
        %v1363 = vrcp.pop %v1359
        %v1364 = vrcp.pop %v1362
        %v1365 = vmul.f32 %v1354, %v1363
        %v1366 = vmul.f32 %v1356, %v1364
        %v1367 = vpack.c.bf16 %v1365, %v1365
        %v1368 = vpack.c.bf16 %v1366, %v1366
        %1369 = vrot.lane.b32.xlu0 %v779, 48
        %v1370 = vpop.permute.xlu0 %1369
        %v1372 = vsel %vm783, %v1367, 0
        %v1375 = vsel %vm907, %v1370, 0
        %1377 = vmatprep.subr.bf16.mxu0 0
        %1378 = vmatpush1.bf16.msra.mxu0 0
        %1379 = vmatprep.subr.bf16.mxu0 0
        %1380 = vmatpush1.bf16.msra.mxu0 0
        %1381 = vmatprep.subr.bf16.mxu0 0
        %1382 = vmatpush1.bf16.msra.mxu0 0
        %1383 = vmatprep.subr.bf16.mxu0 0
        %1384 = vmatpush1.bf16.msra.mxu0 0
        %1385 = vmatprep.subr.bf16.mxu0 0
        %1386 = vmatpush1.bf16.msra.mxu0 0
        %1387 = vmatprep.subr.bf16.mxu0 0
        %1388 = vmatpush1.bf16.msra.mxu0 0
        %1389 = vmatprep.subr.bf16.mxu0 0
        %1390 = vmatpush1.bf16.msra.mxu0 0
        %1391 = vmatprep.subr.bf16.mxu0 0
        %1392 = vmatpush1.bf16.msra.mxu0 %v1375
        %1393 = vmatprep.subr.bf16.mxu0 0
        %1394 = vmatpush2.bf16.msra.mxu0 0
        %1395 = vmatprep.subr.bf16.mxu0 0
        %1396 = vmatpush2.bf16.msra.mxu0 0
        %1397 = vmatprep.subr.bf16.mxu0 0
        %1398 = vmatpush2.bf16.msra.mxu0 0
        %1399 = vmatprep.subr.bf16.mxu0 0
        %1400 = vmatpush2.bf16.msra.mxu0 0
        %1401 = vmatprep.subr.bf16.mxu0 0
        %1402 = vmatpush2.bf16.msra.mxu0 0
        %1403 = vmatprep.subr.bf16.mxu0 0
        %1404 = vmatpush2.bf16.msra.mxu0 0
        %1405 = vmatprep.subr.bf16.mxu0 0
        %1406 = vmatpush2.bf16.msra.mxu0 0
        %1407 = vmatprep.subr.bf16.mxu0 0
        %1408 = vmatpush2.bf16.msra.mxu0 0
        %1409 = vmatprep.mubr.bf16.mxu0 0
        %1410 = vmatmul.mubr.bf16.gmra.mxu0 %v1372
        %v1411 = vpop.f32.mrf.mxu0
        %v1412 = vadd.f32 0.0, %v1411
        %v1413 = vpop.f32.mrf.mxu0
        %v1414 = vpop.f32.mrf.mxu0
        %v1415 = vpop.f32.mrf.mxu0
        %1416 = vdwg.mxu0
        %1417 = vrot.lane.b32.xlu0 %v780, 48
        %v1418 = vpop.permute.xlu0 %1417
        %v1420 = vsel %vm783, %v1368, 0
        %v1423 = vsel %vm907, %v1418, 0
        %1425 = vmatprep.subr.bf16.mxu0 0
        %1426 = vmatpush1.bf16.msra.mxu0 0
        %1427 = vmatprep.subr.bf16.mxu0 0
        %1428 = vmatpush1.bf16.msra.mxu0 0
        %1429 = vmatprep.subr.bf16.mxu0 0
        %1430 = vmatpush1.bf16.msra.mxu0 0
        %1431 = vmatprep.subr.bf16.mxu0 0
        %1432 = vmatpush1.bf16.msra.mxu0 0
        %1433 = vmatprep.subr.bf16.mxu0 0
        %1434 = vmatpush1.bf16.msra.mxu0 0
        %1435 = vmatprep.subr.bf16.mxu0 0
        %1436 = vmatpush1.bf16.msra.mxu0 0
        %1437 = vmatprep.subr.bf16.mxu0 0
        %1438 = vmatpush1.bf16.msra.mxu0 0
        %1439 = vmatprep.subr.bf16.mxu0 0
        %1440 = vmatpush1.bf16.msra.mxu0 %v1423
        %1441 = vmatprep.subr.bf16.mxu0 0
        %1442 = vmatpush2.bf16.msra.mxu0 0
        %1443 = vmatprep.subr.bf16.mxu0 0
        %1444 = vmatpush2.bf16.msra.mxu0 0
        %1445 = vmatprep.subr.bf16.mxu0 0
        %1446 = vmatpush2.bf16.msra.mxu0 0
        %1447 = vmatprep.subr.bf16.mxu0 0
        %1448 = vmatpush2.bf16.msra.mxu0 0
        %1449 = vmatprep.subr.bf16.mxu0 0
        %1450 = vmatpush2.bf16.msra.mxu0 0
        %1451 = vmatprep.subr.bf16.mxu0 0
        %1452 = vmatpush2.bf16.msra.mxu0 0
        %1453 = vmatprep.subr.bf16.mxu0 0
        %1454 = vmatpush2.bf16.msra.mxu0 0
        %1455 = vmatprep.subr.bf16.mxu0 0
        %1456 = vmatpush2.bf16.msra.mxu0 0
        %1457 = vmatprep.mubr.bf16.mxu0 0
        %1458 = vmatmul.mubr.bf16.gmra.mxu0 %v1420
        %v1459 = vpop.f32.mrf.mxu0
        %v1460 = vadd.f32 0.0, %v1459
        %v1461 = vpop.f32.mrf.mxu0
        %v1462 = vpop.f32.mrf.mxu0
        %v1463 = vpop.f32.mrf.mxu0
        %1464 = vdwg.mxu0
        %v1465 = vpack.c.bf16 %v1460, %v1412
        %v1467 = vunpack.c.l.b16 %v1465
        %v1468 = vunpack.c.h.b16 %v1465
        %v1469 = vpack.c.b16 %v1467, %v1467
        %v1470 = vpack.c.b16 %v1468, %v1468
        %1471 = vrot.lane.b32.xlu0 %v1469, 16
        %v1472 = vpop.permute.xlu0 %1471
        %1473 = vrot.lane.b32.xlu0 %v1470, 16
        %v1474 = vpop.permute.xlu0 %1473
        %vm1477 = vcmask 191616
        %1478 = vst.msk [vmem:[#allocation2] sm:$0xf] %vm1477, %v1472
        %1479 = vst.msk [vmem:[#allocation2 + $0x4] sm:$0xf] %vm1477, %v1474
        %1480 = vrot.lane.b32.xlu0 %v779, 104
        %v1481 = vpop.permute.xlu0 %1480
        %1482 = vrot.lane.b32.xlu0 %v779, 72
        %v1483 = vpop.permute.xlu0 %1482
        %v1485 = vsel %vm783, %v1481, 0
        %v1488 = vsel %vm783, %v1483, 0
        %1490 = vmatprep.subr.bf16.mxu0 0
        %1491 = vmatpush1.bf16.xpose.msra.mxu0 0
        %1492 = vmatprep.subr.bf16.mxu0 0
        %1493 = vmatpush1.bf16.xpose.msra.mxu0 0
        %1494 = vmatprep.subr.bf16.mxu0 0
        %1495 = vmatpush1.bf16.xpose.msra.mxu0 0
        %1496 = vmatprep.subr.bf16.mxu0 0
        %1497 = vmatpush1.bf16.xpose.msra.mxu0 0
        %1498 = vmatprep.subr.bf16.mxu0 0
        %1499 = vmatpush1.bf16.xpose.msra.mxu0 0
        %1500 = vmatprep.subr.bf16.mxu0 0
        %1501 = vmatpush1.bf16.xpose.msra.mxu0 0
        %1502 = vmatprep.subr.bf16.mxu0 0
        %1503 = vmatpush1.bf16.xpose.msra.mxu0 0
        %1504 = vmatprep.subr.bf16.mxu0 0
        %1505 = vmatpush1.bf16.xpose.msra.mxu0 %v1488
        %1506 = vmatprep.subr.bf16.mxu0 0
        %1507 = vmatpush2.bf16.xpose.msra.mxu0 0
        %1508 = vmatprep.subr.bf16.mxu0 0
        %1509 = vmatpush2.bf16.xpose.msra.mxu0 0
        %1510 = vmatprep.subr.bf16.mxu0 0
        %1511 = vmatpush2.bf16.xpose.msra.mxu0 0
        %1512 = vmatprep.subr.bf16.mxu0 0
        %1513 = vmatpush2.bf16.xpose.msra.mxu0 0
        %1514 = vmatprep.subr.bf16.mxu0 0
        %1515 = vmatpush2.bf16.xpose.msra.mxu0 0
        %1516 = vmatprep.subr.bf16.mxu0 0
        %1517 = vmatpush2.bf16.xpose.msra.mxu0 0
        %1518 = vmatprep.subr.bf16.mxu0 0
        %1519 = vmatpush2.bf16.xpose.msra.mxu0 0
        %1520 = vmatprep.subr.bf16.mxu0 0
        %1521 = vmatpush2.bf16.xpose.msra.mxu0 0
        %1522 = vmatprep.mubr.bf16.mxu0 0
        %1523 = vmatmul.mubr.bf16.gmra.mxu0 %v1485
        %v1524 = vpop.f32.mrf.mxu0
        %v1525 = vadd.f32 0.0, %v1524
        %v1526 = vpop.f32.mrf.mxu0
        %v1527 = vpop.f32.mrf.mxu0
        %v1528 = vpop.f32.mrf.mxu0
        %1529 = vdwg.mxu0
        %1530 = vrot.lane.b32.xlu0 %v780, 104
        %v1531 = vpop.permute.xlu0 %1530
        %1532 = vrot.lane.b32.xlu0 %v780, 72
        %v1533 = vpop.permute.xlu0 %1532
        %v1535 = vsel %vm783, %v1531, 0
        %v1538 = vsel %vm783, %v1533, 0
        %1540 = vmatprep.subr.bf16.mxu0 0
        %1541 = vmatpush1.bf16.xpose.msra.mxu0 0
        %1542 = vmatprep.subr.bf16.mxu0 0
        %1543 = vmatpush1.bf16.xpose.msra.mxu0 0
        %1544 = vmatprep.subr.bf16.mxu0 0
        %1545 = vmatpush1.bf16.xpose.msra.mxu0 0
        %1546 = vmatprep.subr.bf16.mxu0 0
        %1547 = vmatpush1.bf16.xpose.msra.mxu0 0
        %1548 = vmatprep.subr.bf16.mxu0 0
        %1549 = vmatpush1.bf16.xpose.msra.mxu0 0
        %1550 = vmatprep.subr.bf16.mxu0 0
        %1551 = vmatpush1.bf16.xpose.msra.mxu0 0
        %1552 = vmatprep.subr.bf16.mxu0 0
        %1553 = vmatpush1.bf16.xpose.msra.mxu0 0
        %1554 = vmatprep.subr.bf16.mxu0 0
        %1555 = vmatpush1.bf16.xpose.msra.mxu0 %v1538
        %1556 = vmatprep.subr.bf16.mxu0 0
        %1557 = vmatpush2.bf16.xpose.msra.mxu0 0
        %1558 = vmatprep.subr.bf16.mxu0 0
        %1559 = vmatpush2.bf16.xpose.msra.mxu0 0
        %1560 = vmatprep.subr.bf16.mxu0 0
        %1561 = vmatpush2.bf16.xpose.msra.mxu0 0
        %1562 = vmatprep.subr.bf16.mxu0 0
        %1563 = vmatpush2.bf16.xpose.msra.mxu0 0
        %1564 = vmatprep.subr.bf16.mxu0 0
        %1565 = vmatpush2.bf16.xpose.msra.mxu0 0
        %1566 = vmatprep.subr.bf16.mxu0 0
        %1567 = vmatpush2.bf16.xpose.msra.mxu0 0
        %1568 = vmatprep.subr.bf16.mxu0 0
        %1569 = vmatpush2.bf16.xpose.msra.mxu0 0
        %1570 = vmatprep.subr.bf16.mxu0 0
        %1571 = vmatpush2.bf16.xpose.msra.mxu0 0
        %1572 = vmatprep.mubr.bf16.mxu0 0
        %1573 = vmatmul.mubr.bf16.gmra.mxu0 %v1535
        %v1574 = vpop.f32.mrf.mxu0
        %v1575 = vadd.f32 0.0, %v1574
        %v1576 = vpop.f32.mrf.mxu0
        %v1577 = vpop.f32.mrf.mxu0
        %v1578 = vpop.f32.mrf.mxu0
        %1579 = vdwg.mxu0
        %v1580 = vsel %vm783, %v1525, -inf
        %1581 = vmax.xlane.f32.xlu0 %v1580
        %v1582 = vpop.xlane.xlu0 %1581
        %v1583 = vsel %vm783, %v1575, -inf
        %1584 = vmax.xlane.f32.xlu0 %v1583
        %v1585 = vpop.xlane.xlu0 %1584
        %v1586 = vsub.f32 %v1525, %v1582
        %v1587 = vsub.f32 %v1575, %v1585
        %v1588 = vmul.f32 %v1586, 1.442695
        %v1589 = vpow.pop %v1588
        %v1590 = vmul.f32 %v1587, 1.442695
        %v1591 = vpow.pop %v1590
        %v1592 = vsel %vm783, %v1589, 0.0
        %1593 = vadd.xlane.f32.xlu0 %v1592
        %v1594 = vpop.xlane.xlu0 %1593
        %v1595 = vsel %vm783, %v1591, 0.0
        %1596 = vadd.xlane.f32.xlu0 %v1595
        %v1597 = vpop.xlane.xlu0 %1596
        %v1598 = vrcp.pop %v1594
        %v1599 = vrcp.pop %v1597
        %v1600 = vmul.f32 %v1589, %v1598
        %v1601 = vmul.f32 %v1591, %v1599
        %v1602 = vpack.c.bf16 %v1600, %v1600
        %v1603 = vpack.c.bf16 %v1601, %v1601
        %1604 = vrot.lane.b32.xlu0 %v779, 40
        %v1605 = vpop.permute.xlu0 %1604
        %v1607 = vsel %vm783, %v1602, 0
        %v1610 = vsel %vm907, %v1605, 0
        %1612 = vmatprep.subr.bf16.mxu0 0
        %1613 = vmatpush1.bf16.msra.mxu0 0
        %1614 = vmatprep.subr.bf16.mxu0 0
        %1615 = vmatpush1.bf16.msra.mxu0 0
        %1616 = vmatprep.subr.bf16.mxu0 0
        %1617 = vmatpush1.bf16.msra.mxu0 0
        %1618 = vmatprep.subr.bf16.mxu0 0
        %1619 = vmatpush1.bf16.msra.mxu0 0
        %1620 = vmatprep.subr.bf16.mxu0 0
        %1621 = vmatpush1.bf16.msra.mxu0 0
        %1622 = vmatprep.subr.bf16.mxu0 0
        %1623 = vmatpush1.bf16.msra.mxu0 0
        %1624 = vmatprep.subr.bf16.mxu0 0
        %1625 = vmatpush1.bf16.msra.mxu0 0
        %1626 = vmatprep.subr.bf16.mxu0 0
        %1627 = vmatpush1.bf16.msra.mxu0 %v1610
        %1628 = vmatprep.subr.bf16.mxu0 0
        %1629 = vmatpush2.bf16.msra.mxu0 0
        %1630 = vmatprep.subr.bf16.mxu0 0
        %1631 = vmatpush2.bf16.msra.mxu0 0
        %1632 = vmatprep.subr.bf16.mxu0 0
        %1633 = vmatpush2.bf16.msra.mxu0 0
        %1634 = vmatprep.subr.bf16.mxu0 0
        %1635 = vmatpush2.bf16.msra.mxu0 0
        %1636 = vmatprep.subr.bf16.mxu0 0
        %1637 = vmatpush2.bf16.msra.mxu0 0
        %1638 = vmatprep.subr.bf16.mxu0 0
        %1639 = vmatpush2.bf16.msra.mxu0 0
        %1640 = vmatprep.subr.bf16.mxu0 0
        %1641 = vmatpush2.bf16.msra.mxu0 0
        %1642 = vmatprep.subr.bf16.mxu0 0
        %1643 = vmatpush2.bf16.msra.mxu0 0
        %1644 = vmatprep.mubr.bf16.mxu0 0
        %1645 = vmatmul.mubr.bf16.gmra.mxu0 %v1607
        %v1646 = vpop.f32.mrf.mxu0
        %v1647 = vadd.f32 0.0, %v1646
        %v1648 = vpop.f32.mrf.mxu0
        %v1649 = vpop.f32.mrf.mxu0
        %v1650 = vpop.f32.mrf.mxu0
        %1651 = vdwg.mxu0
        %1652 = vrot.lane.b32.xlu0 %v780, 40
        %v1653 = vpop.permute.xlu0 %1652
        %v1655 = vsel %vm783, %v1603, 0
        %v1658 = vsel %vm907, %v1653, 0
        %1660 = vmatprep.subr.bf16.mxu0 0
        %1661 = vmatpush1.bf16.msra.mxu0 0
        %1662 = vmatprep.subr.bf16.mxu0 0
        %1663 = vmatpush1.bf16.msra.mxu0 0
        %1664 = vmatprep.subr.bf16.mxu0 0
        %1665 = vmatpush1.bf16.msra.mxu0 0
        %1666 = vmatprep.subr.bf16.mxu0 0
        %1667 = vmatpush1.bf16.msra.mxu0 0
        %1668 = vmatprep.subr.bf16.mxu0 0
        %1669 = vmatpush1.bf16.msra.mxu0 0
        %1670 = vmatprep.subr.bf16.mxu0 0
        %1671 = vmatpush1.bf16.msra.mxu0 0
        %1672 = vmatprep.subr.bf16.mxu0 0
        %1673 = vmatpush1.bf16.msra.mxu0 0
        %1674 = vmatprep.subr.bf16.mxu0 0
        %1675 = vmatpush1.bf16.msra.mxu0 %v1658
        %1676 = vmatprep.subr.bf16.mxu0 0
        %1677 = vmatpush2.bf16.msra.mxu0 0
        %1678 = vmatprep.subr.bf16.mxu0 0
        %1679 = vmatpush2.bf16.msra.mxu0 0
        %1680 = vmatprep.subr.bf16.mxu0 0
        %1681 = vmatpush2.bf16.msra.mxu0 0
        %1682 = vmatprep.subr.bf16.mxu0 0
        %1683 = vmatpush2.bf16.msra.mxu0 0
        %1684 = vmatprep.subr.bf16.mxu0 0
        %1685 = vmatpush2.bf16.msra.mxu0 0
        %1686 = vmatprep.subr.bf16.mxu0 0
        %1687 = vmatpush2.bf16.msra.mxu0 0
        %1688 = vmatprep.subr.bf16.mxu0 0
        %1689 = vmatpush2.bf16.msra.mxu0 0
        %1690 = vmatprep.subr.bf16.mxu0 0
        %1691 = vmatpush2.bf16.msra.mxu0 0
        %1692 = vmatprep.mubr.bf16.mxu0 0
        %1693 = vmatmul.mubr.bf16.gmra.mxu0 %v1655
        %v1694 = vpop.f32.mrf.mxu0
        %v1695 = vadd.f32 0.0, %v1694
        %v1696 = vpop.f32.mrf.mxu0
        %v1697 = vpop.f32.mrf.mxu0
        %v1698 = vpop.f32.mrf.mxu0
        %1699 = vdwg.mxu0
        %v1700 = vpack.c.bf16 %v1695, %v1647
        %v1702 = vunpack.c.l.b16 %v1700
        %v1703 = vunpack.c.h.b16 %v1700
        %v1704 = vpack.c.b16 %v1702, %v1702
        %v1705 = vpack.c.b16 %v1703, %v1703
        %1706 = vrot.lane.b32.xlu0 %v1704, 24
        %v1707 = vpop.permute.xlu0 %1706
        %1708 = vrot.lane.b32.xlu0 %v1705, 24
        %v1709 = vpop.permute.xlu0 %1708
        %vm1712 = vcmask 257216
        %1713 = vst.msk [vmem:[#allocation2] sm:$0xf] %vm1712, %v1707
        %1714 = vst.msk [vmem:[#allocation2 + $0x4] sm:$0xf] %vm1712, %v1709
        %v1715 = vld [vmem:[#allocation2] sm:$0xf]
        %v1716 = vld [vmem:[#allocation2 + $0x4] sm:$0xf]
        %v1717 = vld [vmem:[%s5] sm:$0xf]
        %v1718 = vld [vmem:[%s5 + $0x4] sm:$0xf]
        %v1719 = vld [vmem:[%s5 + $0x8] sm:$0xf]
        %v1720 = vld [vmem:[%s5 + $0xc] sm:$0xf]
        %v1721 = vld [vmem:[%s6] sm:$0x1]
        %v1723 = vlaneseq
        %v1724 = vshrl.u32 %v1723, 7
        %v1725 = vsub.s32 0, %v1724
        %v1726 = vrot.slane %v1721, %v1725
        %v1730 = vunpack.c.l.b16 %v1715
        %v1731 = vunpack.c.l.b16 %v1716
        %v1732 = vpack.c.b16 %v1731, %v1730
        %v1737 = vunpack.c.l.b16 %v1717
        %v1738 = vunpack.c.l.b16 %v1718
        %v1739 = vunpack.c.l.b16 %v1719
        %v1740 = vunpack.c.l.b16 %v1720
        %v1741 = vpack.c.b16 %v1738, %v1737
        %v1742 = vpack.c.b16 %v1740, %v1739
        %v1746 = vsel %vm663, %v1732, 0
        %1748 = vmatprep.subr.bf16.mxu0 0
        %1749 = vmatpush1.bf16.msra.mxu0 0
        %1750 = vmatprep.subr.bf16.mxu0 0
        %1751 = vmatpush1.bf16.msra.mxu0 0
        %1752 = vmatprep.subr.bf16.mxu0 0
        %1753 = vmatpush1.bf16.msra.mxu0 0
        %1754 = vmatprep.subr.bf16.mxu0 0
        %1755 = vmatpush1.bf16.msra.mxu0 0
        %1756 = vmatprep.subr.bf16.mxu0 0
        %1757 = vmatpush1.bf16.msra.mxu0 0
        %1758 = vmatprep.subr.bf16.mxu0 0
        %1759 = vmatpush1.bf16.msra.mxu0 0
        %1760 = vmatprep.subr.bf16.mxu0 0
        %1761 = vmatpush1.bf16.msra.mxu0 %v1742
        %1762 = vmatprep.subr.bf16.mxu0 0
        %1763 = vmatpush1.bf16.msra.mxu0 %v1741
        %1764 = vmatprep.subr.bf16.mxu0 0
        %1765 = vmatpush2.bf16.msra.mxu0 0
        %1766 = vmatprep.subr.bf16.mxu0 0
        %1767 = vmatpush2.bf16.msra.mxu0 0
        %1768 = vmatprep.subr.bf16.mxu0 0
        %1769 = vmatpush2.bf16.msra.mxu0 0
        %1770 = vmatprep.subr.bf16.mxu0 0
        %1771 = vmatpush2.bf16.msra.mxu0 0
        %1772 = vmatprep.subr.bf16.mxu0 0
        %1773 = vmatpush2.bf16.msra.mxu0 0
        %1774 = vmatprep.subr.bf16.mxu0 0
        %1775 = vmatpush2.bf16.msra.mxu0 0
        %1776 = vmatprep.subr.bf16.mxu0 0
        %1777 = vmatpush2.bf16.msra.mxu0 0
        %1778 = vmatprep.subr.bf16.mxu0 0
        %1779 = vmatpush2.bf16.msra.mxu0 0
        %1780 = vmatprep.mubr.bf16.mxu0 0
        %1781 = vmatmul.mubr.bf16.gmra.mxu0 %v1746
        %v1782 = vpop.f32.mrf.mxu0
        %v1783 = vadd.f32 %v1726, %v1782
        %v1784 = vpop.f32.mrf.mxu0
        %v1785 = vpop.f32.mrf.mxu0
        %v1786 = vadd.f32 %v1726, %v1785
        %v1787 = vpop.f32.mrf.mxu0
        %1788 = vdwg.mxu0
        %v1789 = vpack.c.bf16 %v1786, %v1783
        %v1790 = vld [vmem:[%s7] sm:$0xf]
        %v1791 = vld [vmem:[%s7 + $0x4] sm:$0xf]
        %v1792 = vld [vmem:[%s7 + $0x8] sm:$0xf]
        %v1793 = vld [vmem:[%s7 + $0xc] sm:$0xf]
        %v1794 = vld [vmem:[%s8] sm:$0x1]
        %v1796 = vlaneseq
        %v1797 = vshrl.u32 %v1796, 7
        %v1798 = vsub.s32 0, %v1797
        %v1799 = vrot.slane %v1794, %v1798
        %v1805 = vunpack.c.l.b16 %v1790
        %v1806 = vunpack.c.l.b16 %v1791
        %v1807 = vunpack.c.l.b16 %v1792
        %v1808 = vunpack.c.l.b16 %v1793
        %v1809 = vpack.c.b16 %v1806, %v1805
        %v1810 = vpack.c.b16 %v1808, %v1807
        %v1814 = vsel %vm663, %v1789, 0
        %1816 = vmatprep.subr.bf16.mxu0 0
        %1817 = vmatpush1.bf16.msra.mxu0 0
        %1818 = vmatprep.subr.bf16.mxu0 0
        %1819 = vmatpush1.bf16.msra.mxu0 0
        %1820 = vmatprep.subr.bf16.mxu0 0
        %1821 = vmatpush1.bf16.msra.mxu0 0
        %1822 = vmatprep.subr.bf16.mxu0 0
        %1823 = vmatpush1.bf16.msra.mxu0 0
        %1824 = vmatprep.subr.bf16.mxu0 0
        %1825 = vmatpush1.bf16.msra.mxu0 0
        %1826 = vmatprep.subr.bf16.mxu0 0
        %1827 = vmatpush1.bf16.msra.mxu0 0
        %1828 = vmatprep.subr.bf16.mxu0 0
        %1829 = vmatpush1.bf16.msra.mxu0 %v1810
        %1830 = vmatprep.subr.bf16.mxu0 0
        %1831 = vmatpush1.bf16.msra.mxu0 %v1809
        %1832 = vmatprep.subr.bf16.mxu0 0
        %1833 = vmatpush2.bf16.msra.mxu0 0
        %1834 = vmatprep.subr.bf16.mxu0 0
        %1835 = vmatpush2.bf16.msra.mxu0 0
        %1836 = vmatprep.subr.bf16.mxu0 0
        %1837 = vmatpush2.bf16.msra.mxu0 0
        %1838 = vmatprep.subr.bf16.mxu0 0
        %1839 = vmatpush2.bf16.msra.mxu0 0
        %1840 = vmatprep.subr.bf16.mxu0 0
        %1841 = vmatpush2.bf16.msra.mxu0 0
        %1842 = vmatprep.subr.bf16.mxu0 0
        %1843 = vmatpush2.bf16.msra.mxu0 0
        %1844 = vmatprep.subr.bf16.mxu0 0
        %1845 = vmatpush2.bf16.msra.mxu0 0
        %1846 = vmatprep.subr.bf16.mxu0 0
        %1847 = vmatpush2.bf16.msra.mxu0 0
        %1848 = vmatprep.mubr.bf16.mxu0 0
        %1849 = vmatmul.mubr.bf16.gmra.mxu0 %v1814
        %v1850 = vpop.f32.mrf.mxu0
        %v1851 = vadd.f32 %v1799, %v1850
        %v1852 = vpop.f32.mrf.mxu0
        %v1853 = vpop.f32.mrf.mxu0
        %v1854 = vadd.f32 %v1799, %v1853
        %v1855 = vpop.f32.mrf.mxu0
        %1856 = vdwg.mxu0
        %v1857 = vmul.f32 %v1851, 0.5
        %v1858 = vmul.f32 %v1854, 0.5
        %v1859 = vmul.f32 %v1851, 0.70710677
        %v1860 = vmul.f32 %v1854, 0.70710677
        %v1861 = verf.f32.pop %v1859
        %v1862 = verf.f32.pop %v1860
        %v1863 = vadd.f32 %v1861, 1.0
        %v1864 = vadd.f32 %v1862, 1.0
        %v1865 = vmul.f32 %v1857, %v1863
        %v1866 = vmul.f32 %v1858, %v1864
        %v1867 = vpack.c.bf16 %v1866, %v1865
        %v1868 = vld [vmem:[%s9] sm:$0xf]
        %v1869 = vld [vmem:[%s10] sm:$0x1]
        %v1871 = vlaneseq
        %v1872 = vshrl.u32 %v1871, 7
        %v1873 = vsub.s32 0, %v1872
        %v1874 = vrot.slane %v1869, %v1873
        %v1877 = vsel %vm783, %v1867, 0
        %v1880 = vsel %vm907, %v1868, 0
        %1882 = vmatprep.subr.bf16.mxu0 0
        %1883 = vmatpush1.bf16.msra.mxu0 0
        %1884 = vmatprep.subr.bf16.mxu0 0
        %1885 = vmatpush1.bf16.msra.mxu0 0
        %1886 = vmatprep.subr.bf16.mxu0 0
        %1887 = vmatpush1.bf16.msra.mxu0 0
        %1888 = vmatprep.subr.bf16.mxu0 0
        %1889 = vmatpush1.bf16.msra.mxu0 0
        %1890 = vmatprep.subr.bf16.mxu0 0
        %1891 = vmatpush1.bf16.msra.mxu0 0
        %1892 = vmatprep.subr.bf16.mxu0 0
        %1893 = vmatpush1.bf16.msra.mxu0 0
        %1894 = vmatprep.subr.bf16.mxu0 0
        %1895 = vmatpush1.bf16.msra.mxu0 0
        %1896 = vmatprep.subr.bf16.mxu0 0
        %1897 = vmatpush1.bf16.msra.mxu0 %v1880
        %1898 = vmatprep.subr.bf16.mxu0 0
        %1899 = vmatpush2.bf16.msra.mxu0 0
        %1900 = vmatprep.subr.bf16.mxu0 0
        %1901 = vmatpush2.bf16.msra.mxu0 0
        %1902 = vmatprep.subr.bf16.mxu0 0
        %1903 = vmatpush2.bf16.msra.mxu0 0
        %1904 = vmatprep.subr.bf16.mxu0 0
        %1905 = vmatpush2.bf16.msra.mxu0 0
        %1906 = vmatprep.subr.bf16.mxu0 0
        %1907 = vmatpush2.bf16.msra.mxu0 0
        %1908 = vmatprep.subr.bf16.mxu0 0
        %1909 = vmatpush2.bf16.msra.mxu0 0
        %1910 = vmatprep.subr.bf16.mxu0 0
        %1911 = vmatpush2.bf16.msra.mxu0 0
        %1912 = vmatprep.subr.bf16.mxu0 0
        %1913 = vmatpush2.bf16.msra.mxu0 0
        %1914 = vmatprep.mubr.bf16.mxu0 0
        %1915 = vmatmul.mubr.bf16.gmra.mxu0 %v1877
        %v1916 = vpop.f32.mrf.mxu0
        %v1917 = vadd.f32 %v1874, %v1916
        %v1918 = vpop.f32.mrf.mxu0
        %v1919 = vpop.f32.mrf.mxu0
        %v1920 = vadd.f32 %v1874, %v1919
        %v1921 = vpop.f32.mrf.mxu0
        %1922 = vdwg.mxu0
        %v1923 = vadd.f32 %v659, %v1783
        %v1924 = vadd.f32 %v660, %v1786
        %v1925 = vadd.f32 %v1923, %v1917
        %v1926 = vadd.f32 %v1924, %v1920
        %v1927 = vld [vmem:[%s11] sm:$0x1]
        %v1928 = vld [vmem:[%s12] sm:$0x1]
        %v1929 = vsel %vm663, %v1925, 0.0
        %1930 = vadd.xlane.f32.xlu0 %v1929
        %v1931 = vpop.xlane.xlu0 %1930
        %v1932 = vsel %vm663, %v1926, 0.0
        %1933 = vadd.xlane.f32.xlu0 %v1932
        %v1934 = vpop.xlane.xlu0 %1933
        %v1935 = vmul.f32 %v1931, %v670
        %v1936 = vmul.f32 %v1934, %v670
        %v1937 = vsub.f32 %v1925, %v1935
        %v1938 = vsub.f32 %v1926, %v1936
        %v1939 = vmul.f32 %v1937, %v1937
        %v1940 = vmul.f32 %v1938, %v1938
        %v1941 = vsel %vm663, %v1939, 0.0
        %1942 = vadd.xlane.f32.xlu0 %v1941
        %v1943 = vpop.xlane.xlu0 %1942
        %v1944 = vsel %vm663, %v1940, 0.0
        %1945 = vadd.xlane.f32.xlu0 %v1944
        %v1946 = vpop.xlane.xlu0 %1945
        %v1947 = vmul.f32 %v1943, %v670
        %v1948 = vmul.f32 %v1946, %v670
        %v1949 = vadd.f32 %v1947, 1e-05
        %v1950 = vadd.f32 %v1948, 1e-05
        %v1951 = vrsqrt.pop %v1949
        %v1952 = vrsqrt.pop %v1950
        %v1953 = vmul.f32 %v1937, %v1951
        %v1954 = vmul.f32 %v1938, %v1952
        %v1956 = vlaneseq
        %v1957 = vshrl.u32 %v1956, 7
        %v1958 = vsub.s32 0, %v1957
        %v1959 = vrot.slane %v1927, %v1958
        %v1961 = vmul.f32 %v1953, %v1959
        %v1962 = vmul.f32 %v1954, %v1959
        %v1964 = vlaneseq
        %v1965 = vshrl.u32 %v1964, 7
        %v1966 = vsub.s32 0, %v1965
        %v1967 = vrot.slane %v1928, %v1966
        %v1969 = vadd.f32 %v1961, %v1967
        %v1970 = vadd.f32 %v1962, %v1967
        %v1971 = vpack.c.bf16 %v1970, %v1969
        %v1972 = vld [vmem:[%s13] sm:$0xf]
        %v1973 = vld [vmem:[%s13 + $0x4] sm:$0xf]
        %v1974 = vld [vmem:[%s13 + $0x8] sm:$0xf]
        %v1975 = vld [vmem:[%s13 + $0xc] sm:$0xf]
        %v1976 = vld [vmem:[%s14] sm:$0x1]
        %v1978 = vlaneseq
        %v1979 = vshrl.u32 %v1978, 7
        %v1980 = vsub.s32 0, %v1979
        %v1981 = vrot.slane %v1976, %v1980
        %v1987 = vunpack.c.l.b16 %v1972
        %v1988 = vunpack.c.l.b16 %v1973
        %v1989 = vunpack.c.l.b16 %v1974
        %v1990 = vunpack.c.l.b16 %v1975
        %v1991 = vpack.c.b16 %v1988, %v1987
        %v1992 = vpack.c.b16 %v1990, %v1989
        %v1996 = vsel %vm663, %v1971, 0
        %1998 = vmatprep.subr.bf16.mxu0 0
        %1999 = vmatpush1.bf16.msra.mxu0 0
        %2000 = vmatprep.subr.bf16.mxu0 0
        %2001 = vmatpush1.bf16.msra.mxu0 0
        %2002 = vmatprep.subr.bf16.mxu0 0
        %2003 = vmatpush1.bf16.msra.mxu0 0
        %2004 = vmatprep.subr.bf16.mxu0 0
        %2005 = vmatpush1.bf16.msra.mxu0 0
        %2006 = vmatprep.subr.bf16.mxu0 0
        %2007 = vmatpush1.bf16.msra.mxu0 0
        %2008 = vmatprep.subr.bf16.mxu0 0
        %2009 = vmatpush1.bf16.msra.mxu0 0
        %2010 = vmatprep.subr.bf16.mxu0 0
        %2011 = vmatpush1.bf16.msra.mxu0 %v1992
        %2012 = vmatprep.subr.bf16.mxu0 0
        %2013 = vmatpush1.bf16.msra.mxu0 %v1991
        %2014 = vmatprep.subr.bf16.mxu0 0
        %2015 = vmatpush2.bf16.msra.mxu0 0
        %2016 = vmatprep.subr.bf16.mxu0 0
        %2017 = vmatpush2.bf16.msra.mxu0 0
        %2018 = vmatprep.subr.bf16.mxu0 0
        %2019 = vmatpush2.bf16.msra.mxu0 0
        %2020 = vmatprep.subr.bf16.mxu0 0
        %2021 = vmatpush2.bf16.msra.mxu0 0
        %2022 = vmatprep.subr.bf16.mxu0 0
        %2023 = vmatpush2.bf16.msra.mxu0 0
        %2024 = vmatprep.subr.bf16.mxu0 0
        %2025 = vmatpush2.bf16.msra.mxu0 0
        %2026 = vmatprep.subr.bf16.mxu0 0
        %2027 = vmatpush2.bf16.msra.mxu0 0
        %2028 = vmatprep.subr.bf16.mxu0 0
        %2029 = vmatpush2.bf16.msra.mxu0 0
        %2030 = vmatprep.mubr.bf16.mxu0 0
        %2031 = vmatmul.mubr.bf16.gmra.mxu0 %v1996
        %v2032 = vpop.f32.mrf.mxu0
        %v2033 = vadd.f32 %v1981, %v2032
        %v2034 = vpop.f32.mrf.mxu0
        %v2035 = vpop.f32.mrf.mxu0
        %v2036 = vadd.f32 %v1981, %v2035
        %v2037 = vpop.f32.mrf.mxu0
        %2038 = vdwg.mxu0
        %v2039 = vmul.f32 %v2033, 1.702
        %v2040 = vmul.f32 %v2036, 1.702
        %v2041 = vxor.u32 %v2039, 2147483648
        %v2042 = vxor.u32 %v2040, 2147483648
        %v2043 = vmul.f32 %v2041, 1.442695
        %v2044 = vpow.pop %v2043
        %v2045 = vmul.f32 %v2042, 1.442695
        %v2046 = vpow.pop %v2045
        %v2047 = vadd.f32 %v2044, 1.0
        %v2048 = vadd.f32 %v2046, 1.0
        %v2049 = vrcp.pop %v2047
        %v2050 = vmul.f32 1.0, %v2049
        %v2051 = vrcp.pop %v2048
        %v2052 = vmul.f32 1.0, %v2051
        %v2053 = vmul.f32 %v2033, %v2050
        %v2054 = vmul.f32 %v2036, %v2052
        %v2055 = vpack.c.bf16 %v2054, %v2053
        %v2056 = vld [vmem:[%s15] sm:$0xf]
        %v2057 = vld [vmem:[%s15 + $0x4] sm:$0xf]
        %v2058 = vld [vmem:[%s15 + $0x8] sm:$0xf]
        %v2059 = vld [vmem:[%s15 + $0xc] sm:$0xf]
        %v2060 = vld [vmem:[%s15 + $0x10] sm:$0xf]
        %v2061 = vld [vmem:[%s15 + $0x14] sm:$0xf]
        %v2062 = vld [vmem:[%s15 + $0x18] sm:$0xf]
        %v2063 = vld [vmem:[%s15 + $0x1c] sm:$0xf]
        %v2064 = vld [vmem:[%s15 + $0x20] sm:$0xf]
        %v2065 = vld [vmem:[%s15 + $0x24] sm:$0xf]
        %v2066 = vld [vmem:[%s15 + $0x28] sm:$0xf]
        %v2067 = vld [vmem:[%s15 + $0x2c] sm:$0xf]
        %v2068 = vld [vmem:[%s15 + $0x30] sm:$0xf]
        %v2069 = vld [vmem:[%s15 + $0x34] sm:$0xf]
        %v2070 = vld [vmem:[%s15 + $0x38] sm:$0xf]
        %v2071 = vld [vmem:[%s15 + $0x3c] sm:$0xf]
        %v2072 = vld [vmem:[%s16] sm:$0x1]
        %v2074 = vlaneseq
        %v2075 = vshrl.u32 %v2074, 7
        %v2076 = vsub.s32 0, %v2075
        %v2077 = vrot.slane %v2072, %v2076
        %v2095 = vunpack.c.l.b16 %v2056
        %v2096 = vunpack.c.l.b16 %v2057
        %v2097 = vunpack.c.l.b16 %v2058
        %v2098 = vunpack.c.l.b16 %v2059
        %v2099 = vunpack.c.l.b16 %v2060
        %v2100 = vunpack.c.l.b16 %v2061
        %v2101 = vunpack.c.l.b16 %v2062
        %v2102 = vunpack.c.l.b16 %v2063
        %v2103 = vunpack.c.l.b16 %v2064
        %v2104 = vunpack.c.l.b16 %v2065
        %v2105 = vunpack.c.l.b16 %v2066
        %v2106 = vunpack.c.l.b16 %v2067
        %v2107 = vunpack.c.l.b16 %v2068
        %v2108 = vunpack.c.l.b16 %v2069
        %v2109 = vunpack.c.l.b16 %v2070
        %v2110 = vunpack.c.l.b16 %v2071
        %v2111 = vpack.c.b16 %v2096, %v2095
        %v2112 = vpack.c.b16 %v2098, %v2097
        %v2113 = vpack.c.b16 %v2100, %v2099
        %v2114 = vpack.c.b16 %v2102, %v2101
        %v2115 = vpack.c.b16 %v2104, %v2103
        %v2116 = vpack.c.b16 %v2106, %v2105
        %v2117 = vpack.c.b16 %v2108, %v2107
        %v2118 = vpack.c.b16 %v2110, %v2109
        %2127 = vmatprep.subr.bf16.mxu0 0
        %2128 = vmatpush1.bf16.msra.mxu0 %v2118
        %2129 = vmatprep.subr.bf16.mxu0 0
        %2130 = vmatpush1.bf16.msra.mxu0 %v2117
        %2131 = vmatprep.subr.bf16.mxu0 0
        %2132 = vmatpush1.bf16.msra.mxu0 %v2116
        %2133 = vmatprep.subr.bf16.mxu0 0
        %2134 = vmatpush1.bf16.msra.mxu0 %v2115
        %2135 = vmatprep.subr.bf16.mxu0 0
        %2136 = vmatpush1.bf16.msra.mxu0 %v2114
        %2137 = vmatprep.subr.bf16.mxu0 0
        %2138 = vmatpush1.bf16.msra.mxu0 %v2113
        %2139 = vmatprep.subr.bf16.mxu0 0
        %2140 = vmatpush1.bf16.msra.mxu0 %v2112
        %2141 = vmatprep.subr.bf16.mxu0 0
        %2142 = vmatpush1.bf16.msra.mxu0 %v2111
        %2143 = vmatprep.subr.bf16.mxu0 0
        %2144 = vmatpush2.bf16.msra.mxu0 0
        %2145 = vmatprep.subr.bf16.mxu0 0
        %2146 = vmatpush2.bf16.msra.mxu0 0
        %2147 = vmatprep.subr.bf16.mxu0 0
        %2148 = vmatpush2.bf16.msra.mxu0 0
        %2149 = vmatprep.subr.bf16.mxu0 0
        %2150 = vmatpush2.bf16.msra.mxu0 0
        %2151 = vmatprep.subr.bf16.mxu0 0
        %2152 = vmatpush2.bf16.msra.mxu0 0
        %2153 = vmatprep.subr.bf16.mxu0 0
        %2154 = vmatpush2.bf16.msra.mxu0 0
        %2155 = vmatprep.subr.bf16.mxu0 0
        %2156 = vmatpush2.bf16.msra.mxu0 0
        %2157 = vmatprep.subr.bf16.mxu0 0
        %2158 = vmatpush2.bf16.msra.mxu0 0
        %2159 = vmatprep.mubr.bf16.mxu0 0
        %2160 = vmatmul.mubr.bf16.gmra.mxu0 %v2055
        %v2161 = vpop.f32.mrf.mxu0
        %v2162 = vadd.f32 %v2077, %v2161
        %v2163 = vpop.f32.mrf.mxu0
        %v2164 = vpop.f32.mrf.mxu0
        %v2165 = vadd.f32 %v2077, %v2164
        %v2166 = vpop.f32.mrf.mxu0
        %2167 = vdwg.mxu0
        %v2168 = vld [vmem:[%s17] sm:$0xf]
        %v2169 = vld [vmem:[%s17 + $0x4] sm:$0xf]
        %v2170 = vld [vmem:[%s17 + $0x8] sm:$0xf]
        %v2171 = vld [vmem:[%s17 + $0xc] sm:$0xf]
        %v2172 = vld [vmem:[%s18] sm:$0x1]
        %v2174 = vlaneseq
        %v2175 = vshrl.u32 %v2174, 7
        %v2176 = vsub.s32 0, %v2175
        %v2177 = vrot.slane %v2172, %v2176
        %v2183 = vunpack.c.l.b16 %v2168
        %v2184 = vunpack.c.l.b16 %v2169
        %v2185 = vunpack.c.l.b16 %v2170
        %v2186 = vunpack.c.l.b16 %v2171
        %v2187 = vpack.c.b16 %v2184, %v2183
        %v2188 = vpack.c.b16 %v2186, %v2185
        %2191 = vmatprep.subr.bf16.mxu0 0
        %2192 = vmatpush1.bf16.msra.mxu0 0
        %2193 = vmatprep.subr.bf16.mxu0 0
        %2194 = vmatpush1.bf16.msra.mxu0 0
        %2195 = vmatprep.subr.bf16.mxu0 0
        %2196 = vmatpush1.bf16.msra.mxu0 0
        %2197 = vmatprep.subr.bf16.mxu0 0
        %2198 = vmatpush1.bf16.msra.mxu0 0
        %2199 = vmatprep.subr.bf16.mxu0 0
        %2200 = vmatpush1.bf16.msra.mxu0 0
        %2201 = vmatprep.subr.bf16.mxu0 0
        %2202 = vmatpush1.bf16.msra.mxu0 0
        %2203 = vmatprep.subr.bf16.mxu0 0
        %2204 = vmatpush1.bf16.msra.mxu0 %v2188
        %2205 = vmatprep.subr.bf16.mxu0 0
        %2206 = vmatpush1.bf16.msra.mxu0 %v2187
        %2207 = vmatprep.subr.bf16.mxu0 0
        %2208 = vmatpush2.bf16.msra.mxu0 0
        %2209 = vmatprep.subr.bf16.mxu0 0
        %2210 = vmatpush2.bf16.msra.mxu0 0
        %2211 = vmatprep.subr.bf16.mxu0 0
        %2212 = vmatpush2.bf16.msra.mxu0 0
        %2213 = vmatprep.subr.bf16.mxu0 0
        %2214 = vmatpush2.bf16.msra.mxu0 0
        %2215 = vmatprep.subr.bf16.mxu0 0
        %2216 = vmatpush2.bf16.msra.mxu0 0
        %2217 = vmatprep.subr.bf16.mxu0 0
        %2218 = vmatpush2.bf16.msra.mxu0 0
        %2219 = vmatprep.subr.bf16.mxu0 0
        %2220 = vmatpush2.bf16.msra.mxu0 0
        %2221 = vmatprep.subr.bf16.mxu0 0
        %2222 = vmatpush2.bf16.msra.mxu0 0
        %2223 = vmatprep.mubr.bf16.mxu0 0
        %2224 = vmatmul.mubr.bf16.gmra.mxu0 %v1996
        %v2225 = vpop.f32.mrf.mxu0
        %v2226 = vadd.f32 %v2177, %v2225
        %v2227 = vpop.f32.mrf.mxu0
        %v2228 = vpop.f32.mrf.mxu0
        %v2229 = vadd.f32 %v2177, %v2228
        %v2230 = vpop.f32.mrf.mxu0
        %2231 = vdwg.mxu0
        %v2232 = vmul.f32 %v2226, 0.5
        %v2233 = vmul.f32 %v2229, 0.5
        %v2234 = vmul.f32 %v2226, 0.70710677
        %v2235 = vmul.f32 %v2229, 0.70710677
        %v2236 = verf.f32.pop %v2234
        %v2237 = verf.f32.pop %v2235
        %v2238 = vadd.f32 %v2236, 1.0
        %v2239 = vadd.f32 %v2237, 1.0
        %v2240 = vmul.f32 %v2232, %v2238
        %v2241 = vmul.f32 %v2233, %v2239
        %v2242 = vpack.c.bf16 %v2241, %v2240
        %v2243 = vld [vmem:[%s19] sm:$0xf]
        %v2244 = vld [vmem:[%s20] sm:$0x1]
        %v2246 = vlaneseq
        %v2247 = vshrl.u32 %v2246, 7
        %v2248 = vsub.s32 0, %v2247
        %v2249 = vrot.slane %v2244, %v2248
        %v2252 = vsel %vm783, %v2242, 0
        %v2255 = vsel %vm907, %v2243, 0
        %2257 = vmatprep.subr.bf16.mxu0 0
        %2258 = vmatpush1.bf16.msra.mxu0 0
        %2259 = vmatprep.subr.bf16.mxu0 0
        %2260 = vmatpush1.bf16.msra.mxu0 0
        %2261 = vmatprep.subr.bf16.mxu0 0
        %2262 = vmatpush1.bf16.msra.mxu0 0
        %2263 = vmatprep.subr.bf16.mxu0 0
        %2264 = vmatpush1.bf16.msra.mxu0 0
        %2265 = vmatprep.subr.bf16.mxu0 0
        %2266 = vmatpush1.bf16.msra.mxu0 0
        %2267 = vmatprep.subr.bf16.mxu0 0
        %2268 = vmatpush1.bf16.msra.mxu0 0
        %2269 = vmatprep.subr.bf16.mxu0 0
        %2270 = vmatpush1.bf16.msra.mxu0 0
        %2271 = vmatprep.subr.bf16.mxu0 0
        %2272 = vmatpush1.bf16.msra.mxu0 %v2255
        %2273 = vmatprep.subr.bf16.mxu0 0
        %2274 = vmatpush2.bf16.msra.mxu0 0
        %2275 = vmatprep.subr.bf16.mxu0 0
        %2276 = vmatpush2.bf16.msra.mxu0 0
        %2277 = vmatprep.subr.bf16.mxu0 0
        %2278 = vmatpush2.bf16.msra.mxu0 0
        %2279 = vmatprep.subr.bf16.mxu0 0
        %2280 = vmatpush2.bf16.msra.mxu0 0
        %2281 = vmatprep.subr.bf16.mxu0 0
        %2282 = vmatpush2.bf16.msra.mxu0 0
        %2283 = vmatprep.subr.bf16.mxu0 0
        %2284 = vmatpush2.bf16.msra.mxu0 0
        %2285 = vmatprep.subr.bf16.mxu0 0
        %2286 = vmatpush2.bf16.msra.mxu0 0
        %2287 = vmatprep.subr.bf16.mxu0 0
        %2288 = vmatpush2.bf16.msra.mxu0 0
        %2289 = vmatprep.mubr.bf16.mxu0 0
        %2290 = vmatmul.mubr.bf16.gmra.mxu0 %v2252
        %v2291 = vpop.f32.mrf.mxu0
        %v2292 = vadd.f32 %v2249, %v2291
        %v2293 = vpop.f32.mrf.mxu0
        %v2294 = vpop.f32.mrf.mxu0
        %v2295 = vadd.f32 %v2249, %v2294
        %v2296 = vpop.f32.mrf.mxu0
        %2297 = vdwg.mxu0
        %v2298 = vadd.f32 %v1925, %v2162
        %v2299 = vadd.f32 %v1926, %v2165
        %v2300 = vmul.f32 %v2292, 0.5
        %v2301 = vmul.f32 %v2295, 0.5
        %v2302 = vadd.f32 %v2298, %v2300
        %v2303 = vadd.f32 %v2299, %v2301
        %2304 = vst.msk [vmem:[%s650] sm:$0xff] %vm663, %v2302
        %2305 = vst.msk [vmem:[%s650 + $0x8] sm:$0xff] %vm663, %v2303
        %s2306 = sand.u32 %s489, 1
        %s2307 = scalar_lea.sflag [#allocation4], %s2306
        %s2308 = sand.u32 %s489, 1
        %s2309 = smul.addr %s2308, 16
        %s2310 = scalar_lea.vmem [#allocation3], %s2309
        // Predicated region
        $region105: #{tpu_custom_call.1} parent=103 // pred_check
          %p2311 = pneg %p499
        $region106: #{tpu_custom_call.1} parent=103 // pred_check_branch
          %2313 = sbr.rel (%p2311) target = $region108
        $region107: #{tpu_custom_call.1} parent=103 // pred_region
          %s2314 = smul.u32 2, %s35
          %s2316 = ssub.s32 256, 256
          %2317 = vsyncadd %s2307, %s2316
          %s2318 = smul.addr %s2314, 128
          %s2319 = scalar_lea.hbm %s21, %s2318
          %s2320 = sshll.u32 %s2310, 4
          %s2321 = int_to_ptr.vmem [resolvable:$true] %s2320
          %2326 = dma.vmem_to_hbm [thread:$0]  %s2321, 256, %s2319, %s2307, 128, 128, 8
        $region108: #{tpu_custom_call.1} parent=103 // pred_fallthru
          _
      $region104: #{tpu_custom_call.1} parent=5 // pred_fallthru
        _
      %p2327 = scmp.le.s32.totalorder 2, %s30
      // Predicated region
      $region109: #{tpu_custom_call.1} parent=5 // pred_check
        %p2328 = pneg %p2327
      $region110: #{tpu_custom_call.1} parent=5 // pred_check_branch
        %2330 = sbr.rel (%p2328) target = $region112
      $region111: #{tpu_custom_call.1} parent=5 // pred_region
        %s2331 = ssub.s32 %s30, 2
        // Predicated region
        $region113: #{tpu_custom_call.1} parent=111 // pred_check
          %p2332 = pneg %p505
        $region114: #{tpu_custom_call.1} parent=111 // pred_check_branch
          %2334 = sbr.rel (%p2332) target = $region116
        $region115: #{tpu_custom_call.1} parent=111 // pred_region
          %s2335 = sand.u32 %s490, 1
          %s2336 = scalar_lea.sflag [#allocation4], %s2335
          %s2337 = sand.u32 %s490, 1
          %s2338 = smul.addr %s2337, 16
          %s2339 = scalar_lea.vmem [#allocation3], %s2338
          %2340 = dma.done %s2336, 256
        $region116: #{tpu_custom_call.1} parent=111 // pred_fallthru
          _
      $region112: #{tpu_custom_call.1} parent=5 // pred_fallthru
        _
    $region6: #{tpu_custom_call.1} parent=1 // loop_footer
      %s34 = sadd.s32 1, %s30
    $region7: #{tpu_custom_call.1} parent=1 // loop_footer_branch
      %29 = sbr.rel target = $region3
    $region8: #{tpu_custom_call.1} parent=1 // loop_exit
      _
    %2341 = vsyncpa [#allocation4], 1
    %s2342 = scalar_lea.sflag [#allocation4], 1
    %2343 = vsyncpa %s2342, 1

// kernel: tpu_custom_call.1
$region0: #{tpu_custom_call.1}
  #allocation0 [shape = 'u32[]', space=smem, size = 0x4, offset = 0x4, fixed_abs, tag = 'smem constant byte address 0x4 - core index']
  #allocation1 [shape = 'u32[144,128]{1,0:T(1,128)}', space=vmem, size = 0x12000, scoped, tag = 'internal scratch']
  #allocation2 [shape = 'bf16[16,32]{1,0:T(8,128)(2,1)}', space=vmem, size = 0x1000, scoped, tag = 'scratch operand']
  %s0 = inlined_call_operand.vmem [shape: f32[32,32], index: 0, kind: input, shape index: {}]
  %s1 = inlined_call_operand.vmem [shape: f32[1,32], index: 1, kind: input, shape index: {}]
  %s2 = inlined_call_operand.vmem [shape: f32[1,32], index: 2, kind: input, shape index: {}]
  %s3 = inlined_call_operand.vmem [shape: bf16[32,96], index: 3, kind: input, shape index: {}]
  %s4 = inlined_call_operand.vmem [shape: f32[1,96], index: 4, kind: input, shape index: {}]
  %s5 = inlined_call_operand.vmem [shape: bf16[32,32], index: 5, kind: input, shape index: {}]
  %s6 = inlined_call_operand.vmem [shape: f32[1,32], index: 6, kind: input, shape index: {}]
  %s7 = inlined_call_operand.vmem [shape: bf16[32,8], index: 7, kind: input, shape index: {}]
  %s8 = inlined_call_operand.vmem [shape: f32[1,8], index: 8, kind: input, shape index: {}]
  %s9 = inlined_call_operand.vmem [shape: bf16[8,32], index: 9, kind: input, shape index: {}]
  %s10 = inlined_call_operand.vmem [shape: f32[1,32], index: 10, kind: input, shape index: {}]
  %s11 = inlined_call_operand.vmem [shape: f32[1,32], index: 11, kind: input, shape index: {}]
  %s12 = inlined_call_operand.vmem [shape: f32[1,32], index: 12, kind: input, shape index: {}]
  %s13 = inlined_call_operand.vmem [shape: bf16[32,128], index: 13, kind: input, shape index: {}]
  %s14 = inlined_call_operand.vmem [shape: f32[1,128], index: 14, kind: input, shape index: {}]
  %s15 = inlined_call_operand.vmem [shape: bf16[128,32], index: 15, kind: input, shape index: {}]
  %s16 = inlined_call_operand.vmem [shape: f32[1,32], index: 16, kind: input, shape index: {}]
  %s17 = inlined_call_operand.vmem [shape: bf16[32,8], index: 17, kind: input, shape index: {}]
  %s18 = inlined_call_operand.vmem [shape: f32[1,8], index: 18, kind: input, shape index: {}]
  %s19 = inlined_call_operand.vmem [shape: bf16[8,32], index: 19, kind: input, shape index: {}]
  %s20 = inlined_call_operand.vmem [shape: f32[1,32], index: 20, kind: input, shape index: {}]
  %s21 = inlined_call_operand.hbm [shape: f32[32,32], index: 21, kind: output, shape index: {}]
  %s22 = sld [smem:[#allocation0]]
  $region117: #{tpu_custom_call.1} parent=0
    _
  %s24 = ssub.s32 1, %s22
  %s25 = scalar_select 0, %s24, %s22
  $region1: #{tpu_custom_call.1} parent=0
    #allocation3 [shape = 'u8[16384]{0}', space=vmem, size = 0x4000, scoped, tag = 'output window, operand 0']
    #allocation4 [shape = 's32[2]{0}', space=sflag, size = 0x8, scoped, tag = 'scoped memory for tpu_custom_call.1']
    %26 = vsyncpa [#allocation4], 0
    %s27 = scalar_lea.sflag [#allocation4], 1
    %28 = vsyncpa %s27, 0
    loop: start=0, step=1, limit=4
    $region2: #{tpu_custom_call.1} parent=1 // loop_pre_header
      _
    $region3: #{tpu_custom_call.1} parent=1 // loop_header
      %s30 = sphi 0, %s34
      %p31 = scmp.ge.s32.totalorder %s30, 4
      %s40 = sphi 0, %s42
      %s43 = sphi 0, %s40
      %s44 = sphi 0, %s43
      %s60 = sphi 0, %s44
      %s64 = sphi 0, %s64
      %s66 = sphi 0, %s64
      %s67 = sphi 0, %s66
      %s81 = sphi 0, %s67
      %s85 = sphi 0, %s85
      %s87 = sphi 0, %s85
      %s88 = sphi 0, %s87
      %s102 = sphi 0, %s88
      %s106 = sphi 0, %s106
      %s108 = sphi 0, %s106
      %s109 = sphi 0, %s108
      %s123 = sphi 0, %s109
      %s127 = sphi 0, %s127
      %s129 = sphi 0, %s127
      %s130 = sphi 0, %s129
      %s144 = sphi 0, %s130
      %s148 = sphi 0, %s148
      %s150 = sphi 0, %s148
      %s151 = sphi 0, %s150
      %s165 = sphi 0, %s151
      %s169 = sphi 0, %s169
      %s171 = sphi 0, %s169
      %s172 = sphi 0, %s171
      %s186 = sphi 0, %s172
      %s190 = sphi 0, %s190
      %s192 = sphi 0, %s190
      %s193 = sphi 0, %s192
      %s207 = sphi 0, %s193
      %s211 = sphi 0, %s211
      %s213 = sphi 0, %s211
      %s214 = sphi 0, %s213
      %s228 = sphi 0, %s214
      %s232 = sphi 0, %s232
      %s234 = sphi 0, %s232
      %s235 = sphi 0, %s234
      %s249 = sphi 0, %s235
      %s253 = sphi 0, %s253
      %s255 = sphi 0, %s253
      %s256 = sphi 0, %s255
      %s270 = sphi 0, %s256
      %s274 = sphi 0, %s274
      %s276 = sphi 0, %s274
      %s277 = sphi 0, %s276
      %s291 = sphi 0, %s277
      %s295 = sphi 0, %s295
      %s297 = sphi 0, %s295
      %s298 = sphi 0, %s297
      %s312 = sphi 0, %s298
      %s316 = sphi 0, %s316
      %s318 = sphi 0, %s316
      %s319 = sphi 0, %s318
      %s333 = sphi 0, %s319
      %s337 = sphi 0, %s337
      %s339 = sphi 0, %s337
      %s340 = sphi 0, %s339
      %s354 = sphi 0, %s340
      %s358 = sphi 0, %s358
      %s360 = sphi 0, %s358
      %s361 = sphi 0, %s360
      %s375 = sphi 0, %s361
      %s379 = sphi 0, %s379
      %s381 = sphi 0, %s379
      %s382 = sphi 0, %s381
      %s396 = sphi 0, %s382
      %s400 = sphi 0, %s400
      %s402 = sphi 0, %s400
      %s403 = sphi 0, %s402
      %s417 = sphi 0, %s403
      %s421 = sphi 0, %s421
      %s423 = sphi 0, %s421
      %s424 = sphi 0, %s423
      %s438 = sphi 0, %s424
      %s442 = sphi 0, %s442
      %s444 = sphi 0, %s442
      %s445 = sphi 0, %s444
      %s459 = sphi 0, %s445
      %s463 = sphi 0, %s463
      %s465 = sphi 0, %s463
      %s466 = sphi 0, %s465
      %s480 = sphi 0, %s466
      %s486 = sphi 0, %s488
      %s489 = sphi 0, %s486
      %s490 = sphi 0, %s489
      %s506 = sphi 0, %s490
    $region4: #{tpu_custom_call.1} parent=1 // loop_header_branch
      %33 = sbr.rel (%p31) target = $region8
    $region5: #{tpu_custom_call.1} parent=1 // loop_body
      %s35 = ssub.s32 %s30, 1
      %s36 = ssub.s32 %s30, 2
      %s37 = sadd.s32 %s30, 1
      %s38 = ssub.s32 %s30, %s37
      %p39 = scmp.eq.s32.totalorder %s38, 0
      %s41 = sadd.s32 %s40, 1
      %s42 = scalar_select %p39, %s40, %s41
      %p45 = pneg %p39
      %p46 = scmp.eq.s32.totalorder %s30, 1
      %p47 = por %p45, %p46
      %p48 = scmp.ne.s32.totalorder %s40, %s43
      %p49 = scmp.eq.s32.totalorder %s30, 0
      %p50 = por %p48, %p49
      %p51 = scmp.ne.s32.totalorder %s40, %s43
      %p52 = scmp.eq.s32.totalorder %s35, 1
      %p53 = por %p51, %p52
      %p54 = scmp.ne.s32.totalorder %s43, %s44
      %p55 = scmp.eq.s32.totalorder %s35, 0
      %p56 = por %p54, %p55
      %p57 = scmp.ne.s32.totalorder %s43, %s44
      %p58 = scmp.eq.s32.totalorder %s36, 1
      %p59 = por %p57, %p58
      %p61 = scmp.ne.s32.totalorder %s44, %s60
      %p62 = scmp.eq.s32.totalorder %s36, 0
      %p63 = por %p61, %p62
      %s65 = sadd.s32 %s64, 1
      %p68 = scmp.eq.s32.totalorder %s30, 1
      %p69 = scmp.ne.s32.totalorder %s64, %s66
      %p70 = scmp.eq.s32.totalorder %s30, 0
      %p71 = por %p69, %p70
      %p72 = scmp.ne.s32.totalorder %s64, %s66
      %p73 = scmp.eq.s32.totalorder %s35, 1
      %p74 = por %p72, %p73
      %p75 = scmp.ne.s32.totalorder %s66, %s67
      %p76 = scmp.eq.s32.totalorder %s35, 0
      %p77 = por %p75, %p76
      %p78 = scmp.ne.s32.totalorder %s66, %s67
      %p79 = scmp.eq.s32.totalorder %s36, 1
      %p80 = por %p78, %p79
      %p82 = scmp.ne.s32.totalorder %s67, %s81
      %p83 = scmp.eq.s32.totalorder %s36, 0
      %p84 = por %p82, %p83
      %s86 = sadd.s32 %s85, 1
      %p89 = scmp.eq.s32.totalorder %s30, 1
      %p90 = scmp.ne.s32.totalorder %s85, %s87
      %p91 = scmp.eq.s32.totalorder %s30, 0
      %p92 = por %p90, %p91
      %p93 = scmp.ne.s32.totalorder %s85, %s87
      %p94 = scmp.eq.s32.totalorder %s35, 1
      %p95 = por %p93, %p94
      %p96 = scmp.ne.s32.totalorder %s87, %s88
      %p97 = scmp.eq.s32.totalorder %s35, 0
      %p98 = por %p96, %p97
      %p99 = scmp.ne.s32.totalorder %s87, %s88
      %p100 = scmp.eq.s32.totalorder %s36, 1
      %p101 = por %p99, %p100
      %p103 = scmp.ne.s32.totalorder %s88, %s102
      %p104 = scmp.eq.s32.totalorder %s36, 0
      %p105 = por %p103, %p104
      %s107 = sadd.s32 %s106, 1
      %p110 = scmp.eq.s32.totalorder %s30, 1
      %p111 = scmp.ne.s32.totalorder %s106, %s108
      %p112 = scmp.eq.s32.totalorder %s30, 0
      %p113 = por %p111, %p112
      %p114 = scmp.ne.s32.totalorder %s106, %s108
      %p115 = scmp.eq.s32.totalorder %s35, 1
      %p116 = por %p114, %p115
      %p117 = scmp.ne.s32.totalorder %s108, %s109
      %p118 = scmp.eq.s32.totalorder %s35, 0
      %p119 = por %p117, %p118
      %p120 = scmp.ne.s32.totalorder %s108, %s109
      %p121 = scmp.eq.s32.totalorder %s36, 1
      %p122 = por %p120, %p121
      %p124 = scmp.ne.s32.totalorder %s109, %s123
      %p125 = scmp.eq.s32.totalorder %s36, 0
      %p126 = por %p124, %p125
      %s128 = sadd.s32 %s127, 1
      %p131 = scmp.eq.s32.totalorder %s30, 1
      %p132 = scmp.ne.s32.totalorder %s127, %s129
      %p133 = scmp.eq.s32.totalorder %s30, 0
      %p134 = por %p132, %p133
      %p135 = scmp.ne.s32.totalorder %s127, %s129
      %p136 = scmp.eq.s32.totalorder %s35, 1
      %p137 = por %p135, %p136
      %p138 = scmp.ne.s32.totalorder %s129, %s130
      %p139 = scmp.eq.s32.totalorder %s35, 0
      %p140 = por %p138, %p139
      %p141 = scmp.ne.s32.totalorder %s129, %s130
      %p142 = scmp.eq.s32.totalorder %s36, 1
      %p143 = por %p141, %p142
      %p145 = scmp.ne.s32.totalorder %s130, %s144
      %p146 = scmp.eq.s32.totalorder %s36, 0
      %p147 = por %p145, %p146
      %s149 = sadd.s32 %s148, 1
      %p152 = scmp.eq.s32.totalorder %s30, 1
      %p153 = scmp.ne.s32.totalorder %s148, %s150
      %p154 = scmp.eq.s32.totalorder %s30, 0
      %p155 = por %p153, %p154
      %p156 = scmp.ne.s32.totalorder %s148, %s150
      %p157 = scmp.eq.s32.totalorder %s35, 1
      %p158 = por %p156, %p157
      %p159 = scmp.ne.s32.totalorder %s150, %s151
      %p160 = scmp.eq.s32.totalorder %s35, 0
      %p161 = por %p159, %p160
      %p162 = scmp.ne.s32.totalorder %s150, %s151
      %p163 = scmp.eq.s32.totalorder %s36, 1
      %p164 = por %p162, %p163
      %p166 = scmp.ne.s32.totalorder %s151, %s165
      %p167 = scmp.eq.s32.totalorder %s36, 0
      %p168 = por %p166, %p167
      %s170 = sadd.s32 %s169, 1
      %p173 = scmp.eq.s32.totalorder %s30, 1
      %p174 = scmp.ne.s32.totalorder %s169, %s171
      %p175 = scmp.eq.s32.totalorder %s30, 0
      %p176 = por %p174, %p175
      %p177 = scmp.ne.s32.totalorder %s169, %s171
      %p178 = scmp.eq.s32.totalorder %s35, 1
      %p179 = por %p177, %p178
      %p180 = scmp.ne.s32.totalorder %s171, %s172
      %p181 = scmp.eq.s32.totalorder %s35, 0
      %p182 = por %p180, %p181
      %p183 = scmp.ne.s32.totalorder %s171, %s172
      %p184 = scmp.eq.s32.totalorder %s36, 1
      %p185 = por %p183, %p184
      %p187 = scmp.ne.s32.totalorder %s172, %s186
      %p188 = scmp.eq.s32.totalorder %s36, 0
      %p189 = por %p187, %p188
      %s191 = sadd.s32 %s190, 1
      %p194 = scmp.eq.s32.totalorder %s30, 1
      %p195 = scmp.ne.s32.totalorder %s190, %s192
      %p196 = scmp.eq.s32.totalorder %s30, 0
      %p197 = por %p195, %p196
      %p198 = scmp.ne.s32.totalorder %s190, %s192
      %p199 = scmp.eq.s32.totalorder %s35, 1
      %p200 = por %p198, %p199
      %p201 = scmp.ne.s32.totalorder %s192, %s193
      %p202 = scmp.eq.s32.totalorder %s35, 0
      %p203 = por %p201, %p202
      %p204 = scmp.ne.s32.totalorder %s192, %s193
      %p205 = scmp.eq.s32.totalorder %s36, 1
      %p206 = por %p204, %p205
      %p208 = scmp.ne.s32.totalorder %s193, %s207
      %p209 = scmp.eq.s32.totalorder %s36, 0
      %p210 = por %p208, %p209
      %s212 = sadd.s32 %s211, 1
      %p215 = scmp.eq.s32.totalorder %s30, 1
      %p216 = scmp.ne.s32.totalorder %s211, %s213
      %p217 = scmp.eq.s32.totalorder %s30, 0
      %p218 = por %p216, %p217
      %p219 = scmp.ne.s32.totalorder %s211, %s213
      %p220 = scmp.eq.s32.totalorder %s35, 1
      %p221 = por %p219, %p220
      %p222 = scmp.ne.s32.totalorder %s213, %s214
      %p223 = scmp.eq.s32.totalorder %s35, 0
      %p224 = por %p222, %p223
      %p225 = scmp.ne.s32.totalorder %s213, %s214
      %p226 = scmp.eq.s32.totalorder %s36, 1
      %p227 = por %p225, %p226
      %p229 = scmp.ne.s32.totalorder %s214, %s228
      %p230 = scmp.eq.s32.totalorder %s36, 0
      %p231 = por %p229, %p230
      %s233 = sadd.s32 %s232, 1
      %p236 = scmp.eq.s32.totalorder %s30, 1
      %p237 = scmp.ne.s32.totalorder %s232, %s234
      %p238 = scmp.eq.s32.totalorder %s30, 0
      %p239 = por %p237, %p238
      %p240 = scmp.ne.s32.totalorder %s232, %s234
      %p241 = scmp.eq.s32.totalorder %s35, 1
      %p242 = por %p240, %p241
      %p243 = scmp.ne.s32.totalorder %s234, %s235
      %p244 = scmp.eq.s32.totalorder %s35, 0
      %p245 = por %p243, %p244
      %p246 = scmp.ne.s32.totalorder %s234, %s235
      %p247 = scmp.eq.s32.totalorder %s36, 1
      %p248 = por %p246, %p247
      %p250 = scmp.ne.s32.totalorder %s235, %s249
      %p251 = scmp.eq.s32.totalorder %s36, 0
      %p252 = por %p250, %p251
      %s254 = sadd.s32 %s253, 1
      %p257 = scmp.eq.s32.totalorder %s30, 1
      %p258 = scmp.ne.s32.totalorder %s253, %s255
      %p259 = scmp.eq.s32.totalorder %s30, 0
      %p260 = por %p258, %p259
      %p261 = scmp.ne.s32.totalorder %s253, %s255
      %p262 = scmp.eq.s32.totalorder %s35, 1
      %p263 = por %p261, %p262
      %p264 = scmp.ne.s32.totalorder %s255, %s256
      %p265 = scmp.eq.s32.totalorder %s35, 0
      %p266 = por %p264, %p265
      %p267 = scmp.ne.s32.totalorder %s255, %s256
      %p268 = scmp.eq.s32.totalorder %s36, 1
      %p269 = por %p267, %p268
      %p271 = scmp.ne.s32.totalorder %s256, %s270
      %p272 = scmp.eq.s32.totalorder %s36, 0
      %p273 = por %p271, %p272
      %s275 = sadd.s32 %s274, 1
      %p278 = scmp.eq.s32.totalorder %s30, 1
      %p279 = scmp.ne.s32.totalorder %s274, %s276
      %p280 = scmp.eq.s32.totalorder %s30, 0
      %p281 = por %p279, %p280
      %p282 = scmp.ne.s32.totalorder %s274, %s276
      %p283 = scmp.eq.s32.totalorder %s35, 1
      %p284 = por %p282, %p283
      %p285 = scmp.ne.s32.totalorder %s276, %s277
      %p286 = scmp.eq.s32.totalorder %s35, 0
      %p287 = por %p285, %p286
      %p288 = scmp.ne.s32.totalorder %s276, %s277
      %p289 = scmp.eq.s32.totalorder %s36, 1
      %p290 = por %p288, %p289
      %p292 = scmp.ne.s32.totalorder %s277, %s291
      %p293 = scmp.eq.s32.totalorder %s36, 0
      %p294 = por %p292, %p293
      %s296 = sadd.s32 %s295, 1
      %p299 = scmp.eq.s32.totalorder %s30, 1
      %p300 = scmp.ne.s32.totalorder %s295, %s297
      %p301 = scmp.eq.s32.totalorder %s30, 0
      %p302 = por %p300, %p301
      %p303 = scmp.ne.s32.totalorder %s295, %s297
      %p304 = scmp.eq.s32.totalorder %s35, 1
      %p305 = por %p303, %p304
      %p306 = scmp.ne.s32.totalorder %s297, %s298
      %p307 = scmp.eq.s32.totalorder %s35, 0
      %p308 = por %p306, %p307
      %p309 = scmp.ne.s32.totalorder %s297, %s298
      %p310 = scmp.eq.s32.totalorder %s36, 1
      %p311 = por %p309, %p310
      %p313 = scmp.ne.s32.totalorder %s298, %s312
      %p314 = scmp.eq.s32.totalorder %s36, 0
      %p315 = por %p313, %p314
      %s317 = sadd.s32 %s316, 1
      %p320 = scmp.eq.s32.totalorder %s30, 1
      %p321 = scmp.ne.s32.totalorder %s316, %s318
      %p322 = scmp.eq.s32.totalorder %s30, 0
      %p323 = por %p321, %p322
      %p324 = scmp.ne.s32.totalorder %s316, %s318
      %p325 = scmp.eq.s32.totalorder %s35, 1
      %p326 = por %p324, %p325
      %p327 = scmp.ne.s32.totalorder %s318, %s319
      %p328 = scmp.eq.s32.totalorder %s35, 0
      %p329 = por %p327, %p328
      %p330 = scmp.ne.s32.totalorder %s318, %s319
      %p331 = scmp.eq.s32.totalorder %s36, 1
      %p332 = por %p330, %p331
      %p334 = scmp.ne.s32.totalorder %s319, %s333
      %p335 = scmp.eq.s32.totalorder %s36, 0
      %p336 = por %p334, %p335
      %s338 = sadd.s32 %s337, 1
      %p341 = scmp.eq.s32.totalorder %s30, 1
      %p342 = scmp.ne.s32.totalorder %s337, %s339
      %p343 = scmp.eq.s32.totalorder %s30, 0
      %p344 = por %p342, %p343
      %p345 = scmp.ne.s32.totalorder %s337, %s339
      %p346 = scmp.eq.s32.totalorder %s35, 1
      %p347 = por %p345, %p346
      %p348 = scmp.ne.s32.totalorder %s339, %s340
      %p349 = scmp.eq.s32.totalorder %s35, 0
      %p350 = por %p348, %p349
      %p351 = scmp.ne.s32.totalorder %s339, %s340
      %p352 = scmp.eq.s32.totalorder %s36, 1
      %p353 = por %p351, %p352
      %p355 = scmp.ne.s32.totalorder %s340, %s354
      %p356 = scmp.eq.s32.totalorder %s36, 0
      %p357 = por %p355, %p356
      %s359 = sadd.s32 %s358, 1
      %p362 = scmp.eq.s32.totalorder %s30, 1
      %p363 = scmp.ne.s32.totalorder %s358, %s360
      %p364 = scmp.eq.s32.totalorder %s30, 0
      %p365 = por %p363, %p364
      %p366 = scmp.ne.s32.totalorder %s358, %s360
      %p367 = scmp.eq.s32.totalorder %s35, 1
      %p368 = por %p366, %p367
      %p369 = scmp.ne.s32.totalorder %s360, %s361
      %p370 = scmp.eq.s32.totalorder %s35, 0
      %p371 = por %p369, %p370
      %p372 = scmp.ne.s32.totalorder %s360, %s361
      %p373 = scmp.eq.s32.totalorder %s36, 1
      %p374 = por %p372, %p373
      %p376 = scmp.ne.s32.totalorder %s361, %s375
      %p377 = scmp.eq.s32.totalorder %s36, 0
      %p378 = por %p376, %p377
      %s380 = sadd.s32 %s379, 1
      %p383 = scmp.eq.s32.totalorder %s30, 1
      %p384 = scmp.ne.s32.totalorder %s379, %s381
      %p385 = scmp.eq.s32.totalorder %s30, 0
      %p386 = por %p384, %p385
      %p387 = scmp.ne.s32.totalorder %s379, %s381
      %p388 = scmp.eq.s32.totalorder %s35, 1
      %p389 = por %p387, %p388
      %p390 = scmp.ne.s32.totalorder %s381, %s382
      %p391 = scmp.eq.s32.totalorder %s35, 0
      %p392 = por %p390, %p391
      %p393 = scmp.ne.s32.totalorder %s381, %s382
      %p394 = scmp.eq.s32.totalorder %s36, 1
      %p395 = por %p393, %p394
      %p397 = scmp.ne.s32.totalorder %s382, %s396
      %p398 = scmp.eq.s32.totalorder %s36, 0
      %p399 = por %p397, %p398
      %s401 = sadd.s32 %s400, 1
      %p404 = scmp.eq.s32.totalorder %s30, 1
      %p405 = scmp.ne.s32.totalorder %s400, %s402
      %p406 = scmp.eq.s32.totalorder %s30, 0
      %p407 = por %p405, %p406
      %p408 = scmp.ne.s32.totalorder %s400, %s402
      %p409 = scmp.eq.s32.totalorder %s35, 1
      %p410 = por %p408, %p409
      %p411 = scmp.ne.s32.totalorder %s402, %s403
      %p412 = scmp.eq.s32.totalorder %s35, 0
      %p413 = por %p411, %p412
      %p414 = scmp.ne.s32.totalorder %s402, %s403
      %p415 = scmp.eq.s32.totalorder %s36, 1
      %p416 = por %p414, %p415
      %p418 = scmp.ne.s32.totalorder %s403, %s417
      %p419 = scmp.eq.s32.totalorder %s36, 0
      %p420 = por %p418, %p419
      %s422 = sadd.s32 %s421, 1
      %p425 = scmp.eq.s32.totalorder %s30, 1
      %p426 = scmp.ne.s32.totalorder %s421, %s423
      %p427 = scmp.eq.s32.totalorder %s30, 0
      %p428 = por %p426, %p427
      %p429 = scmp.ne.s32.totalorder %s421, %s423
      %p430 = scmp.eq.s32.totalorder %s35, 1
      %p431 = por %p429, %p430
      %p432 = scmp.ne.s32.totalorder %s423, %s424
      %p433 = scmp.eq.s32.totalorder %s35, 0
      %p434 = por %p432, %p433
      %p435 = scmp.ne.s32.totalorder %s423, %s424
      %p436 = scmp.eq.s32.totalorder %s36, 1
      %p437 = por %p435, %p436
      %p439 = scmp.ne.s32.totalorder %s424, %s438
      %p440 = scmp.eq.s32.totalorder %s36, 0
      %p441 = por %p439, %p440
      %s443 = sadd.s32 %s442, 1
      %p446 = scmp.eq.s32.totalorder %s30, 1
      %p447 = scmp.ne.s32.totalorder %s442, %s444
      %p448 = scmp.eq.s32.totalorder %s30, 0
      %p449 = por %p447, %p448
      %p450 = scmp.ne.s32.totalorder %s442, %s444
      %p451 = scmp.eq.s32.totalorder %s35, 1
      %p452 = por %p450, %p451
      %p453 = scmp.ne.s32.totalorder %s444, %s445
      %p454 = scmp.eq.s32.totalorder %s35, 0
      %p455 = por %p453, %p454
      %p456 = scmp.ne.s32.totalorder %s444, %s445
      %p457 = scmp.eq.s32.totalorder %s36, 1
      %p458 = por %p456, %p457
      %p460 = scmp.ne.s32.totalorder %s445, %s459
      %p461 = scmp.eq.s32.totalorder %s36, 0
      %p462 = por %p460, %p461
      %s464 = sadd.s32 %s463, 1
      %p467 = scmp.eq.s32.totalorder %s30, 1
      %p468 = scmp.ne.s32.totalorder %s463, %s465
      %p469 = scmp.eq.s32.totalorder %s30, 0
      %p470 = por %p468, %p469
      %p471 = scmp.ne.s32.totalorder %s463, %s465
      %p472 = scmp.eq.s32.totalorder %s35, 1
      %p473 = por %p471, %p472
      %p474 = scmp.ne.s32.totalorder %s465, %s466
      %p475 = scmp.eq.s32.totalorder %s35, 0
      %p476 = por %p474, %p475
      %p477 = scmp.ne.s32.totalorder %s465, %s466
      %p478 = scmp.eq.s32.totalorder %s36, 1
      %p479 = por %p477, %p478
      %p481 = scmp.ne.s32.totalorder %s466, %s480
      %p482 = scmp.eq.s32.totalorder %s36, 0
      %p483 = por %p481, %p482
      %s484 = ssub.s32 %s30, %s37
      %p485 = scmp.eq.s32.totalorder %s484, 0
      %s487 = sadd.s32 %s486, 1
      %s488 = scalar_select %p485, %s486, %s487
      %p491 = pneg %p485
      %p492 = scmp.eq.s32.totalorder %s30, 1
      %p493 = por %p491, %p492
      %p494 = scmp.ne.s32.totalorder %s486, %s489
      %p495 = scmp.eq.s32.totalorder %s30, 0
      %p496 = por %p494, %p495
      %p497 = scmp.ne.s32.totalorder %s486, %s489
      %p498 = scmp.eq.s32.totalorder %s35, 1
      %p499 = por %p497, %p498
      %p500 = scmp.ne.s32.totalorder %s489, %s490
      %p501 = scmp.eq.s32.totalorder %s35, 0
      %p502 = por %p500, %p501
      %p503 = scmp.ne.s32.totalorder %s489, %s490
      %p504 = scmp.eq.s32.totalorder %s36, 1
      %p505 = por %p503, %p504
      %p507 = scmp.ne.s32.totalorder %s490, %s506
      %p508 = scmp.eq.s32.totalorder %s36, 0
      %p509 = por %p507, %p508
      %p510 = scmp.le.s32.totalorder 1, %s30
      %p511 = scmp.lt.s32.totalorder %s30, 3
      %p512 = pnand %p510, %p511
      %p513 = pneg %p512
      // Predicated region
      $region9: #{tpu_custom_call.1} parent=5 // pred_check
        _
      $region10: #{tpu_custom_call.1} parent=5 // pred_check_branch
        %515 = sbr.rel (%p512) target = $region12
      $region11: #{tpu_custom_call.1} parent=5 // pred_region
        %s516 = ssub.s32 %s30, 1
        // Predicated region
        $region13: #{tpu_custom_call.1} parent=11 // pred_check
          %p517 = pneg %p77
        $region14: #{tpu_custom_call.1} parent=11 // pred_check_branch
          %519 = sbr.rel (%p517) target = $region16
        $region15: #{tpu_custom_call.1} parent=11 // pred_region
          _
        $region16: #{tpu_custom_call.1} parent=11 // pred_fallthru
          _
        // Predicated region
        $region17: #{tpu_custom_call.1} parent=11 // pred_check
          %p520 = pneg %p98
        $region18: #{tpu_custom_call.1} parent=11 // pred_check_branch
          %522 = sbr.rel (%p520) target = $region20
        $region19: #{tpu_custom_call.1} parent=11 // pred_region
          _
        $region20: #{tpu_custom_call.1} parent=11 // pred_fallthru
          _
        // Predicated region
        $region21: #{tpu_custom_call.1} parent=11 // pred_check
          %p523 = pneg %p119
        $region22: #{tpu_custom_call.1} parent=11 // pred_check_branch
          %525 = sbr.rel (%p523) target = $region24
        $region23: #{tpu_custom_call.1} parent=11 // pred_region
          _
        $region24: #{tpu_custom_call.1} parent=11 // pred_fallthru
          _
        // Predicated region
        $region25: #{tpu_custom_call.1} parent=11 // pred_check
          %p526 = pneg %p140
        $region26: #{tpu_custom_call.1} parent=11 // pred_check_branch
          %528 = sbr.rel (%p526) target = $region28
        $region27: #{tpu_custom_call.1} parent=11 // pred_region
          _
        $region28: #{tpu_custom_call.1} parent=11 // pred_fallthru
          _
        // Predicated region
        $region29: #{tpu_custom_call.1} parent=11 // pred_check
          %p529 = pneg %p161
        $region30: #{tpu_custom_call.1} parent=11 // pred_check_branch
          %531 = sbr.rel (%p529) target = $region32
        $region31: #{tpu_custom_call.1} parent=11 // pred_region
          _
        $region32: #{tpu_custom_call.1} parent=11 // pred_fallthru
          _
        // Predicated region
        $region33: #{tpu_custom_call.1} parent=11 // pred_check
          %p532 = pneg %p182
        $region34: #{tpu_custom_call.1} parent=11 // pred_check_branch
          %534 = sbr.rel (%p532) target = $region36
        $region35: #{tpu_custom_call.1} parent=11 // pred_region
          _
        $region36: #{tpu_custom_call.1} parent=11 // pred_fallthru
          _
        // Predicated region
        $region37: #{tpu_custom_call.1} parent=11 // pred_check
          %p535 = pneg %p203
        $region38: #{tpu_custom_call.1} parent=11 // pred_check_branch
          %537 = sbr.rel (%p535) target = $region40
        $region39: #{tpu_custom_call.1} parent=11 // pred_region
          _
        $region40: #{tpu_custom_call.1} parent=11 // pred_fallthru
          _
        // Predicated region
        $region41: #{tpu_custom_call.1} parent=11 // pred_check
          %p538 = pneg %p224
        $region42: #{tpu_custom_call.1} parent=11 // pred_check_branch
          %540 = sbr.rel (%p538) target = $region44
        $region43: #{tpu_custom_call.1} parent=11 // pred_region
          _
        $region44: #{tpu_custom_call.1} parent=11 // pred_fallthru
          _
        // Predicated region
        $region45: #{tpu_custom_call.1} parent=11 // pred_check
          %p541 = pneg %p245
        $region46: #{tpu_custom_call.1} parent=11 // pred_check_branch
          %543 = sbr.rel (%p541) target = $region48
        $region47: #{tpu_custom_call.1} parent=11 // pred_region
          _
        $region48: #{tpu_custom_call.1} parent=11 // pred_fallthru
          _
        // Predicated region
        $region49: #{tpu_custom_call.1} parent=11 // pred_check
          %p544 = pneg %p266
        $region50: #{tpu_custom_call.1} parent=11 // pred_check_branch
          %546 = sbr.rel (%p544) target = $region52
        $region51: #{tpu_custom_call.1} parent=11 // pred_region
          _
        $region52: #{tpu_custom_call.1} parent=11 // pred_fallthru
          _
        // Predicated region
        $region53: #{tpu_custom_call.1} parent=11 // pred_check
          %p547 = pneg %p287
        $region54: #{tpu_custom_call.1} parent=11 // pred_check_branch
          %549 = sbr.rel (%p547) target = $region56
        $region55: #{tpu_custom_call.1} parent=11 // pred_region
          _
        $region56: #{tpu_custom_call.1} parent=11 // pred_fallthru
          _
        // Predicated region
        $region57: #{tpu_custom_call.1} parent=11 // pred_check
          %p550 = pneg %p308
        $region58: #{tpu_custom_call.1} parent=11 // pred_check_branch
          %552 = sbr.rel (%p550) target = $region60
        $region59: #{tpu_custom_call.1} parent=11 // pred_region
          _
        $region60: #{tpu_custom_call.1} parent=11 // pred_fallthru
          _
        // Predicated region
        $region61: #{tpu_custom_call.1} parent=11 // pred_check
          %p553 = pneg %p329
        $region62: #{tpu_custom_call.1} parent=11 // pred_check_branch
          %555 = sbr.rel (%p553) target = $region64
        $region63: #{tpu_custom_call.1} parent=11 // pred_region
          _
        $region64: #{tpu_custom_call.1} parent=11 // pred_fallthru
          _
        // Predicated region
        $region65: #{tpu_custom_call.1} parent=11 // pred_check
          %p556 = pneg %p350
        $region66: #{tpu_custom_call.1} parent=11 // pred_check_branch
          %558 = sbr.rel (%p556) target = $region68
        $region67: #{tpu_custom_call.1} parent=11 // pred_region
          _
        $region68: #{tpu_custom_call.1} parent=11 // pred_fallthru
          _
        // Predicated region
        $region69: #{tpu_custom_call.1} parent=11 // pred_check
          %p559 = pneg %p371
        $region70: #{tpu_custom_call.1} parent=11 // pred_check_branch
          %561 = sbr.rel (%p559) target = $region72
        $region71: #{tpu_custom_call.1} parent=11 // pred_region
          _
        $region72: #{tpu_custom_call.1} parent=11 // pred_fallthru
          _
        // Predicated region
        $region73: #{tpu_custom_call.1} parent=11 // pred_check
          %p562 = pneg %p392
        $region74: #{tpu_custom_call.1} parent=11 // pred_check_branch
          %564 = sbr.rel (%p562) target = $region76
        $region75: #{tpu_custom_call.1} parent=11 // pred_region
          _
        $region76: #{tpu_custom_call.1} parent=11 // pred_fallthru
          _
        // Predicated region
        $region77: #{tpu_custom_call.1} parent=11 // pred_check
          %p565 = pneg %p413
        $region78: #{tpu_custom_call.1} parent=11 // pred_check_branch
          %567 = sbr.rel (%p565) target = $region80
        $region79: #{tpu_custom_call.1} parent=11 // pred_region
          _
        $region80: #{tpu_custom_call.1} parent=11 // pred_fallthru
          _
        // Predicated region
        $region81: #{tpu_custom_call.1} parent=11 // pred_check
          %p568 = pneg %p434
        $region82: #{tpu_custom_call.1} parent=11 // pred_check_branch
          %570 = sbr.rel (%p568) target = $region84
        $region83: #{tpu_custom_call.1} parent=11 // pred_region
          _
        $region84: #{tpu_custom_call.1} parent=11 // pred_fallthru
          _
        // Predicated region
        $region85: #{tpu_custom_call.1} parent=11 // pred_check
          %p571 = pneg %p455
        $region86: #{tpu_custom_call.1} parent=11 // pred_check_branch
          %573 = sbr.rel (%p571) target = $region88
        $region87: #{tpu_custom_call.1} parent=11 // pred_region
          _
        $region88: #{tpu_custom_call.1} parent=11 // pred_fallthru
          _
        // Predicated region
        $region89: #{tpu_custom_call.1} parent=11 // pred_check
          %p574 = pneg %p476
        $region90: #{tpu_custom_call.1} parent=11 // pred_check_branch
          %576 = sbr.rel (%p574) target = $region92
        $region91: #{tpu_custom_call.1} parent=11 // pred_region
          _
        $region92: #{tpu_custom_call.1} parent=11 // pred_fallthru
          _
      $region12: #{tpu_custom_call.1} parent=5 // pred_fallthru
        _
      %p577 = scmp.lt.s32.totalorder %s30, 2
      // Predicated region
      $region93: #{tpu_custom_call.1} parent=5 // pred_check
        %p578 = pneg %p577
      $region94: #{tpu_custom_call.1} parent=5 // pred_check_branch
        %580 = sbr.rel (%p578) target = $region96
      $region95: #{tpu_custom_call.1} parent=5 // pred_region
        // Predicated region
        $region97: #{tpu_custom_call.1} parent=95 // pred_check
          %p581 = pneg %p50
        $region98: #{tpu_custom_call.1} parent=95 // pred_check_branch
          %583 = sbr.rel (%p581) target = $region100
        $region99: #{tpu_custom_call.1} parent=95 // pred_region
          %s584 = smul.u32 2, %s30
          %p585 = scmp.lt.s32.totalorder %s584, 3
          %s586 = scalar_select %p585, %s584, 3
          %s587 = smul.addr %s586, 8
          %s588 = scalar_lea.vmem %s0, %s587
          %s589 = smul.u32 2, %s30
        $region100: #{tpu_custom_call.1} parent=95 // pred_fallthru
          _
      $region96: #{tpu_custom_call.1} parent=5 // pred_fallthru
        _
      %p590 = scmp.le.s32.totalorder 1, %s30
      %p591 = scmp.lt.s32.totalorder %s30, 3
      %p592 = pnand %p590, %p591
      %p593 = pneg %p592
      // Predicated region
      $region101: #{tpu_custom_call.1} parent=5 // pred_check
        _
      $region102: #{tpu_custom_call.1} parent=5 // pred_check_branch
        %595 = sbr.rel (%p592) target = $region104
      $region103: #{tpu_custom_call.1} parent=5 // pred_region
        %s596 = ssub.s32 %s30, 1
        %s597 = smul.u32 2, %s35
        %p598 = scmp.lt.s32.totalorder %s597, 3
        %s599 = scalar_select %p598, %s597, 3
        %s600 = smul.addr %s599, 8
        %s601 = scalar_lea.vmem %s0, %s600
        %p602 = pneg %p56
        %p603 = pneg %p53
        %p604 = pneg %p77
        %p605 = pneg %p74
        %p606 = pneg %p98
        %p607 = pneg %p95
        %p608 = pneg %p119
        %p609 = pneg %p116
        %p610 = pneg %p140
        %p611 = pneg %p137
        %p612 = pneg %p161
        %p613 = pneg %p158
        %p614 = pneg %p182
        %p615 = pneg %p179
        %p616 = pneg %p203
        %p617 = pneg %p200
        %p618 = pneg %p224
        %p619 = pneg %p221
        %p620 = pneg %p245
        %p621 = pneg %p242
        %p622 = pneg %p266
        %p623 = pneg %p263
        %p624 = pneg %p287
        %p625 = pneg %p284
        %p626 = pneg %p308
        %p627 = pneg %p305
        %p628 = pneg %p329
        %p629 = pneg %p326
        %p630 = pneg %p350
        %p631 = pneg %p347
        %p632 = pneg %p371
        %p633 = pneg %p368
        %p634 = pneg %p392
        %p635 = pneg %p389
        %p636 = pneg %p413
        %p637 = pneg %p410
        %p638 = pneg %p434
        %p639 = pneg %p431
        %p640 = pneg %p455
        %p641 = pneg %p452
        %p642 = pneg %p476
        %p643 = pneg %p473
        %p644 = pneg %p502
        %p645 = pneg %p499
        %s646 = sand.u32 %s489, 1
        %s647 = scalar_lea.sflag [#allocation4], %s646
        %s648 = sand.u32 %s489, 1
        %s649 = smul.addr %s648, 16
        %s650 = scalar_lea.vmem [#allocation3], %s649
        %s651 = smul.u32 2, %s35
        %p652 = scmp.lt.s32.totalorder %s651, 3
        %s653 = scalar_select %p652, %s651, 3
        %s654 = smul.addr %s653, 8
        %s655 = scalar_lea.vmem %s0, %s654
        %s656 = smul.u32 2, %s35
        %s657 = smul.u32 2, %s35
        %v659 = vld [vmem:[%s655] sm:$0xff]
        %v660 = vld [vmem:[%s655 + $0x8] sm:$0xff]
        %v661 = vld [vmem:[%s1] sm:$0x1]
        %v662 = vld [vmem:[%s2] sm:$0x1]
        %vm663 = vcmask 261120
        %v664 = vsel %vm663, %v659, 0.0
        %665 = vadd.xlane.f32.xlu0 %v664
        %v666 = vpop.xlane.xlu0 %665
        %v667 = vsel %vm663, %v660, 0.0
        %668 = vadd.xlane.f32.xlu0 %v667
        %v669 = vpop.xlane.xlu0 %668
        %v670 = vrcp.pop 32.0
        %v671 = vmul.f32 %v666, %v670
        %v672 = vmul.f32 %v669, %v670
        %v673 = vsub.f32 %v659, %v671
        %v674 = vsub.f32 %v660, %v672
        %v675 = vmul.f32 %v673, %v673
        %v676 = vmul.f32 %v674, %v674
        %v677 = vsel %vm663, %v675, 0.0
        %678 = vadd.xlane.f32.xlu0 %v677
        %v679 = vpop.xlane.xlu0 %678
        %v680 = vsel %vm663, %v676, 0.0
        %681 = vadd.xlane.f32.xlu0 %v680
        %v682 = vpop.xlane.xlu0 %681
        %v683 = vmul.f32 %v679, %v670
        %v684 = vmul.f32 %v682, %v670
        %v685 = vadd.f32 %v683, 1e-05
        %v686 = vadd.f32 %v684, 1e-05
        %v687 = vrsqrt.pop %v685
        %v688 = vrsqrt.pop %v686
        %v689 = vmul.f32 %v673, %v687
        %v690 = vmul.f32 %v674, %v688
        %v692 = vlaneseq
        %v693 = vshrl.u32 %v692, 7
        %v694 = vsub.s32 0, %v693
        %v695 = vrot.slane %v661, %v694
        %v697 = vmul.f32 %v689, %v695
        %v698 = vmul.f32 %v690, %v695
        %v700 = vlaneseq
        %v701 = vshrl.u32 %v700, 7
        %v702 = vsub.s32 0, %v701
        %v703 = vrot.slane %v662, %v702
        %v705 = vadd.f32 %v697, %v703
        %v706 = vadd.f32 %v698, %v703
        %v707 = vpack.c.bf16 %v706, %v705
        %v708 = vld [vmem:[%s3] sm:$0xf]
        %v709 = vld [vmem:[%s3 + $0x4] sm:$0xf]
        %v710 = vld [vmem:[%s3 + $0x8] sm:$0xf]
        %v711 = vld [vmem:[%s3 + $0xc] sm:$0xf]
        %v712 = vld [vmem:[%s4] sm:$0x1]
        %v714 = vlaneseq
        %v715 = vshrl.u32 %v714, 7
        %v716 = vsub.s32 0, %v715
        %v717 = vrot.slane %v712, %v716
        %v723 = vunpack.c.l.b16 %v708
        %v724 = vunpack.c.l.b16 %v709
        %v725 = vunpack.c.l.b16 %v710
        %v726 = vunpack.c.l.b16 %v711
        %v727 = vpack.c.b16 %v724, %v723
        %v728 = vpack.c.b16 %v726, %v725
        %v732 = vsel %vm663, %v707, 0
        %734 = vmatprep.subr.bf16.mxu0 0
        %735 = vmatpush1.bf16.msra.mxu0 0
        %736 = vmatprep.subr.bf16.mxu0 0
        %737 = vmatpush1.bf16.msra.mxu0 0
        %738 = vmatprep.subr.bf16.mxu0 0
        %739 = vmatpush1.bf16.msra.mxu0 0
        %740 = vmatprep.subr.bf16.mxu0 0
        %741 = vmatpush1.bf16.msra.mxu0 0
        %742 = vmatprep.subr.bf16.mxu0 0
        %743 = vmatpush1.bf16.msra.mxu0 0
        %744 = vmatprep.subr.bf16.mxu0 0
        %745 = vmatpush1.bf16.msra.mxu0 0
        %746 = vmatprep.subr.bf16.mxu0 0
        %747 = vmatpush1.bf16.msra.mxu0 %v728
        %748 = vmatprep.subr.bf16.mxu0 0
        %749 = vmatpush1.bf16.msra.mxu0 %v727
        %750 = vmatprep.subr.bf16.mxu0 0
        %751 = vmatpush2.bf16.msra.mxu0 0
        %752 = vmatprep.subr.bf16.mxu0 0
        %753 = vmatpush2.bf16.msra.mxu0 0
        %754 = vmatprep.subr.bf16.mxu0 0
        %755 = vmatpush2.bf16.msra.mxu0 0
        %756 = vmatprep.subr.bf16.mxu0 0
        %757 = vmatpush2.bf16.msra.mxu0 0
        %758 = vmatprep.subr.bf16.mxu0 0
        %759 = vmatpush2.bf16.msra.mxu0 0
        %760 = vmatprep.subr.bf16.mxu0 0
        %761 = vmatpush2.bf16.msra.mxu0 0
        %762 = vmatprep.subr.bf16.mxu0 0
        %763 = vmatpush2.bf16.msra.mxu0 0
        %764 = vmatprep.subr.bf16.mxu0 0
        %765 = vmatpush2.bf16.msra.mxu0 0
        %766 = vmatprep.mubr.bf16.mxu0 0
        %767 = vmatmul.mubr.bf16.gmra.mxu0 %v732
        %v768 = vpop.f32.mrf.mxu0
        %v769 = vadd.f32 %v717, %v768
        %v770 = vpop.f32.mrf.mxu0
        %v771 = vpop.f32.mrf.mxu0
        %v772 = vadd.f32 %v717, %v771
        %v773 = vpop.f32.mrf.mxu0
        %774 = vdwg.mxu0
        %v775 = vpack.c.bf16 %v772, %v769
        %v777 = vunpack.c.l.b16 %v775
        %v778 = vunpack.c.h.b16 %v775
        %v779 = vpack.c.b16 %v777, %v777
        %v780 = vpack.c.b16 %v778, %v778
        %781 = vrot.lane.b32.xlu0 %v779, 96
        %v782 = vpop.permute.xlu0 %781
        %vm783 = vcmask 64512
        %v785 = vsel %vm783, %v779, 0
        %v788 = vsel %vm783, %v782, 0
        %790 = vmatprep.subr.bf16.mxu0 0
        %791 = vmatpush1.bf16.xpose.msra.mxu0 0
        %792 = vmatprep.subr.bf16.mxu0 0
        %793 = vmatpush1.bf16.xpose.msra.mxu0 0
        %794 = vmatprep.subr.bf16.mxu0 0
        %795 = vmatpush1.bf16.xpose.msra.mxu0 0
        %796 = vmatprep.subr.bf16.mxu0 0
        %797 = vmatpush1.bf16.xpose.msra.mxu0 0
        %798 = vmatprep.subr.bf16.mxu0 0
        %799 = vmatpush1.bf16.xpose.msra.mxu0 0
        %800 = vmatprep.subr.bf16.mxu0 0
        %801 = vmatpush1.bf16.xpose.msra.mxu0 0
        %802 = vmatprep.subr.bf16.mxu0 0
        %803 = vmatpush1.bf16.xpose.msra.mxu0 0
        %804 = vmatprep.subr.bf16.mxu0 0
        %805 = vmatpush1.bf16.xpose.msra.mxu0 %v788
        %806 = vmatprep.subr.bf16.mxu0 0
        %807 = vmatpush2.bf16.xpose.msra.mxu0 0
        %808 = vmatprep.subr.bf16.mxu0 0
        %809 = vmatpush2.bf16.xpose.msra.mxu0 0
        %810 = vmatprep.subr.bf16.mxu0 0
        %811 = vmatpush2.bf16.xpose.msra.mxu0 0
        %812 = vmatprep.subr.bf16.mxu0 0
        %813 = vmatpush2.bf16.xpose.msra.mxu0 0
        %814 = vmatprep.subr.bf16.mxu0 0
        %815 = vmatpush2.bf16.xpose.msra.mxu0 0
        %816 = vmatprep.subr.bf16.mxu0 0
        %817 = vmatpush2.bf16.xpose.msra.mxu0 0
        %818 = vmatprep.subr.bf16.mxu0 0
        %819 = vmatpush2.bf16.xpose.msra.mxu0 0
        %820 = vmatprep.subr.bf16.mxu0 0
        %821 = vmatpush2.bf16.xpose.msra.mxu0 0
        %822 = vmatprep.mubr.bf16.mxu0 0
        %823 = vmatmul.mubr.bf16.gmra.mxu0 %v785
        %v824 = vpop.f32.mrf.mxu0
        %v825 = vadd.f32 0.0, %v824
        %v826 = vpop.f32.mrf.mxu0
        %v827 = vpop.f32.mrf.mxu0
        %v828 = vpop.f32.mrf.mxu0
        %829 = vdwg.mxu0
        %830 = vrot.lane.b32.xlu0 %v780, 96
        %v831 = vpop.permute.xlu0 %830
        %v833 = vsel %vm783, %v780, 0
        %v836 = vsel %vm783, %v831, 0
        %838 = vmatprep.subr.bf16.mxu0 0
        %839 = vmatpush1.bf16.xpose.msra.mxu0 0
        %840 = vmatprep.subr.bf16.mxu0 0
        %841 = vmatpush1.bf16.xpose.msra.mxu0 0
        %842 = vmatprep.subr.bf16.mxu0 0
        %843 = vmatpush1.bf16.xpose.msra.mxu0 0
        %844 = vmatprep.subr.bf16.mxu0 0
        %845 = vmatpush1.bf16.xpose.msra.mxu0 0
        %846 = vmatprep.subr.bf16.mxu0 0
        %847 = vmatpush1.bf16.xpose.msra.mxu0 0
        %848 = vmatprep.subr.bf16.mxu0 0
        %849 = vmatpush1.bf16.xpose.msra.mxu0 0
        %850 = vmatprep.subr.bf16.mxu0 0
        %851 = vmatpush1.bf16.xpose.msra.mxu0 0
        %852 = vmatprep.subr.bf16.mxu0 0
        %853 = vmatpush1.bf16.xpose.msra.mxu0 %v836
        %854 = vmatprep.subr.bf16.mxu0 0
        %855 = vmatpush2.bf16.xpose.msra.mxu0 0
        %856 = vmatprep.subr.bf16.mxu0 0
        %857 = vmatpush2.bf16.xpose.msra.mxu0 0
        %858 = vmatprep.subr.bf16.mxu0 0
        %859 = vmatpush2.bf16.xpose.msra.mxu0 0
        %860 = vmatprep.subr.bf16.mxu0 0
        %861 = vmatpush2.bf16.xpose.msra.mxu0 0
        %862 = vmatprep.subr.bf16.mxu0 0
        %863 = vmatpush2.bf16.xpose.msra.mxu0 0
        %864 = vmatprep.subr.bf16.mxu0 0
        %865 = vmatpush2.bf16.xpose.msra.mxu0 0
        %866 = vmatprep.subr.bf16.mxu0 0
        %867 = vmatpush2.bf16.xpose.msra.mxu0 0
        %868 = vmatprep.subr.bf16.mxu0 0
        %869 = vmatpush2.bf16.xpose.msra.mxu0 0
        %870 = vmatprep.mubr.bf16.mxu0 0
        %871 = vmatmul.mubr.bf16.gmra.mxu0 %v833
        %v872 = vpop.f32.mrf.mxu0
        %v873 = vadd.f32 0.0, %v872
        %v874 = vpop.f32.mrf.mxu0
        %v875 = vpop.f32.mrf.mxu0
        %v876 = vpop.f32.mrf.mxu0
        %877 = vdwg.mxu0
        %v878 = vsel %vm783, %v825, -inf
        %879 = vmax.xlane.f32.xlu0 %v878
        %v880 = vpop.xlane.xlu0 %879
        %v881 = vsel %vm783, %v873, -inf
        %882 = vmax.xlane.f32.xlu0 %v881
        %v883 = vpop.xlane.xlu0 %882
        %v884 = vsub.f32 %v825, %v880
        %v885 = vsub.f32 %v873, %v883
        %v886 = vmul.f32 %v884, 1.442695
        %v887 = vpow.pop %v886
        %v888 = vmul.f32 %v885, 1.442695
        %v889 = vpow.pop %v888
        %v890 = vsel %vm783, %v887, 0.0
        %891 = vadd.xlane.f32.xlu0 %v890
        %v892 = vpop.xlane.xlu0 %891
        %v893 = vsel %vm783, %v889, 0.0
        %894 = vadd.xlane.f32.xlu0 %v893
        %v895 = vpop.xlane.xlu0 %894
        %v896 = vrcp.pop %v892
        %v897 = vrcp.pop %v895
        %v898 = vmul.f32 %v887, %v896
        %v899 = vmul.f32 %v889, %v897
        %v900 = vpack.c.bf16 %v898, %v898
        %v901 = vpack.c.bf16 %v899, %v899
        %902 = vrot.lane.b32.xlu0 %v779, 64
        %v903 = vpop.permute.xlu0 %902
        %v905 = vsel %vm783, %v900, 0
        %vm907 = vcmask 1043456
        %v909 = vsel %vm907, %v903, 0
        %911 = vmatprep.subr.bf16.mxu0 0
        %912 = vmatpush1.bf16.msra.mxu0 0
        %913 = vmatprep.subr.bf16.mxu0 0
        %914 = vmatpush1.bf16.msra.mxu0 0
        %915 = vmatprep.subr.bf16.mxu0 0
        %916 = vmatpush1.bf16.msra.mxu0 0
        %917 = vmatprep.subr.bf16.mxu0 0
        %918 = vmatpush1.bf16.msra.mxu0 0
        %919 = vmatprep.subr.bf16.mxu0 0
        %920 = vmatpush1.bf16.msra.mxu0 0
        %921 = vmatprep.subr.bf16.mxu0 0
        %922 = vmatpush1.bf16.msra.mxu0 0
        %923 = vmatprep.subr.bf16.mxu0 0
        %924 = vmatpush1.bf16.msra.mxu0 0
        %925 = vmatprep.subr.bf16.mxu0 0
        %926 = vmatpush1.bf16.msra.mxu0 %v909
        %927 = vmatprep.subr.bf16.mxu0 0
        %928 = vmatpush2.bf16.msra.mxu0 0
        %929 = vmatprep.subr.bf16.mxu0 0
        %930 = vmatpush2.bf16.msra.mxu0 0
        %931 = vmatprep.subr.bf16.mxu0 0
        %932 = vmatpush2.bf16.msra.mxu0 0
        %933 = vmatprep.subr.bf16.mxu0 0
        %934 = vmatpush2.bf16.msra.mxu0 0
        %935 = vmatprep.subr.bf16.mxu0 0
        %936 = vmatpush2.bf16.msra.mxu0 0
        %937 = vmatprep.subr.bf16.mxu0 0
        %938 = vmatpush2.bf16.msra.mxu0 0
        %939 = vmatprep.subr.bf16.mxu0 0
        %940 = vmatpush2.bf16.msra.mxu0 0
        %941 = vmatprep.subr.bf16.mxu0 0
        %942 = vmatpush2.bf16.msra.mxu0 0
        %943 = vmatprep.mubr.bf16.mxu0 0
        %944 = vmatmul.mubr.bf16.gmra.mxu0 %v905
        %v945 = vpop.f32.mrf.mxu0
        %v946 = vadd.f32 0.0, %v945
        %v947 = vpop.f32.mrf.mxu0
        %v948 = vpop.f32.mrf.mxu0
        %v949 = vpop.f32.mrf.mxu0
        %950 = vdwg.mxu0
        %951 = vrot.lane.b32.xlu0 %v780, 64
        %v952 = vpop.permute.xlu0 %951
        %v954 = vsel %vm783, %v901, 0
        %v957 = vsel %vm907, %v952, 0
        %959 = vmatprep.subr.bf16.mxu0 0
        %960 = vmatpush1.bf16.msra.mxu0 0
        %961 = vmatprep.subr.bf16.mxu0 0
        %962 = vmatpush1.bf16.msra.mxu0 0
        %963 = vmatprep.subr.bf16.mxu0 0
        %964 = vmatpush1.bf16.msra.mxu0 0
        %965 = vmatprep.subr.bf16.mxu0 0
        %966 = vmatpush1.bf16.msra.mxu0 0
        %967 = vmatprep.subr.bf16.mxu0 0
        %968 = vmatpush1.bf16.msra.mxu0 0
        %969 = vmatprep.subr.bf16.mxu0 0
        %970 = vmatpush1.bf16.msra.mxu0 0
        %971 = vmatprep.subr.bf16.mxu0 0
        %972 = vmatpush1.bf16.msra.mxu0 0
        %973 = vmatprep.subr.bf16.mxu0 0
        %974 = vmatpush1.bf16.msra.mxu0 %v957
        %975 = vmatprep.subr.bf16.mxu0 0
        %976 = vmatpush2.bf16.msra.mxu0 0
        %977 = vmatprep.subr.bf16.mxu0 0
        %978 = vmatpush2.bf16.msra.mxu0 0
        %979 = vmatprep.subr.bf16.mxu0 0
        %980 = vmatpush2.bf16.msra.mxu0 0
        %981 = vmatprep.subr.bf16.mxu0 0
        %982 = vmatpush2.bf16.msra.mxu0 0
        %983 = vmatprep.subr.bf16.mxu0 0
        %984 = vmatpush2.bf16.msra.mxu0 0
        %985 = vmatprep.subr.bf16.mxu0 0
        %986 = vmatpush2.bf16.msra.mxu0 0
        %987 = vmatprep.subr.bf16.mxu0 0
        %988 = vmatpush2.bf16.msra.mxu0 0
        %989 = vmatprep.subr.bf16.mxu0 0
        %990 = vmatpush2.bf16.msra.mxu0 0
        %991 = vmatprep.mubr.bf16.mxu0 0
        %992 = vmatmul.mubr.bf16.gmra.mxu0 %v954
        %v993 = vpop.f32.mrf.mxu0
        %v994 = vadd.f32 0.0, %v993
        %v995 = vpop.f32.mrf.mxu0
        %v996 = vpop.f32.mrf.mxu0
        %v997 = vpop.f32.mrf.mxu0
        %998 = vdwg.mxu0
        %v999 = vpack.c.bf16 %v994, %v946
        %v1001 = vunpack.c.l.b16 %v999
        %v1002 = vunpack.c.h.b16 %v999
        %v1003 = vpack.c.b16 %v1001, %v1001
        %v1004 = vpack.c.b16 %v1002, %v1002
        %vm1007 = vcmask 60416
        %1008 = vst.msk [vmem:[#allocation2] sm:$0xf] %vm1007, %v1003
        %1009 = vst.msk [vmem:[#allocation2 + $0x4] sm:$0xf] %vm1007, %v1004
        %1010 = vrot.lane.b32.xlu0 %v779, 120
        %v1011 = vpop.permute.xlu0 %1010
        %1012 = vrot.lane.b32.xlu0 %v779, 88
        %v1013 = vpop.permute.xlu0 %1012
        %v1015 = vsel %vm783, %v1011, 0
        %v1018 = vsel %vm783, %v1013, 0
        %1020 = vmatprep.subr.bf16.mxu0 0
        %1021 = vmatpush1.bf16.xpose.msra.mxu0 0
        %1022 = vmatprep.subr.bf16.mxu0 0
        %1023 = vmatpush1.bf16.xpose.msra.mxu0 0
        %1024 = vmatprep.subr.bf16.mxu0 0
        %1025 = vmatpush1.bf16.xpose.msra.mxu0 0
        %1026 = vmatprep.subr.bf16.mxu0 0
        %1027 = vmatpush1.bf16.xpose.msra.mxu0 0
        %1028 = vmatprep.subr.bf16.mxu0 0
        %1029 = vmatpush1.bf16.xpose.msra.mxu0 0
        %1030 = vmatprep.subr.bf16.mxu0 0
        %1031 = vmatpush1.bf16.xpose.msra.mxu0 0
        %1032 = vmatprep.subr.bf16.mxu0 0
        %1033 = vmatpush1.bf16.xpose.msra.mxu0 0
        %1034 = vmatprep.subr.bf16.mxu0 0
        %1035 = vmatpush1.bf16.xpose.msra.mxu0 %v1018
        %1036 = vmatprep.subr.bf16.mxu0 0
        %1037 = vmatpush2.bf16.xpose.msra.mxu0 0
        %1038 = vmatprep.subr.bf16.mxu0 0
        %1039 = vmatpush2.bf16.xpose.msra.mxu0 0
        %1040 = vmatprep.subr.bf16.mxu0 0
        %1041 = vmatpush2.bf16.xpose.msra.mxu0 0
        %1042 = vmatprep.subr.bf16.mxu0 0
        %1043 = vmatpush2.bf16.xpose.msra.mxu0 0
        %1044 = vmatprep.subr.bf16.mxu0 0
        %1045 = vmatpush2.bf16.xpose.msra.mxu0 0
        %1046 = vmatprep.subr.bf16.mxu0 0
        %1047 = vmatpush2.bf16.xpose.msra.mxu0 0
        %1048 = vmatprep.subr.bf16.mxu0 0
        %1049 = vmatpush2.bf16.xpose.msra.mxu0 0
        %1050 = vmatprep.subr.bf16.mxu0 0
        %1051 = vmatpush2.bf16.xpose.msra.mxu0 0
        %1052 = vmatprep.mubr.bf16.mxu0 0
        %1053 = vmatmul.mubr.bf16.gmra.mxu0 %v1015
        %v1054 = vpop.f32.mrf.mxu0
        %v1055 = vadd.f32 0.0, %v1054
        %v1056 = vpop.f32.mrf.mxu0
        %v1057 = vpop.f32.mrf.mxu0
        %v1058 = vpop.f32.mrf.mxu0
        %1059 = vdwg.mxu0
        %1060 = vrot.lane.b32.xlu0 %v780, 120
        %v1061 = vpop.permute.xlu0 %1060
        %1062 = vrot.lane.b32.xlu0 %v780, 88
        %v1063 = vpop.permute.xlu0 %1062
        %v1065 = vsel %vm783, %v1061, 0
        %v1068 = vsel %vm783, %v1063, 0
        %1070 = vmatprep.subr.bf16.mxu0 0
        %1071 = vmatpush1.bf16.xpose.msra.mxu0 0
        %1072 = vmatprep.subr.bf16.mxu0 0
        %1073 = vmatpush1.bf16.xpose.msra.mxu0 0
        %1074 = vmatprep.subr.bf16.mxu0 0
        %1075 = vmatpush1.bf16.xpose.msra.mxu0 0
        %1076 = vmatprep.subr.bf16.mxu0 0
        %1077 = vmatpush1.bf16.xpose.msra.mxu0 0
        %1078 = vmatprep.subr.bf16.mxu0 0
        %1079 = vmatpush1.bf16.xpose.msra.mxu0 0
        %1080 = vmatprep.subr.bf16.mxu0 0
        %1081 = vmatpush1.bf16.xpose.msra.mxu0 0
        %1082 = vmatprep.subr.bf16.mxu0 0
        %1083 = vmatpush1.bf16.xpose.msra.mxu0 0
        %1084 = vmatprep.subr.bf16.mxu0 0
        %1085 = vmatpush1.bf16.xpose.msra.mxu0 %v1068
        %1086 = vmatprep.subr.bf16.mxu0 0
        %1087 = vmatpush2.bf16.xpose.msra.mxu0 0
        %1088 = vmatprep.subr.bf16.mxu0 0
        %1089 = vmatpush2.bf16.xpose.msra.mxu0 0
        %1090 = vmatprep.subr.bf16.mxu0 0
        %1091 = vmatpush2.bf16.xpose.msra.mxu0 0
        %1092 = vmatprep.subr.bf16.mxu0 0
        %1093 = vmatpush2.bf16.xpose.msra.mxu0 0
        %1094 = vmatprep.subr.bf16.mxu0 0
        %1095 = vmatpush2.bf16.xpose.msra.mxu0 0
        %1096 = vmatprep.subr.bf16.mxu0 0
        %1097 = vmatpush2.bf16.xpose.msra.mxu0 0
        %1098 = vmatprep.subr.bf16.mxu0 0
        %1099 = vmatpush2.bf16.xpose.msra.mxu0 0
        %1100 = vmatprep.subr.bf16.mxu0 0
        %1101 = vmatpush2.bf16.xpose.msra.mxu0 0
        %1102 = vmatprep.mubr.bf16.mxu0 0
        %1103 = vmatmul.mubr.bf16.gmra.mxu0 %v1065
        %v1104 = vpop.f32.mrf.mxu0
        %v1105 = vadd.f32 0.0, %v1104
        %v1106 = vpop.f32.mrf.mxu0
        %v1107 = vpop.f32.mrf.mxu0
        %v1108 = vpop.f32.mrf.mxu0
        %1109 = vdwg.mxu0
        %v1110 = vsel %vm783, %v1055, -inf
        %1111 = vmax.xlane.f32.xlu0 %v1110
        %v1112 = vpop.xlane.xlu0 %1111
        %v1113 = vsel %vm783, %v1105, -inf
        %1114 = vmax.xlane.f32.xlu0 %v1113
        %v1115 = vpop.xlane.xlu0 %1114
        %v1116 = vsub.f32 %v1055, %v1112
        %v1117 = vsub.f32 %v1105, %v1115
        %v1118 = vmul.f32 %v1116, 1.442695
        %v1119 = vpow.pop %v1118
        %v1120 = vmul.f32 %v1117, 1.442695
        %v1121 = vpow.pop %v1120
        %v1122 = vsel %vm783, %v1119, 0.0
        %1123 = vadd.xlane.f32.xlu0 %v1122
        %v1124 = vpop.xlane.xlu0 %1123
        %v1125 = vsel %vm783, %v1121, 0.0
        %1126 = vadd.xlane.f32.xlu0 %v1125
        %v1127 = vpop.xlane.xlu0 %1126
        %v1128 = vrcp.pop %v1124
        %v1129 = vrcp.pop %v1127
        %v1130 = vmul.f32 %v1119, %v1128
        %v1131 = vmul.f32 %v1121, %v1129
        %v1132 = vpack.c.bf16 %v1130, %v1130
        %v1133 = vpack.c.bf16 %v1131, %v1131
        %1134 = vrot.lane.b32.xlu0 %v779, 56
        %v1135 = vpop.permute.xlu0 %1134
        %v1137 = vsel %vm783, %v1132, 0
        %v1140 = vsel %vm907, %v1135, 0
        %1142 = vmatprep.subr.bf16.mxu0 0
        %1143 = vmatpush1.bf16.msra.mxu0 0
        %1144 = vmatprep.subr.bf16.mxu0 0
        %1145 = vmatpush1.bf16.msra.mxu0 0
        %1146 = vmatprep.subr.bf16.mxu0 0
        %1147 = vmatpush1.bf16.msra.mxu0 0
        %1148 = vmatprep.subr.bf16.mxu0 0
        %1149 = vmatpush1.bf16.msra.mxu0 0
        %1150 = vmatprep.subr.bf16.mxu0 0
        %1151 = vmatpush1.bf16.msra.mxu0 0
        %1152 = vmatprep.subr.bf16.mxu0 0
        %1153 = vmatpush1.bf16.msra.mxu0 0
        %1154 = vmatprep.subr.bf16.mxu0 0
        %1155 = vmatpush1.bf16.msra.mxu0 0
        %1156 = vmatprep.subr.bf16.mxu0 0
        %1157 = vmatpush1.bf16.msra.mxu0 %v1140
        %1158 = vmatprep.subr.bf16.mxu0 0
        %1159 = vmatpush2.bf16.msra.mxu0 0
        %1160 = vmatprep.subr.bf16.mxu0 0
        %1161 = vmatpush2.bf16.msra.mxu0 0
        %1162 = vmatprep.subr.bf16.mxu0 0
        %1163 = vmatpush2.bf16.msra.mxu0 0
        %1164 = vmatprep.subr.bf16.mxu0 0
        %1165 = vmatpush2.bf16.msra.mxu0 0
        %1166 = vmatprep.subr.bf16.mxu0 0
        %1167 = vmatpush2.bf16.msra.mxu0 0
        %1168 = vmatprep.subr.bf16.mxu0 0
        %1169 = vmatpush2.bf16.msra.mxu0 0
        %1170 = vmatprep.subr.bf16.mxu0 0
        %1171 = vmatpush2.bf16.msra.mxu0 0
        %1172 = vmatprep.subr.bf16.mxu0 0
        %1173 = vmatpush2.bf16.msra.mxu0 0
        %1174 = vmatprep.mubr.bf16.mxu0 0
        %1175 = vmatmul.mubr.bf16.gmra.mxu0 %v1137
        %v1176 = vpop.f32.mrf.mxu0
        %v1177 = vadd.f32 0.0, %v1176
        %v1178 = vpop.f32.mrf.mxu0
        %v1179 = vpop.f32.mrf.mxu0
        %v1180 = vpop.f32.mrf.mxu0
        %1181 = vdwg.mxu0
        %1182 = vrot.lane.b32.xlu0 %v780, 56
        %v1183 = vpop.permute.xlu0 %1182
        %v1185 = vsel %vm783, %v1133, 0
        %v1188 = vsel %vm907, %v1183, 0
        %1190 = vmatprep.subr.bf16.mxu0 0
        %1191 = vmatpush1.bf16.msra.mxu0 0
        %1192 = vmatprep.subr.bf16.mxu0 0
        %1193 = vmatpush1.bf16.msra.mxu0 0
        %1194 = vmatprep.subr.bf16.mxu0 0
        %1195 = vmatpush1.bf16.msra.mxu0 0
        %1196 = vmatprep.subr.bf16.mxu0 0
        %1197 = vmatpush1.bf16.msra.mxu0 0
        %1198 = vmatprep.subr.bf16.mxu0 0
        %1199 = vmatpush1.bf16.msra.mxu0 0
        %1200 = vmatprep.subr.bf16.mxu0 0
        %1201 = vmatpush1.bf16.msra.mxu0 0
        %1202 = vmatprep.subr.bf16.mxu0 0
        %1203 = vmatpush1.bf16.msra.mxu0 0
        %1204 = vmatprep.subr.bf16.mxu0 0
        %1205 = vmatpush1.bf16.msra.mxu0 %v1188
        %1206 = vmatprep.subr.bf16.mxu0 0
        %1207 = vmatpush2.bf16.msra.mxu0 0
        %1208 = vmatprep.subr.bf16.mxu0 0
        %1209 = vmatpush2.bf16.msra.mxu0 0
        %1210 = vmatprep.subr.bf16.mxu0 0
        %1211 = vmatpush2.bf16.msra.mxu0 0
        %1212 = vmatprep.subr.bf16.mxu0 0
        %1213 = vmatpush2.bf16.msra.mxu0 0
        %1214 = vmatprep.subr.bf16.mxu0 0
        %1215 = vmatpush2.bf16.msra.mxu0 0
        %1216 = vmatprep.subr.bf16.mxu0 0
        %1217 = vmatpush2.bf16.msra.mxu0 0
        %1218 = vmatprep.subr.bf16.mxu0 0
        %1219 = vmatpush2.bf16.msra.mxu0 0
        %1220 = vmatprep.subr.bf16.mxu0 0
        %1221 = vmatpush2.bf16.msra.mxu0 0
        %1222 = vmatprep.mubr.bf16.mxu0 0
        %1223 = vmatmul.mubr.bf16.gmra.mxu0 %v1185
        %v1224 = vpop.f32.mrf.mxu0
        %v1225 = vadd.f32 0.0, %v1224
        %v1226 = vpop.f32.mrf.mxu0
        %v1227 = vpop.f32.mrf.mxu0
        %v1228 = vpop.f32.mrf.mxu0
        %1229 = vdwg.mxu0
        %v1230 = vpack.c.bf16 %v1225, %v1177
        %v1232 = vunpack.c.l.b16 %v1230
        %v1233 = vunpack.c.h.b16 %v1230
        %v1234 = vpack.c.b16 %v1232, %v1232
        %v1235 = vpack.c.b16 %v1233, %v1233
        %1236 = vrot.lane.b32.xlu0 %v1234, 8
        %v1237 = vpop.permute.xlu0 %1236
        %1238 = vrot.lane.b32.xlu0 %v1235, 8
        %v1239 = vpop.permute.xlu0 %1238
        %vm1242 = vcmask 126016
        %1243 = vst.msk [vmem:[#allocation2] sm:$0xf] %vm1242, %v1237
        %1244 = vst.msk [vmem:[#allocation2 + $0x4] sm:$0xf] %vm1242, %v1239
        %1245 = vrot.lane.b32.xlu0 %v779, 112
        %v1246 = vpop.permute.xlu0 %1245
        %1247 = vrot.lane.b32.xlu0 %v779, 80
        %v1248 = vpop.permute.xlu0 %1247
        %v1250 = vsel %vm783, %v1246, 0
        %v1253 = vsel %vm783, %v1248, 0
        %1255 = vmatprep.subr.bf16.mxu0 0
        %1256 = vmatpush1.bf16.xpose.msra.mxu0 0
        %1257 = vmatprep.subr.bf16.mxu0 0
        %1258 = vmatpush1.bf16.xpose.msra.mxu0 0
        %1259 = vmatprep.subr.bf16.mxu0 0
        %1260 = vmatpush1.bf16.xpose.msra.mxu0 0
        %1261 = vmatprep.subr.bf16.mxu0 0
        %1262 = vmatpush1.bf16.xpose.msra.mxu0 0
        %1263 = vmatprep.subr.bf16.mxu0 0
        %1264 = vmatpush1.bf16.xpose.msra.mxu0 0
        %1265 = vmatprep.subr.bf16.mxu0 0
        %1266 = vmatpush1.bf16.xpose.msra.mxu0 0
        %1267 = vmatprep.subr.bf16.mxu0 0
        %1268 = vmatpush1.bf16.xpose.msra.mxu0 0
        %1269 = vmatprep.subr.bf16.mxu0 0
        %1270 = vmatpush1.bf16.xpose.msra.mxu0 %v1253
        %1271 = vmatprep.subr.bf16.mxu0 0
        %1272 = vmatpush2.bf16.xpose.msra.mxu0 0
        %1273 = vmatprep.subr.bf16.mxu0 0
        %1274 = vmatpush2.bf16.xpose.msra.mxu0 0
        %1275 = vmatprep.subr.bf16.mxu0 0
        %1276 = vmatpush2.bf16.xpose.msra.mxu0 0
        %1277 = vmatprep.subr.bf16.mxu0 0
        %1278 = vmatpush2.bf16.xpose.msra.mxu0 0
        %1279 = vmatprep.subr.bf16.mxu0 0
        %1280 = vmatpush2.bf16.xpose.msra.mxu0 0
        %1281 = vmatprep.subr.bf16.mxu0 0
        %1282 = vmatpush2.bf16.xpose.msra.mxu0 0
        %1283 = vmatprep.subr.bf16.mxu0 0
        %1284 = vmatpush2.bf16.xpose.msra.mxu0 0
        %1285 = vmatprep.subr.bf16.mxu0 0
        %1286 = vmatpush2.bf16.xpose.msra.mxu0 0
        %1287 = vmatprep.mubr.bf16.mxu0 0
        %1288 = vmatmul.mubr.bf16.gmra.mxu0 %v1250
        %v1289 = vpop.f32.mrf.mxu0
        %v1290 = vadd.f32 0.0, %v1289
        %v1291 = vpop.f32.mrf.mxu0
        %v1292 = vpop.f32.mrf.mxu0
        %v1293 = vpop.f32.mrf.mxu0
        %1294 = vdwg.mxu0
        %1295 = vrot.lane.b32.xlu0 %v780, 112
        %v1296 = vpop.permute.xlu0 %1295
        %1297 = vrot.lane.b32.xlu0 %v780, 80
        %v1298 = vpop.permute.xlu0 %1297
        %v1300 = vsel %vm783, %v1296, 0
        %v1303 = vsel %vm783, %v1298, 0
        %1305 = vmatprep.subr.bf16.mxu0 0
        %1306 = vmatpush1.bf16.xpose.msra.mxu0 0
        %1307 = vmatprep.subr.bf16.mxu0 0
        %1308 = vmatpush1.bf16.xpose.msra.mxu0 0
        %1309 = vmatprep.subr.bf16.mxu0 0
        %1310 = vmatpush1.bf16.xpose.msra.mxu0 0
        %1311 = vmatprep.subr.bf16.mxu0 0
        %1312 = vmatpush1.bf16.xpose.msra.mxu0 0
        %1313 = vmatprep.subr.bf16.mxu0 0
        %1314 = vmatpush1.bf16.xpose.msra.mxu0 0
        %1315 = vmatprep.subr.bf16.mxu0 0
        %1316 = vmatpush1.bf16.xpose.msra.mxu0 0
        %1317 = vmatprep.subr.bf16.mxu0 0
        %1318 = vmatpush1.bf16.xpose.msra.mxu0 0
        %1319 = vmatprep.subr.bf16.mxu0 0
        %1320 = vmatpush1.bf16.xpose.msra.mxu0 %v1303
        %1321 = vmatprep.subr.bf16.mxu0 0
        %1322 = vmatpush2.bf16.xpose.msra.mxu0 0
        %1323 = vmatprep.subr.bf16.mxu0 0
        %1324 = vmatpush2.bf16.xpose.msra.mxu0 0
        %1325 = vmatprep.subr.bf16.mxu0 0
        %1326 = vmatpush2.bf16.xpose.msra.mxu0 0
        %1327 = vmatprep.subr.bf16.mxu0 0
        %1328 = vmatpush2.bf16.xpose.msra.mxu0 0
        %1329 = vmatprep.subr.bf16.mxu0 0
        %1330 = vmatpush2.bf16.xpose.msra.mxu0 0
        %1331 = vmatprep.subr.bf16.mxu0 0
        %1332 = vmatpush2.bf16.xpose.msra.mxu0 0
        %1333 = vmatprep.subr.bf16.mxu0 0
        %1334 = vmatpush2.bf16.xpose.msra.mxu0 0
        %1335 = vmatprep.subr.bf16.mxu0 0
        %1336 = vmatpush2.bf16.xpose.msra.mxu0 0
        %1337 = vmatprep.mubr.bf16.mxu0 0
        %1338 = vmatmul.mubr.bf16.gmra.mxu0 %v1300
        %v1339 = vpop.f32.mrf.mxu0
        %v1340 = vadd.f32 0.0, %v1339
        %v1341 = vpop.f32.mrf.mxu0
        %v1342 = vpop.f32.mrf.mxu0
        %v1343 = vpop.f32.mrf.mxu0
        %1344 = vdwg.mxu0
        %v1345 = vsel %vm783, %v1290, -inf
        %1346 = vmax.xlane.f32.xlu0 %v1345
        %v1347 = vpop.xlane.xlu0 %1346
        %v1348 = vsel %vm783, %v1340, -inf
        %1349 = vmax.xlane.f32.xlu0 %v1348
        %v1350 = vpop.xlane.xlu0 %1349
        %v1351 = vsub.f32 %v1290, %v1347
        %v1352 = vsub.f32 %v1340, %v1350
        %v1353 = vmul.f32 %v1351, 1.442695
        %v1354 = vpow.pop %v1353
        %v1355 = vmul.f32 %v1352, 1.442695
        %v1356 = vpow.pop %v1355
        %v1357 = vsel %vm783, %v1354, 0.0
        %1358 = vadd.xlane.f32.xlu0 %v1357
        %v1359 = vpop.xlane.xlu0 %1358
        %v1360 = vsel %vm783, %v1356, 0.0
        %1361 = vadd.xlane.f32.xlu0 %v1360
        %v1362 = vpop.xlane.xlu0 %1361
        %v1363 = vrcp.pop %v1359
        %v1364 = vrcp.pop %v1362
        %v1365 = vmul.f32 %v1354, %v1363
        %v1366 = vmul.f32 %v1356, %v1364
        %v1367 = vpack.c.bf16 %v1365, %v1365
        %v1368 = vpack.c.bf16 %v1366, %v1366
        %1369 = vrot.lane.b32.xlu0 %v779, 48
        %v1370 = vpop.permute.xlu0 %1369
        %v1372 = vsel %vm783, %v1367, 0
        %v1375 = vsel %vm907, %v1370, 0
        %1377 = vmatprep.subr.bf16.mxu0 0
        %1378 = vmatpush1.bf16.msra.mxu0 0
        %1379 = vmatprep.subr.bf16.mxu0 0
        %1380 = vmatpush1.bf16.msra.mxu0 0
        %1381 = vmatprep.subr.bf16.mxu0 0
        %1382 = vmatpush1.bf16.msra.mxu0 0
        %1383 = vmatprep.subr.bf16.mxu0 0
        %1384 = vmatpush1.bf16.msra.mxu0 0
        %1385 = vmatprep.subr.bf16.mxu0 0
        %1386 = vmatpush1.bf16.msra.mxu0 0
        %1387 = vmatprep.subr.bf16.mxu0 0
        %1388 = vmatpush1.bf16.msra.mxu0 0
        %1389 = vmatprep.subr.bf16.mxu0 0
        %1390 = vmatpush1.bf16.msra.mxu0 0
        %1391 = vmatprep.subr.bf16.mxu0 0
        %1392 = vmatpush1.bf16.msra.mxu0 %v1375
        %1393 = vmatprep.subr.bf16.mxu0 0
        %1394 = vmatpush2.bf16.msra.mxu0 0
        %1395 = vmatprep.subr.bf16.mxu0 0
        %1396 = vmatpush2.bf16.msra.mxu0 0
        %1397 = vmatprep.subr.bf16.mxu0 0
        %1398 = vmatpush2.bf16.msra.mxu0 0
        %1399 = vmatprep.subr.bf16.mxu0 0
        %1400 = vmatpush2.bf16.msra.mxu0 0
        %1401 = vmatprep.subr.bf16.mxu0 0
        %1402 = vmatpush2.bf16.msra.mxu0 0
        %1403 = vmatprep.subr.bf16.mxu0 0
        %1404 = vmatpush2.bf16.msra.mxu0 0
        %1405 = vmatprep.subr.bf16.mxu0 0
        %1406 = vmatpush2.bf16.msra.mxu0 0
        %1407 = vmatprep.subr.bf16.mxu0 0
        %1408 = vmatpush2.bf16.msra.mxu0 0
        %1409 = vmatprep.mubr.bf16.mxu0 0
        %1410 = vmatmul.mubr.bf16.gmra.mxu0 %v1372
        %v1411 = vpop.f32.mrf.mxu0
        %v1412 = vadd.f32 0.0, %v1411
        %v1413 = vpop.f32.mrf.mxu0
        %v1414 = vpop.f32.mrf.mxu0
        %v1415 = vpop.f32.mrf.mxu0
        %1416 = vdwg.mxu0
        %1417 = vrot.lane.b32.xlu0 %v780, 48
        %v1418 = vpop.permute.xlu0 %1417
        %v1420 = vsel %vm783, %v1368, 0
        %v1423 = vsel %vm907, %v1418, 0
        %1425 = vmatprep.subr.bf16.mxu0 0
        %1426 = vmatpush1.bf16.msra.mxu0 0
        %1427 = vmatprep.subr.bf16.mxu0 0
        %1428 = vmatpush1.bf16.msra.mxu0 0
        %1429 = vmatprep.subr.bf16.mxu0 0
        %1430 = vmatpush1.bf16.msra.mxu0 0
        %1431 = vmatprep.subr.bf16.mxu0 0
        %1432 = vmatpush1.bf16.msra.mxu0 0
        %1433 = vmatprep.subr.bf16.mxu0 0
        %1434 = vmatpush1.bf16.msra.mxu0 0
        %1435 = vmatprep.subr.bf16.mxu0 0
        %1436 = vmatpush1.bf16.msra.mxu0 0
        %1437 = vmatprep.subr.bf16.mxu0 0
        %1438 = vmatpush1.bf16.msra.mxu0 0
        %1439 = vmatprep.subr.bf16.mxu0 0
        %1440 = vmatpush1.bf16.msra.mxu0 %v1423
        %1441 = vmatprep.subr.bf16.mxu0 0
        %1442 = vmatpush2.bf16.msra.mxu0 0
        %1443 = vmatprep.subr.bf16.mxu0 0
        %1444 = vmatpush2.bf16.msra.mxu0 0
        %1445 = vmatprep.subr.bf16.mxu0 0
        %1446 = vmatpush2.bf16.msra.mxu0 0
        %1447 = vmatprep.subr.bf16.mxu0 0
        %1448 = vmatpush2.bf16.msra.mxu0 0
        %1449 = vmatprep.subr.bf16.mxu0 0
        %1450 = vmatpush2.bf16.msra.mxu0 0
        %1451 = vmatprep.subr.bf16.mxu0 0
        %1452 = vmatpush2.bf16.msra.mxu0 0
        %1453 = vmatprep.subr.bf16.mxu0 0
        %1454 = vmatpush2.bf16.msra.mxu0 0
        %1455 = vmatprep.subr.bf16.mxu0 0
        %1456 = vmatpush2.bf16.msra.mxu0 0
        %1457 = vmatprep.mubr.bf16.mxu0 0
        %1458 = vmatmul.mubr.bf16.gmra.mxu0 %v1420
        %v1459 = vpop.f32.mrf.mxu0
        %v1460 = vadd.f32 0.0, %v1459
        %v1461 = vpop.f32.mrf.mxu0
        %v1462 = vpop.f32.mrf.mxu0
        %v1463 = vpop.f32.mrf.mxu0
        %1464 = vdwg.mxu0
        %v1465 = vpack.c.bf16 %v1460, %v1412
        %v1467 = vunpack.c.l.b16 %v1465
        %v1468 = vunpack.c.h.b16 %v1465
        %v1469 = vpack.c.b16 %v1467, %v1467
        %v1470 = vpack.c.b16 %v1468, %v1468
        %1471 = vrot.lane.b32.xlu0 %v1469, 16
        %v1472 = vpop.permute.xlu0 %1471
        %1473 = vrot.lane.b32.xlu0 %v1470, 16
        %v1474 = vpop.permute.xlu0 %1473
        %vm1477 = vcmask 191616
        %1478 = vst.msk [vmem:[#allocation2] sm:$0xf] %vm1477, %v1472
        %1479 = vst.msk [vmem:[#allocation2 + $0x4] sm:$0xf] %vm1477, %v1474
        %1480 = vrot.lane.b32.xlu0 %v779, 104
        %v1481 = vpop.permute.xlu0 %1480
        %1482 = vrot.lane.b32.xlu0 %v779, 72
        %v1483 = vpop.permute.xlu0 %1482
        %v1485 = vsel %vm783, %v1481, 0
        %v1488 = vsel %vm783, %v1483, 0
        %1490 = vmatprep.subr.bf16.mxu0 0
        %1491 = vmatpush1.bf16.xpose.msra.mxu0 0
        %1492 = vmatprep.subr.bf16.mxu0 0
        %1493 = vmatpush1.bf16.xpose.msra.mxu0 0
        %1494 = vmatprep.subr.bf16.mxu0 0
        %1495 = vmatpush1.bf16.xpose.msra.mxu0 0
        %1496 = vmatprep.subr.bf16.mxu0 0
        %1497 = vmatpush1.bf16.xpose.msra.mxu0 0
        %1498 = vmatprep.subr.bf16.mxu0 0
        %1499 = vmatpush1.bf16.xpose.msra.mxu0 0
        %1500 = vmatprep.subr.bf16.mxu0 0
        %1501 = vmatpush1.bf16.xpose.msra.mxu0 0
        %1502 = vmatprep.subr.bf16.mxu0 0
        %1503 = vmatpush1.bf16.xpose.msra.mxu0 0
        %1504 = vmatprep.subr.bf16.mxu0 0
        %1505 = vmatpush1.bf16.xpose.msra.mxu0 %v1488
        %1506 = vmatprep.subr.bf16.mxu0 0
        %1507 = vmatpush2.bf16.xpose.msra.mxu0 0
        %1508 = vmatprep.subr.bf16.mxu0 0
        %1509 = vmatpush2.bf16.xpose.msra.mxu0 0
        %1510 = vmatprep.subr.bf16.mxu0 0
        %1511 = vmatpush2.bf16.xpose.msra.mxu0 0
        %1512 = vmatprep.subr.bf16.mxu0 0
        %1513 = vmatpush2.bf16.xpose.msra.mxu0 0
        %1514 = vmatprep.subr.bf16.mxu0 0
        %1515 = vmatpush2.bf16.xpose.msra.mxu0 0
        %1516 = vmatprep.subr.bf16.mxu0 0
        %1517 = vmatpush2.bf16.xpose.msra.mxu0 0
        %1518 = vmatprep.subr.bf16.mxu0 0
        %1519 = vmatpush2.bf16.xpose.msra.mxu0 0
        %1520 = vmatprep.subr.bf16.mxu0 0
        %1521 = vmatpush2.bf16.xpose.msra.mxu0 0
        %1522 = vmatprep.mubr.bf16.mxu0 0
        %1523 = vmatmul.mubr.bf16.gmra.mxu0 %v1485
        %v1524 = vpop.f32.mrf.mxu0
        %v1525 = vadd.f32 0.0, %v1524
        %v1526 = vpop.f32.mrf.mxu0
        %v1527 = vpop.f32.mrf.mxu0
        %v1528 = vpop.f32.mrf.mxu0
        %1529 = vdwg.mxu0
        %1530 = vrot.lane.b32.xlu0 %v780, 104
        %v1531 = vpop.permute.xlu0 %1530
        %1532 = vrot.lane.b32.xlu0 %v780, 72
        %v1533 = vpop.permute.xlu0 %1532
        %v1535 = vsel %vm783, %v1531, 0
        %v1538 = vsel %vm783, %v1533, 0
        %1540 = vmatprep.subr.bf16.mxu0 0
        %1541 = vmatpush1.bf16.xpose.msra.mxu0 0
        %1542 = vmatprep.subr.bf16.mxu0 0
        %1543 = vmatpush1.bf16.xpose.msra.mxu0 0
        %1544 = vmatprep.subr.bf16.mxu0 0
        %1545 = vmatpush1.bf16.xpose.msra.mxu0 0
        %1546 = vmatprep.subr.bf16.mxu0 0
        %1547 = vmatpush1.bf16.xpose.msra.mxu0 0
        %1548 = vmatprep.subr.bf16.mxu0 0
        %1549 = vmatpush1.bf16.xpose.msra.mxu0 0
        %1550 = vmatprep.subr.bf16.mxu0 0
        %1551 = vmatpush1.bf16.xpose.msra.mxu0 0
        %1552 = vmatprep.subr.bf16.mxu0 0
        %1553 = vmatpush1.bf16.xpose.msra.mxu0 0
        %1554 = vmatprep.subr.bf16.mxu0 0
        %1555 = vmatpush1.bf16.xpose.msra.mxu0 %v1538
        %1556 = vmatprep.subr.bf16.mxu0 0
        %1557 = vmatpush2.bf16.xpose.msra.mxu0 0
        %1558 = vmatprep.subr.bf16.mxu0 0
        %1559 = vmatpush2.bf16.xpose.msra.mxu0 0
        %1560 = vmatprep.subr.bf16.mxu0 0
        %1561 = vmatpush2.bf16.xpose.msra.mxu0 0
        %1562 = vmatprep.subr.bf16.mxu0 0
        %1563 = vmatpush2.bf16.xpose.msra.mxu0 0
        %1564 = vmatprep.subr.bf16.mxu0 0
        %1565 = vmatpush2.bf16.xpose.msra.mxu0 0
        %1566 = vmatprep.subr.bf16.mxu0 0
        %1567 = vmatpush2.bf16.xpose.msra.mxu0 0
        %1568 = vmatprep.subr.bf16.mxu0 0
        %1569 = vmatpush2.bf16.xpose.msra.mxu0 0
        %1570 = vmatprep.subr.bf16.mxu0 0
        %1571 = vmatpush2.bf16.xpose.msra.mxu0 0
        %1572 = vmatprep.mubr.bf16.mxu0 0
        %1573 = vmatmul.mubr.bf16.gmra.mxu0 %v1535
        %v1574 = vpop.f32.mrf.mxu0
        %v1575 = vadd.f32 0.0, %v1574
        %v1576 = vpop.f32.mrf.mxu0
        %v1577 = vpop.f32.mrf.mxu0
        %v1578 = vpop.f32.mrf.mxu0
        %1579 = vdwg.mxu0
        %v1580 = vsel %vm783, %v1525, -inf
        %1581 = vmax.xlane.f32.xlu0 %v1580
        %v1582 = vpop.xlane.xlu0 %1581
        %v1583 = vsel %vm783, %v1575, -inf
        %1584 = vmax.xlane.f32.xlu0 %v1583
        %v1585 = vpop.xlane.xlu0 %1584
        %v1586 = vsub.f32 %v1525, %v1582
        %v1587 = vsub.f32 %v1575, %v1585
        %v1588 = vmul.f32 %v1586, 1.442695
        %v1589 = vpow.pop %v1588
        %v1590 = vmul.f32 %v1587, 1.442695
        %v1591 = vpow.pop %v1590
        %v1592 = vsel %vm783, %v1589, 0.0
        %1593 = vadd.xlane.f32.xlu0 %v1592
        %v1594 = vpop.xlane.xlu0 %1593
        %v1595 = vsel %vm783, %v1591, 0.0
        %1596 = vadd.xlane.f32.xlu0 %v1595
        %v1597 = vpop.xlane.xlu0 %1596
        %v1598 = vrcp.pop %v1594
        %v1599 = vrcp.pop %v1597
        %v1600 = vmul.f32 %v1589, %v1598
        %v1601 = vmul.f32 %v1591, %v1599
        %v1602 = vpack.c.bf16 %v1600, %v1600
        %v1603 = vpack.c.bf16 %v1601, %v1601
        %1604 = vrot.lane.b32.xlu0 %v779, 40
        %v1605 = vpop.permute.xlu0 %1604
        %v1607 = vsel %vm783, %v1602, 0
        %v1610 = vsel %vm907, %v1605, 0
        %1612 = vmatprep.subr.bf16.mxu0 0
        %1613 = vmatpush1.bf16.msra.mxu0 0
        %1614 = vmatprep.subr.bf16.mxu0 0
        %1615 = vmatpush1.bf16.msra.mxu0 0
        %1616 = vmatprep.subr.bf16.mxu0 0
        %1617 = vmatpush1.bf16.msra.mxu0 0
        %1618 = vmatprep.subr.bf16.mxu0 0
        %1619 = vmatpush1.bf16.msra.mxu0 0
        %1620 = vmatprep.subr.bf16.mxu0 0
        %1621 = vmatpush1.bf16.msra.mxu0 0
        %1622 = vmatprep.subr.bf16.mxu0 0
        %1623 = vmatpush1.bf16.msra.mxu0 0
        %1624 = vmatprep.subr.bf16.mxu0 0
        %1625 = vmatpush1.bf16.msra.mxu0 0
        %1626 = vmatprep.subr.bf16.mxu0 0
        %1627 = vmatpush1.bf16.msra.mxu0 %v1610
        %1628 = vmatprep.subr.bf16.mxu0 0
        %1629 = vmatpush2.bf16.msra.mxu0 0
        %1630 = vmatprep.subr.bf16.mxu0 0
        %1631 = vmatpush2.bf16.msra.mxu0 0
        %1632 = vmatprep.subr.bf16.mxu0 0
        %1633 = vmatpush2.bf16.msra.mxu0 0
        %1634 = vmatprep.subr.bf16.mxu0 0
        %1635 = vmatpush2.bf16.msra.mxu0 0
        %1636 = vmatprep.subr.bf16.mxu0 0
        %1637 = vmatpush2.bf16.msra.mxu0 0
        %1638 = vmatprep.subr.bf16.mxu0 0
        %1639 = vmatpush2.bf16.msra.mxu0 0
        %1640 = vmatprep.subr.bf16.mxu0 0
        %1641 = vmatpush2.bf16.msra.mxu0 0
        %1642 = vmatprep.subr.bf16.mxu0 0
        %1643 = vmatpush2.bf16.msra.mxu0 0
        %1644 = vmatprep.mubr.bf16.mxu0 0
        %1645 = vmatmul.mubr.bf16.gmra.mxu0 %v1607
        %v1646 = vpop.f32.mrf.mxu0
        %v1647 = vadd.f32 0.0, %v1646
        %v1648 = vpop.f32.mrf.mxu0
        %v1649 = vpop.f32.mrf.mxu0
        %v1650 = vpop.f32.mrf.mxu0
        %1651 = vdwg.mxu0
        %1652 = vrot.lane.b32.xlu0 %v780, 40
        %v1653 = vpop.permute.xlu0 %1652
        %v1655 = vsel %vm783, %v1603, 0
        %v1658 = vsel %vm907, %v1653, 0
        %1660 = vmatprep.subr.bf16.mxu0 0
        %1661 = vmatpush1.bf16.msra.mxu0 0
        %1662 = vmatprep.subr.bf16.mxu0 0
        %1663 = vmatpush1.bf16.msra.mxu0 0
        %1664 = vmatprep.subr.bf16.mxu0 0
        %1665 = vmatpush1.bf16.msra.mxu0 0
        %1666 = vmatprep.subr.bf16.mxu0 0
        %1667 = vmatpush1.bf16.msra.mxu0 0
        %1668 = vmatprep.subr.bf16.mxu0 0
        %1669 = vmatpush1.bf16.msra.mxu0 0
        %1670 = vmatprep.subr.bf16.mxu0 0
        %1671 = vmatpush1.bf16.msra.mxu0 0
        %1672 = vmatprep.subr.bf16.mxu0 0
        %1673 = vmatpush1.bf16.msra.mxu0 0
        %1674 = vmatprep.subr.bf16.mxu0 0
        %1675 = vmatpush1.bf16.msra.mxu0 %v1658
        %1676 = vmatprep.subr.bf16.mxu0 0
        %1677 = vmatpush2.bf16.msra.mxu0 0
        %1678 = vmatprep.subr.bf16.mxu0 0
        %1679 = vmatpush2.bf16.msra.mxu0 0
        %1680 = vmatprep.subr.bf16.mxu0 0
        %1681 = vmatpush2.bf16.msra.mxu0 0
        %1682 = vmatprep.subr.bf16.mxu0 0
        %1683 = vmatpush2.bf16.msra.mxu0 0
        %1684 = vmatprep.subr.bf16.mxu0 0
        %1685 = vmatpush2.bf16.msra.mxu0 0
        %1686 = vmatprep.subr.bf16.mxu0 0
        %1687 = vmatpush2.bf16.msra.mxu0 0
        %1688 = vmatprep.subr.bf16.mxu0 0
        %1689 = vmatpush2.bf16.msra.mxu0 0
        %1690 = vmatprep.subr.bf16.mxu0 0
        %1691 = vmatpush2.bf16.msra.mxu0 0
        %1692 = vmatprep.mubr.bf16.mxu0 0
        %1693 = vmatmul.mubr.bf16.gmra.mxu0 %v1655
        %v1694 = vpop.f32.mrf.mxu0
        %v1695 = vadd.f32 0.0, %v1694
        %v1696 = vpop.f32.mrf.mxu0
        %v1697 = vpop.f32.mrf.mxu0
        %v1698 = vpop.f32.mrf.mxu0
        %1699 = vdwg.mxu0
        %v1700 = vpack.c.bf16 %v1695, %v1647
        %v1702 = vunpack.c.l.b16 %v1700
        %v1703 = vunpack.c.h.b16 %v1700
        %v1704 = vpack.c.b16 %v1702, %v1702
        %v1705 = vpack.c.b16 %v1703, %v1703
        %1706 = vrot.lane.b32.xlu0 %v1704, 24
        %v1707 = vpop.permute.xlu0 %1706
        %1708 = vrot.lane.b32.xlu0 %v1705, 24
        %v1709 = vpop.permute.xlu0 %1708
        %vm1712 = vcmask 257216
        %1713 = vst.msk [vmem:[#allocation2] sm:$0xf] %vm1712, %v1707
        %1714 = vst.msk [vmem:[#allocation2 + $0x4] sm:$0xf] %vm1712, %v1709
        %v1715 = vld [vmem:[#allocation2] sm:$0xf]
        %v1716 = vld [vmem:[#allocation2 + $0x4] sm:$0xf]
        %v1717 = vld [vmem:[%s5] sm:$0xf]
        %v1718 = vld [vmem:[%s5 + $0x4] sm:$0xf]
        %v1719 = vld [vmem:[%s5 + $0x8] sm:$0xf]
        %v1720 = vld [vmem:[%s5 + $0xc] sm:$0xf]
        %v1721 = vld [vmem:[%s6] sm:$0x1]
        %v1723 = vlaneseq
        %v1724 = vshrl.u32 %v1723, 7
        %v1725 = vsub.s32 0, %v1724
        %v1726 = vrot.slane %v1721, %v1725
        %v1730 = vunpack.c.l.b16 %v1715
        %v1731 = vunpack.c.l.b16 %v1716
        %v1732 = vpack.c.b16 %v1731, %v1730
        %v1737 = vunpack.c.l.b16 %v1717
        %v1738 = vunpack.c.l.b16 %v1718
        %v1739 = vunpack.c.l.b16 %v1719
        %v1740 = vunpack.c.l.b16 %v1720
        %v1741 = vpack.c.b16 %v1738, %v1737
        %v1742 = vpack.c.b16 %v1740, %v1739
        %v1746 = vsel %vm663, %v1732, 0
        %1748 = vmatprep.subr.bf16.mxu0 0
        %1749 = vmatpush1.bf16.msra.mxu0 0
        %1750 = vmatprep.subr.bf16.mxu0 0
        %1751 = vmatpush1.bf16.msra.mxu0 0
        %1752 = vmatprep.subr.bf16.mxu0 0
        %1753 = vmatpush1.bf16.msra.mxu0 0
        %1754 = vmatprep.subr.bf16.mxu0 0
        %1755 = vmatpush1.bf16.msra.mxu0 0
        %1756 = vmatprep.subr.bf16.mxu0 0
        %1757 = vmatpush1.bf16.msra.mxu0 0
        %1758 = vmatprep.subr.bf16.mxu0 0
        %1759 = vmatpush1.bf16.msra.mxu0 0
        %1760 = vmatprep.subr.bf16.mxu0 0
        %1761 = vmatpush1.bf16.msra.mxu0 %v1742
        %1762 = vmatprep.subr.bf16.mxu0 0
        %1763 = vmatpush1.bf16.msra.mxu0 %v1741
        %1764 = vmatprep.subr.bf16.mxu0 0
        %1765 = vmatpush2.bf16.msra.mxu0 0
        %1766 = vmatprep.subr.bf16.mxu0 0
        %1767 = vmatpush2.bf16.msra.mxu0 0
        %1768 = vmatprep.subr.bf16.mxu0 0
        %1769 = vmatpush2.bf16.msra.mxu0 0
        %1770 = vmatprep.subr.bf16.mxu0 0
        %1771 = vmatpush2.bf16.msra.mxu0 0
        %1772 = vmatprep.subr.bf16.mxu0 0
        %1773 = vmatpush2.bf16.msra.mxu0 0
        %1774 = vmatprep.subr.bf16.mxu0 0
        %1775 = vmatpush2.bf16.msra.mxu0 0
        %1776 = vmatprep.subr.bf16.mxu0 0
        %1777 = vmatpush2.bf16.msra.mxu0 0
        %1778 = vmatprep.subr.bf16.mxu0 0
        %1779 = vmatpush2.bf16.msra.mxu0 0
        %1780 = vmatprep.mubr.bf16.mxu0 0
        %1781 = vmatmul.mubr.bf16.gmra.mxu0 %v1746
        %v1782 = vpop.f32.mrf.mxu0
        %v1783 = vadd.f32 %v1726, %v1782
        %v1784 = vpop.f32.mrf.mxu0
        %v1785 = vpop.f32.mrf.mxu0
        %v1786 = vadd.f32 %v1726, %v1785
        %v1787 = vpop.f32.mrf.mxu0
        %1788 = vdwg.mxu0
        %v1789 = vpack.c.bf16 %v1786, %v1783
        %v1790 = vld [vmem:[%s7] sm:$0xf]
        %v1791 = vld [vmem:[%s7 + $0x4] sm:$0xf]
        %v1792 = vld [vmem:[%s7 + $0x8] sm:$0xf]
        %v1793 = vld [vmem:[%s7 + $0xc] sm:$0xf]
        %v1794 = vld [vmem:[%s8] sm:$0x1]
        %v1796 = vlaneseq
        %v1797 = vshrl.u32 %v1796, 7
        %v1798 = vsub.s32 0, %v1797
        %v1799 = vrot.slane %v1794, %v1798
        %v1805 = vunpack.c.l.b16 %v1790
        %v1806 = vunpack.c.l.b16 %v1791
        %v1807 = vunpack.c.l.b16 %v1792
        %v1808 = vunpack.c.l.b16 %v1793
        %v1809 = vpack.c.b16 %v1806, %v1805
        %v1810 = vpack.c.b16 %v1808, %v1807
        %v1814 = vsel %vm663, %v1789, 0
        %1816 = vmatprep.subr.bf16.mxu0 0
        %1817 = vmatpush1.bf16.msra.mxu0 0
        %1818 = vmatprep.subr.bf16.mxu0 0
        %1819 = vmatpush1.bf16.msra.mxu0 0
        %1820 = vmatprep.subr.bf16.mxu0 0
        %1821 = vmatpush1.bf16.msra.mxu0 0
        %1822 = vmatprep.subr.bf16.mxu0 0
        %1823 = vmatpush1.bf16.msra.mxu0 0
        %1824 = vmatprep.subr.bf16.mxu0 0
        %1825 = vmatpush1.bf16.msra.mxu0 0
        %1826 = vmatprep.subr.bf16.mxu0 0
        %1827 = vmatpush1.bf16.msra.mxu0 0
        %1828 = vmatprep.subr.bf16.mxu0 0
        %1829 = vmatpush1.bf16.msra.mxu0 %v1810
        %1830 = vmatprep.subr.bf16.mxu0 0
        %1831 = vmatpush1.bf16.msra.mxu0 %v1809
        %1832 = vmatprep.subr.bf16.mxu0 0
        %1833 = vmatpush2.bf16.msra.mxu0 0
        %1834 = vmatprep.subr.bf16.mxu0 0
        %1835 = vmatpush2.bf16.msra.mxu0 0
        %1836 = vmatprep.subr.bf16.mxu0 0
        %1837 = vmatpush2.bf16.msra.mxu0 0
        %1838 = vmatprep.subr.bf16.mxu0 0
        %1839 = vmatpush2.bf16.msra.mxu0 0
        %1840 = vmatprep.subr.bf16.mxu0 0
        %1841 = vmatpush2.bf16.msra.mxu0 0
        %1842 = vmatprep.subr.bf16.mxu0 0
        %1843 = vmatpush2.bf16.msra.mxu0 0
        %1844 = vmatprep.subr.bf16.mxu0 0
        %1845 = vmatpush2.bf16.msra.mxu0 0
        %1846 = vmatprep.subr.bf16.mxu0 0
        %1847 = vmatpush2.bf16.msra.mxu0 0
        %1848 = vmatprep.mubr.bf16.mxu0 0
        %1849 = vmatmul.mubr.bf16.gmra.mxu0 %v1814
        %v1850 = vpop.f32.mrf.mxu0
        %v1851 = vadd.f32 %v1799, %v1850
        %v1852 = vpop.f32.mrf.mxu0
        %v1853 = vpop.f32.mrf.mxu0
        %v1854 = vadd.f32 %v1799, %v1853
        %v1855 = vpop.f32.mrf.mxu0
        %1856 = vdwg.mxu0
        %v1857 = vmul.f32 %v1851, 0.5
        %v1858 = vmul.f32 %v1854, 0.5
        %v1859 = vmul.f32 %v1851, 0.70710677
        %v1860 = vmul.f32 %v1854, 0.70710677
        %v1861 = verf.f32.pop %v1859
        %v1862 = verf.f32.pop %v1860
        %v1863 = vadd.f32 %v1861, 1.0
        %v1864 = vadd.f32 %v1862, 1.0
        %v1865 = vmul.f32 %v1857, %v1863
        %v1866 = vmul.f32 %v1858, %v1864
        %v1867 = vpack.c.bf16 %v1866, %v1865
        %v1868 = vld [vmem:[%s9] sm:$0xf]
        %v1869 = vld [vmem:[%s10] sm:$0x1]
        %v1871 = vlaneseq
        %v1872 = vshrl.u32 %v1871, 7
        %v1873 = vsub.s32 0, %v1872
        %v1874 = vrot.slane %v1869, %v1873
        %v1877 = vsel %vm783, %v1867, 0
        %v1880 = vsel %vm907, %v1868, 0
        %1882 = vmatprep.subr.bf16.mxu0 0
        %1883 = vmatpush1.bf16.msra.mxu0 0
        %1884 = vmatprep.subr.bf16.mxu0 0
        %1885 = vmatpush1.bf16.msra.mxu0 0
        %1886 = vmatprep.subr.bf16.mxu0 0
        %1887 = vmatpush1.bf16.msra.mxu0 0
        %1888 = vmatprep.subr.bf16.mxu0 0
        %1889 = vmatpush1.bf16.msra.mxu0 0
        %1890 = vmatprep.subr.bf16.mxu0 0
        %1891 = vmatpush1.bf16.msra.mxu0 0
        %1892 = vmatprep.subr.bf16.mxu0 0
        %1893 = vmatpush1.bf16.msra.mxu0 0
        %1894 = vmatprep.subr.bf16.mxu0 0
        %1895 = vmatpush1.bf16.msra.mxu0 0
        %1896 = vmatprep.subr.bf16.mxu0 0
        %1897 = vmatpush1.bf16.msra.mxu0 %v1880
        %1898 = vmatprep.subr.bf16.mxu0 0
        %1899 = vmatpush2.bf16.msra.mxu0 0
        %1900 = vmatprep.subr.bf16.mxu0 0
        %1901 = vmatpush2.bf16.msra.mxu0 0
        %1902 = vmatprep.subr.bf16.mxu0 0
        %1903 = vmatpush2.bf16.msra.mxu0 0
        %1904 = vmatprep.subr.bf16.mxu0 0
        %1905 = vmatpush2.bf16.msra.mxu0 0
        %1906 = vmatprep.subr.bf16.mxu0 0
        %1907 = vmatpush2.bf16.msra.mxu0 0
        %1908 = vmatprep.subr.bf16.mxu0 0
        %1909 = vmatpush2.bf16.msra.mxu0 0
        %1910 = vmatprep.subr.bf16.mxu0 0
        %1911 = vmatpush2.bf16.msra.mxu0 0
        %1912 = vmatprep.subr.bf16.mxu0 0
        %1913 = vmatpush2.bf16.msra.mxu0 0
        %1914 = vmatprep.mubr.bf16.mxu0 0
        %1915 = vmatmul.mubr.bf16.gmra.mxu0 %v1877
        %v1916 = vpop.f32.mrf.mxu0
        %v1917 = vadd.f32 %v1874, %v1916
        %v1918 = vpop.f32.mrf.mxu0
        %v1919 = vpop.f32.mrf.mxu0
        %v1920 = vadd.f32 %v1874, %v1919
        %v1921 = vpop.f32.mrf.mxu0
        %1922 = vdwg.mxu0
        %v1923 = vadd.f32 %v659, %v1783
        %v1924 = vadd.f32 %v660, %v1786
        %v1925 = vadd.f32 %v1923, %v1917
        %v1926 = vadd.f32 %v1924, %v1920
        %v1927 = vld [vmem:[%s11] sm:$0x1]
        %v1928 = vld [vmem:[%s12] sm:$0x1]
        %v1929 = vsel %vm663, %v1925, 0.0
        %1930 = vadd.xlane.f32.xlu0 %v1929
        %v1931 = vpop.xlane.xlu0 %1930
        %v1932 = vsel %vm663, %v1926, 0.0
        %1933 = vadd.xlane.f32.xlu0 %v1932
        %v1934 = vpop.xlane.xlu0 %1933
        %v1935 = vmul.f32 %v1931, %v670
        %v1936 = vmul.f32 %v1934, %v670
        %v1937 = vsub.f32 %v1925, %v1935
        %v1938 = vsub.f32 %v1926, %v1936
        %v1939 = vmul.f32 %v1937, %v1937
        %v1940 = vmul.f32 %v1938, %v1938
        %v1941 = vsel %vm663, %v1939, 0.0
        %1942 = vadd.xlane.f32.xlu0 %v1941
        %v1943 = vpop.xlane.xlu0 %1942
        %v1944 = vsel %vm663, %v1940, 0.0
        %1945 = vadd.xlane.f32.xlu0 %v1944
        %v1946 = vpop.xlane.xlu0 %1945
        %v1947 = vmul.f32 %v1943, %v670
        %v1948 = vmul.f32 %v1946, %v670
        %v1949 = vadd.f32 %v1947, 1e-05
        %v1950 = vadd.f32 %v1948, 1e-05
        %v1951 = vrsqrt.pop %v1949
        %v1952 = vrsqrt.pop %v1950
        %v1953 = vmul.f32 %v1937, %v1951
        %v1954 = vmul.f32 %v1938, %v1952
        %v1956 = vlaneseq
        %v1957 = vshrl.u32 %v1956, 7
        %v1958 = vsub.s32 0, %v1957
        %v1959 = vrot.slane %v1927, %v1958
        %v1961 = vmul.f32 %v1953, %v1959
        %v1962 = vmul.f32 %v1954, %v1959
        %v1964 = vlaneseq
        %v1965 = vshrl.u32 %v1964, 7
        %v1966 = vsub.s32 0, %v1965
        %v1967 = vrot.slane %v1928, %v1966
        %v1969 = vadd.f32 %v1961, %v1967
        %v1970 = vadd.f32 %v1962, %v1967
        %v1971 = vpack.c.bf16 %v1970, %v1969
        %v1972 = vld [vmem:[%s13] sm:$0xf]
        %v1973 = vld [vmem:[%s13 + $0x4] sm:$0xf]
        %v1974 = vld [vmem:[%s13 + $0x8] sm:$0xf]
        %v1975 = vld [vmem:[%s13 + $0xc] sm:$0xf]
        %v1976 = vld [vmem:[%s14] sm:$0x1]
        %v1978 = vlaneseq
        %v1979 = vshrl.u32 %v1978, 7
        %v1980 = vsub.s32 0, %v1979
        %v1981 = vrot.slane %v1976, %v1980
        %v1987 = vunpack.c.l.b16 %v1972
        %v1988 = vunpack.c.l.b16 %v1973
        %v1989 = vunpack.c.l.b16 %v1974
        %v1990 = vunpack.c.l.b16 %v1975
        %v1991 = vpack.c.b16 %v1988, %v1987
        %v1992 = vpack.c.b16 %v1990, %v1989
        %v1996 = vsel %vm663, %v1971, 0
        %1998 = vmatprep.subr.bf16.mxu0 0
        %1999 = vmatpush1.bf16.msra.mxu0 0
        %2000 = vmatprep.subr.bf16.mxu0 0
        %2001 = vmatpush1.bf16.msra.mxu0 0
        %2002 = vmatprep.subr.bf16.mxu0 0
        %2003 = vmatpush1.bf16.msra.mxu0 0
        %2004 = vmatprep.subr.bf16.mxu0 0
        %2005 = vmatpush1.bf16.msra.mxu0 0
        %2006 = vmatprep.subr.bf16.mxu0 0
        %2007 = vmatpush1.bf16.msra.mxu0 0
        %2008 = vmatprep.subr.bf16.mxu0 0
        %2009 = vmatpush1.bf16.msra.mxu0 0
        %2010 = vmatprep.subr.bf16.mxu0 0
        %2011 = vmatpush1.bf16.msra.mxu0 %v1992
        %2012 = vmatprep.subr.bf16.mxu0 0
        %2013 = vmatpush1.bf16.msra.mxu0 %v1991
        %2014 = vmatprep.subr.bf16.mxu0 0
        %2015 = vmatpush2.bf16.msra.mxu0 0
        %2016 = vmatprep.subr.bf16.mxu0 0
        %2017 = vmatpush2.bf16.msra.mxu0 0
        %2018 = vmatprep.subr.bf16.mxu0 0
        %2019 = vmatpush2.bf16.msra.mxu0 0
        %2020 = vmatprep.subr.bf16.mxu0 0
        %2021 = vmatpush2.bf16.msra.mxu0 0
        %2022 = vmatprep.subr.bf16.mxu0 0
        %2023 = vmatpush2.bf16.msra.mxu0 0
        %2024 = vmatprep.subr.bf16.mxu0 0
        %2025 = vmatpush2.bf16.msra.mxu0 0
        %2026 = vmatprep.subr.bf16.mxu0 0
        %2027 = vmatpush2.bf16.msra.mxu0 0
        %2028 = vmatprep.subr.bf16.mxu0 0
        %2029 = vmatpush2.bf16.msra.mxu0 0
        %2030 = vmatprep.mubr.bf16.mxu0 0
        %2031 = vmatmul.mubr.bf16.gmra.mxu0 %v1996
        %v2032 = vpop.f32.mrf.mxu0
        %v2033 = vadd.f32 %v1981, %v2032
        %v2034 = vpop.f32.mrf.mxu0
        %v2035 = vpop.f32.mrf.mxu0
        %v2036 = vadd.f32 %v1981, %v2035
        %v2037 = vpop.f32.mrf.mxu0
        %2038 = vdwg.mxu0
        %v2039 = vmul.f32 %v2033, 1.702
        %v2040 = vmul.f32 %v2036, 1.702
        %v2041 = vxor.u32 %v2039, 2147483648
        %v2042 = vxor.u32 %v2040, 2147483648
        %v2043 = vmul.f32 %v2041, 1.442695
        %v2044 = vpow.pop %v2043
        %v2045 = vmul.f32 %v2042, 1.442695
        %v2046 = vpow.pop %v2045
        %v2047 = vadd.f32 %v2044, 1.0
        %v2048 = vadd.f32 %v2046, 1.0
        %v2049 = vrcp.pop %v2047
        %v2050 = vmul.f32 1.0, %v2049
        %v2051 = vrcp.pop %v2048
        %v2052 = vmul.f32 1.0, %v2051
        %v2053 = vmul.f32 %v2033, %v2050
        %v2054 = vmul.f32 %v2036, %v2052
        %v2055 = vpack.c.bf16 %v2054, %v2053
        %v2056 = vld [vmem:[%s15] sm:$0xf]
        %v2057 = vld [vmem:[%s15 + $0x4] sm:$0xf]
        %v2058 = vld [vmem:[%s15 + $0x8] sm:$0xf]
        %v2059 = vld [vmem:[%s15 + $0xc] sm:$0xf]
        %v2060 = vld [vmem:[%s15 + $0x10] sm:$0xf]
        %v2061 = vld [vmem:[%s15 + $0x14] sm:$0xf]
        %v2062 = vld [vmem:[%s15 + $0x18] sm:$0xf]
        %v2063 = vld [vmem:[%s15 + $0x1c] sm:$0xf]
        %v2064 = vld [vmem:[%s15 + $0x20] sm:$0xf]
        %v2065 = vld [vmem:[%s15 + $0x24] sm:$0xf]
        %v2066 = vld [vmem:[%s15 + $0x28] sm:$0xf]
        %v2067 = vld [vmem:[%s15 + $0x2c] sm:$0xf]
        %v2068 = vld [vmem:[%s15 + $0x30] sm:$0xf]
        %v2069 = vld [vmem:[%s15 + $0x34] sm:$0xf]
        %v2070 = vld [vmem:[%s15 + $0x38] sm:$0xf]
        %v2071 = vld [vmem:[%s15 + $0x3c] sm:$0xf]
        %v2072 = vld [vmem:[%s16] sm:$0x1]
        %v2074 = vlaneseq
        %v2075 = vshrl.u32 %v2074, 7
        %v2076 = vsub.s32 0, %v2075
        %v2077 = vrot.slane %v2072, %v2076
        %v2095 = vunpack.c.l.b16 %v2056
        %v2096 = vunpack.c.l.b16 %v2057
        %v2097 = vunpack.c.l.b16 %v2058
        %v2098 = vunpack.c.l.b16 %v2059
        %v2099 = vunpack.c.l.b16 %v2060
        %v2100 = vunpack.c.l.b16 %v2061
        %v2101 = vunpack.c.l.b16 %v2062
        %v2102 = vunpack.c.l.b16 %v2063
        %v2103 = vunpack.c.l.b16 %v2064
        %v2104 = vunpack.c.l.b16 %v2065
        %v2105 = vunpack.c.l.b16 %v2066
        %v2106 = vunpack.c.l.b16 %v2067
        %v2107 = vunpack.c.l.b16 %v2068
        %v2108 = vunpack.c.l.b16 %v2069
        %v2109 = vunpack.c.l.b16 %v2070
        %v2110 = vunpack.c.l.b16 %v2071
        %v2111 = vpack.c.b16 %v2096, %v2095
        %v2112 = vpack.c.b16 %v2098, %v2097
        %v2113 = vpack.c.b16 %v2100, %v2099
        %v2114 = vpack.c.b16 %v2102, %v2101
        %v2115 = vpack.c.b16 %v2104, %v2103
        %v2116 = vpack.c.b16 %v2106, %v2105
        %v2117 = vpack.c.b16 %v2108, %v2107
        %v2118 = vpack.c.b16 %v2110, %v2109
        %2127 = vmatprep.subr.bf16.mxu0 0
        %2128 = vmatpush1.bf16.msra.mxu0 %v2118
        %2129 = vmatprep.subr.bf16.mxu0 0
        %2130 = vmatpush1.bf16.msra.mxu0 %v2117
        %2131 = vmatprep.subr.bf16.mxu0 0
        %2132 = vmatpush1.bf16.msra.mxu0 %v2116
        %2133 = vmatprep.subr.bf16.mxu0 0
        %2134 = vmatpush1.bf16.msra.mxu0 %v2115
        %2135 = vmatprep.subr.bf16.mxu0 0
        %2136 = vmatpush1.bf16.msra.mxu0 %v2114
        %2137 = vmatprep.subr.bf16.mxu0 0
        %2138 = vmatpush1.bf16.msra.mxu0 %v2113
        %2139 = vmatprep.subr.bf16.mxu0 0
        %2140 = vmatpush1.bf16.msra.mxu0 %v2112
        %2141 = vmatprep.subr.bf16.mxu0 0
        %2142 = vmatpush1.bf16.msra.mxu0 %v2111
        %2143 = vmatprep.subr.bf16.mxu0 0
        %2144 = vmatpush2.bf16.msra.mxu0 0
        %2145 = vmatprep.subr.bf16.mxu0 0
        %2146 = vmatpush2.bf16.msra.mxu0 0
        %2147 = vmatprep.subr.bf16.mxu0 0
        %2148 = vmatpush2.bf16.msra.mxu0 0
        %2149 = vmatprep.subr.bf16.mxu0 0
        %2150 = vmatpush2.bf16.msra.mxu0 0
        %2151 = vmatprep.subr.bf16.mxu0 0
        %2152 = vmatpush2.bf16.msra.mxu0 0
        %2153 = vmatprep.subr.bf16.mxu0 0
        %2154 = vmatpush2.bf16.msra.mxu0 0
        %2155 = vmatprep.subr.bf16.mxu0 0
        %2156 = vmatpush2.bf16.msra.mxu0 0
        %2157 = vmatprep.subr.bf16.mxu0 0
        %2158 = vmatpush2.bf16.msra.mxu0 0
        %2159 = vmatprep.mubr.bf16.mxu0 0
        %2160 = vmatmul.mubr.bf16.gmra.mxu0 %v2055
        %v2161 = vpop.f32.mrf.mxu0
        %v2162 = vadd.f32 %v2077, %v2161
        %v2163 = vpop.f32.mrf.mxu0
        %v2164 = vpop.f32.mrf.mxu0
        %v2165 = vadd.f32 %v2077, %v2164
        %v2166 = vpop.f32.mrf.mxu0
        %2167 = vdwg.mxu0
        %v2168 = vld [vmem:[%s17] sm:$0xf]
        %v2169 = vld [vmem:[%s17 + $0x4] sm:$0xf]
        %v2170 = vld [vmem:[%s17 + $0x8] sm:$0xf]
        %v2171 = vld [vmem:[%s17 + $0xc] sm:$0xf]
        %v2172 = vld [vmem:[%s18] sm:$0x1]
        %v2174 = vlaneseq
        %v2175 = vshrl.u32 %v2174, 7
        %v2176 = vsub.s32 0, %v2175
        %v2177 = vrot.slane %v2172, %v2176
        %v2183 = vunpack.c.l.b16 %v2168
        %v2184 = vunpack.c.l.b16 %v2169
        %v2185 = vunpack.c.l.b16 %v2170
        %v2186 = vunpack.c.l.b16 %v2171
        %v2187 = vpack.c.b16 %v2184, %v2183
        %v2188 = vpack.c.b16 %v2186, %v2185
        %2191 = vmatprep.subr.bf16.mxu0 0
        %2192 = vmatpush1.bf16.msra.mxu0 0
        %2193 = vmatprep.subr.bf16.mxu0 0
        %2194 = vmatpush1.bf16.msra.mxu0 0
        %2195 = vmatprep.subr.bf16.mxu0 0
        %2196 = vmatpush1.bf16.msra.mxu0 0
        %2197 = vmatprep.subr.bf16.mxu0 0
        %2198 = vmatpush1.bf16.msra.mxu0 0
        %2199 = vmatprep.subr.bf16.mxu0 0
        %2200 = vmatpush1.bf16.msra.mxu0 0
        %2201 = vmatprep.subr.bf16.mxu0 0
        %2202 = vmatpush1.bf16.msra.mxu0 0
        %2203 = vmatprep.subr.bf16.mxu0 0
        %2204 = vmatpush1.bf16.msra.mxu0 %v2188
        %2205 = vmatprep.subr.bf16.mxu0 0
        %2206 = vmatpush1.bf16.msra.mxu0 %v2187
        %2207 = vmatprep.subr.bf16.mxu0 0
        %2208 = vmatpush2.bf16.msra.mxu0 0
        %2209 = vmatprep.subr.bf16.mxu0 0
        %2210 = vmatpush2.bf16.msra.mxu0 0
        %2211 = vmatprep.subr.bf16.mxu0 0
        %2212 = vmatpush2.bf16.msra.mxu0 0
        %2213 = vmatprep.subr.bf16.mxu0 0
        %2214 = vmatpush2.bf16.msra.mxu0 0
        %2215 = vmatprep.subr.bf16.mxu0 0
        %2216 = vmatpush2.bf16.msra.mxu0 0
        %2217 = vmatprep.subr.bf16.mxu0 0
        %2218 = vmatpush2.bf16.msra.mxu0 0
        %2219 = vmatprep.subr.bf16.mxu0 0
        %2220 = vmatpush2.bf16.msra.mxu0 0
        %2221 = vmatprep.subr.bf16.mxu0 0
        %2222 = vmatpush2.bf16.msra.mxu0 0
        %2223 = vmatprep.mubr.bf16.mxu0 0
        %2224 = vmatmul.mubr.bf16.gmra.mxu0 %v1996
        %v2225 = vpop.f32.mrf.mxu0
        %v2226 = vadd.f32 %v2177, %v2225
        %v2227 = vpop.f32.mrf.mxu0
        %v2228 = vpop.f32.mrf.mxu0
        %v2229 = vadd.f32 %v2177, %v2228
        %v2230 = vpop.f32.mrf.mxu0
        %2231 = vdwg.mxu0
        %v2232 = vmul.f32 %v2226, 0.5
        %v2233 = vmul.f32 %v2229, 0.5
        %v2234 = vmul.f32 %v2226, 0.70710677
        %v2235 = vmul.f32 %v2229, 0.70710677
        %v2236 = verf.f32.pop %v2234
        %v2237 = verf.f32.pop %v2235
        %v2238 = vadd.f32 %v2236, 1.0
        %v2239 = vadd.f32 %v2237, 1.0
        %v2240 = vmul.f32 %v2232, %v2238
        %v2241 = vmul.f32 %v2233, %v2239
        %v2242 = vpack.c.bf16 %v2241, %v2240
        %v2243 = vld [vmem:[%s19] sm:$0xf]
        %v2244 = vld [vmem:[%s20] sm:$0x1]
        %v2246 = vlaneseq
        %v2247 = vshrl.u32 %v2246, 7
        %v2248 = vsub.s32 0, %v2247
        %v2249 = vrot.slane %v2244, %v2248
        %v2252 = vsel %vm783, %v2242, 0
        %v2255 = vsel %vm907, %v2243, 0
        %2257 = vmatprep.subr.bf16.mxu0 0
        %2258 = vmatpush1.bf16.msra.mxu0 0
        %2259 = vmatprep.subr.bf16.mxu0 0
        %2260 = vmatpush1.bf16.msra.mxu0 0
        %2261 = vmatprep.subr.bf16.mxu0 0
        %2262 = vmatpush1.bf16.msra.mxu0 0
        %2263 = vmatprep.subr.bf16.mxu0 0
        %2264 = vmatpush1.bf16.msra.mxu0 0
        %2265 = vmatprep.subr.bf16.mxu0 0
        %2266 = vmatpush1.bf16.msra.mxu0 0
        %2267 = vmatprep.subr.bf16.mxu0 0
        %2268 = vmatpush1.bf16.msra.mxu0 0
        %2269 = vmatprep.subr.bf16.mxu0 0
        %2270 = vmatpush1.bf16.msra.mxu0 0
        %2271 = vmatprep.subr.bf16.mxu0 0
        %2272 = vmatpush1.bf16.msra.mxu0 %v2255
        %2273 = vmatprep.subr.bf16.mxu0 0
        %2274 = vmatpush2.bf16.msra.mxu0 0
        %2275 = vmatprep.subr.bf16.mxu0 0
        %2276 = vmatpush2.bf16.msra.mxu0 0
        %2277 = vmatprep.subr.bf16.mxu0 0
        %2278 = vmatpush2.bf16.msra.mxu0 0
        %2279 = vmatprep.subr.bf16.mxu0 0
        %2280 = vmatpush2.bf16.msra.mxu0 0
        %2281 = vmatprep.subr.bf16.mxu0 0
        %2282 = vmatpush2.bf16.msra.mxu0 0
        %2283 = vmatprep.subr.bf16.mxu0 0
        %2284 = vmatpush2.bf16.msra.mxu0 0
        %2285 = vmatprep.subr.bf16.mxu0 0
        %2286 = vmatpush2.bf16.msra.mxu0 0
        %2287 = vmatprep.subr.bf16.mxu0 0
        %2288 = vmatpush2.bf16.msra.mxu0 0
        %2289 = vmatprep.mubr.bf16.mxu0 0
        %2290 = vmatmul.mubr.bf16.gmra.mxu0 %v2252
        %v2291 = vpop.f32.mrf.mxu0
        %v2292 = vadd.f32 %v2249, %v2291
        %v2293 = vpop.f32.mrf.mxu0
        %v2294 = vpop.f32.mrf.mxu0
        %v2295 = vadd.f32 %v2249, %v2294
        %v2296 = vpop.f32.mrf.mxu0
        %2297 = vdwg.mxu0
        %v2298 = vadd.f32 %v1925, %v2162
        %v2299 = vadd.f32 %v1926, %v2165
        %v2300 = vmul.f32 %v2292, 0.5
        %v2301 = vmul.f32 %v2295, 0.5
        %v2302 = vadd.f32 %v2298, %v2300
        %v2303 = vadd.f32 %v2299, %v2301
        %2304 = vst.msk [vmem:[%s650] sm:$0xff] %vm663, %v2302
        %2305 = vst.msk [vmem:[%s650 + $0x8] sm:$0xff] %vm663, %v2303
        %s2306 = sand.u32 %s489, 1
        %s2307 = scalar_lea.sflag [#allocation4], %s2306
        %s2308 = sand.u32 %s489, 1
        %s2309 = smul.addr %s2308, 16
        %s2310 = scalar_lea.vmem [#allocation3], %s2309
        // Predicated region
        $region105: #{tpu_custom_call.1} parent=103 // pred_check
          %p2311 = pneg %p499
        $region106: #{tpu_custom_call.1} parent=103 // pred_check_branch
          %2313 = sbr.rel (%p2311) target = $region108
        $region107: #{tpu_custom_call.1} parent=103 // pred_region
          %s2314 = smul.u32 2, %s35
          %s2316 = ssub.s32 256, 256
          %2317 = vsyncadd %s2307, %s2316
          %s2318 = smul.addr %s2314, 128
          %s2319 = scalar_lea.hbm %s21, %s2318
          %s2320 = sshll.u32 %s2310, 4
          %s2321 = int_to_ptr.vmem [resolvable:$true] %s2320
          %2326 = dma.vmem_to_hbm [thread:$0]  %s2321, 256, %s2319, %s2307, 128, 128, 8
        $region108: #{tpu_custom_call.1} parent=103 // pred_fallthru
          _
      $region104: #{tpu_custom_call.1} parent=5 // pred_fallthru
        _
      %p2327 = scmp.le.s32.totalorder 2, %s30
      // Predicated region
      $region109: #{tpu_custom_call.1} parent=5 // pred_check
        %p2328 = pneg %p2327
      $region110: #{tpu_custom_call.1} parent=5 // pred_check_branch
        %2330 = sbr.rel (%p2328) target = $region112
      $region111: #{tpu_custom_call.1} parent=5 // pred_region
        %s2331 = ssub.s32 %s30, 2
        // Predicated region
        $region113: #{tpu_custom_call.1} parent=111 // pred_check
          %p2332 = pneg %p505
        $region114: #{tpu_custom_call.1} parent=111 // pred_check_branch
          %2334 = sbr.rel (%p2332) target = $region116
        $region115: #{tpu_custom_call.1} parent=111 // pred_region
          %s2335 = sand.u32 %s490, 1
          %s2336 = scalar_lea.sflag [#allocation4], %s2335
          %s2337 = sand.u32 %s490, 1
          %s2338 = smul.addr %s2337, 16
          %s2339 = scalar_lea.vmem [#allocation3], %s2338
          %2340 = dma.done %s2336, 256
        $region116: #{tpu_custom_call.1} parent=111 // pred_fallthru
          _
      $region112: #{tpu_custom_call.1} parent=5 // pred_fallthru
        _
    $region6: #{tpu_custom_call.1} parent=1 // loop_footer
      %s34 = sadd.s32 1, %s30
    $region7: #{tpu_custom_call.1} parent=1 // loop_footer_branch
      %29 = sbr.rel target = $region3
    $region8: #{tpu_custom_call.1} parent=1 // loop_exit
      _
    %2341 = vsyncpa [#allocation4], 1
    %s2342 = scalar_lea.sflag [#allocation4], 1
    %2343 = vsyncpa %s2342, 1

</llo_original>
